<compile_context>
chip_gen: v7x
topology: tpu7x:2x2x1
jax: 0.10.0
libtpu: 0.0.40
codegen_flags: <defaults>
</compile_context>

<pallas_src>
import functools
import math

import jax
import jax.numpy as jnp
from jax.experimental import pallas as pl
from jax.experimental.pallas import tpu as pltpu

# ----------------------------- model config (small) -----------------------------
B = 2            # batch (per text)
S = 8            # sequence length
H = 32           # hidden size
N_HEADS = 2
D_HEAD = H // N_HEADS
N_LAYERS = 2
INTER = 64       # FFN intermediate size
VOCAB = 64
MAX_POS = 16
NUM_CLASSES = 4
LN_EPS = 1e-12   # BERT default


# ----------------------------- in-kernel helpers ---------------------------------
def _ln(x, gamma, beta, eps):
    mu = jnp.mean(x, axis=-1, keepdims=True)
    xc = x - mu
    var = jnp.mean(xc * xc, axis=-1, keepdims=True)
    return xc * jax.lax.rsqrt(var + eps) * gamma + beta


# ----------------------------- fused encoder kernel ------------------------------
def _bi_encoder_kernel(
    # layer-invariant inputs
    x0_ref,        # (T, H)   raw word+pos+type embedding sum (T = 2B*S)
    mask_ref,      # (T, T)   additive block-diagonal attention mask
    embln_ref,     # (2, H)   embedding LN gamma/beta
    # per-layer stacked weights (static leading-axis indexing in-kernel)
    wqkv_ref,      # (L*3*NH, H, Dh)   per-(layer, q/k/v, head) projection weights
    bqkv_ref,      # (L*3*NH, 1, Dh)   matching biases
    wo_ref,        # (L*NH, Dh, H)     per-(layer, head) output-projection blocks
    vecs_ref,      # (L, 8, H)  rows: [bo, ln1_g, ln1_b, b2, ln2_g, ln2_b, pad, pad]
    w1_ref,        # (L, H, INTER)
    b1_ref,        # (L, 1, INTER)
    w2_ref,        # (L, INTER, H)
    # classifier / loss inputs
    clfw_ref,      # (2, H, C)  classifier weight split for cls1 / cls2
    clfb_ref,      # (1, C)
    onehot_ref,    # (B, C)
    # outputs
    logits_ref,    # (B, C)
    loss_ref,      # (1, 1)
    # scratch
    x_state,       # VMEM (T, H) f32 — final activation, strided CLS reads
    *, batch, seq, n_layers, n_heads, d_head, hidden, eps,
):
    tokens = 2 * batch * seq
    scale = 1.0 / math.sqrt(d_head)
    mask = mask_ref[...]                                   # (T, T), loaded once

    # ---- embedding LayerNorm ----------------------------------------------------
    x = _ln(x0_ref[...], embln_ref[0:1, :], embln_ref[1:2, :], eps)

    # ---- encoder layers: in-kernel loop (no grid, no per-layer DMA churn) --------
    for l in range(n_layers):
        vl = vecs_ref[l]                                   # (8, H) coalesced vectors

        # multi-head self-attention, all sequences batched via block-diag mask
        attn = jnp.zeros((tokens, hidden), jnp.float32)
        for h in range(n_heads):
            qi = (l * 3 + 0) * n_heads + h
            ki = (l * 3 + 1) * n_heads + h
            vi = (l * 3 + 2) * n_heads + h
            # per-head projections: outputs start at lane 0, no lane slicing
            qh = jnp.dot(x, wqkv_ref[qi], preferred_element_type=jnp.float32) + bqkv_ref[qi]
            kh = jnp.dot(x, wqkv_ref[ki], preferred_element_type=jnp.float32) + bqkv_ref[ki]
            vh = jnp.dot(x, wqkv_ref[vi], preferred_element_type=jnp.float32) + bqkv_ref[vi]
            s = jax.lax.dot_general(qh, kh, (((1,), (1,)), ((), ())),
                                    preferred_element_type=jnp.float32) * scale
            s = s + mask                                    # (T, T) block-diagonal
            s = s - jnp.max(s, axis=-1, keepdims=True)
            p = jnp.exp(s)
            p = p * pl.reciprocal(jnp.sum(p, axis=-1, keepdims=True), approx=True)
            ctx = jnp.dot(p, vh, preferred_element_type=jnp.float32)          # (T, Dh)
            # recombine heads by accumulating into the output projection (no concat)
            attn = attn + jnp.dot(ctx, wo_ref[l * n_heads + h],
                                  preferred_element_type=jnp.float32)          # (T, H)
        attn = attn + vl[0:1, :]                           # attention output bias
        x = _ln(attn + x, vl[1:2, :], vl[2:3, :], eps)

        # FFN (GELU) + add & LN
        hmid = jnp.dot(x, w1_ref[l], preferred_element_type=jnp.float32) + b1_ref[l]
        # TODO(synk): bert-base uses exact (erf) GELU; tanh approximation used here.
        hmid = jax.nn.gelu(hmid, approximate=True)
        ffn = jnp.dot(hmid, w2_ref[l], preferred_element_type=jnp.float32) + vl[3:4, :]
        x = _ln(ffn + x, vl[4:5, :], vl[5:6, :], eps)

    x_state[...] = x

    # ---- classifier on the two CLS embeddings + cross-entropy --------------------
    # strided reads: text1 CLS rows {0, S, ...}, text2 CLS rows {B*S, B*S+S, ...}
    cls1 = x_state[pl.ds(0, batch, stride=seq), :]                  # (B, H)
    cls2 = x_state[pl.ds(batch * seq, batch, stride=seq), :]        # (B, H)
    logits = (jnp.dot(cls1, clfw_ref[0], preferred_element_type=jnp.float32)
              + jnp.dot(cls2, clfw_ref[1], preferred_element_type=jnp.float32)
              + clfb_ref[...])
    logits_ref[...] = logits

    # cross-entropy (computed from a zero one-hot when labels is None; tiny epilogue)
    mx = jnp.max(logits, axis=-1, keepdims=True)
    z = logits - mx
    lse = jnp.log(jnp.sum(jnp.exp(z), axis=-1, keepdims=True))
    logp = z - lse
    nll = -jnp.sum(onehot_ref[...] * logp, axis=-1, keepdims=True)  # (B, 1)
    loss_ref[...] = jnp.mean(nll, axis=0, keepdims=True)            # (1, 1)


def _fused_encoder_call(params, x0, mask_tt, onehot, batch, seq):
    tokens, hidden = x0.shape
    n_classes = params["clf_w"].shape[-1]

    kernel = functools.partial(
        _bi_encoder_kernel,
        batch=batch, seq=seq, n_layers=N_LAYERS, n_heads=N_HEADS,
        d_head=D_HEAD, hidden=hidden, eps=LN_EPS)

    # Single invocation: every operand is a full-array VMEM-resident block.
    n_inputs = 13
    in_specs = [pl.BlockSpec(memory_space=pltpu.MemorySpace.VMEM)
                for _ in range(n_inputs)]
    out_specs = (pl.BlockSpec(memory_space=pltpu.MemorySpace.VMEM),
                 pl.BlockSpec(memory_space=pltpu.MemorySpace.VMEM))

    logits, loss = pl.pallas_call(
        kernel,
        out_shape=(jax.ShapeDtypeStruct((batch, n_classes), jnp.float32),
                   jax.ShapeDtypeStruct((1, 1), jnp.float32)),
        in_specs=in_specs,
        out_specs=out_specs,
        scratch_shapes=[pltpu.VMEM((tokens, hidden), jnp.float32)],
    )(x0, mask_tt, params["emb_ln"],
      params["wqkv"], params["bqkv"], params["wo"], params["vecs"],
      params["w1"], params["b1"], params["w2"],
      params["clf_w"], params["clf_b"], onehot)
    return logits, loss


# ----------------------------- forward (glue + single kernel call) ---------------
def bi_encoder_forward(params, input_ids_text1, attention_mask_text1,
                       input_ids_text2, attention_mask_text2, labels=None):
    # Batch both text passes into one encoder run: (2B, S)
    ids = jnp.concatenate([input_ids_text1, input_ids_text2], axis=0)
    amask = jnp.concatenate([attention_mask_text1, attention_mask_text2], axis=0)
    n_seqs, seq = ids.shape
    batch = input_ids_text1.shape[0]
    tokens = n_seqs * seq

    # Embedding gather (plain-JAX glue) — word + position + token-type(0)
    emb = (params["word_emb"][ids]
           + params["pos_emb"][:seq][None, :, :]
           + params["type_emb"][0][None, None, :])
    x0 = emb.reshape(tokens, H).astype(jnp.float32)

    # Block-diagonal additive attention mask over all 2B sequences:
    #   same sequence & attended key -> 0, padded key -> -10000 (HF BERT), cross-seq -> -1e9
    seq_ids = jnp.repeat(jnp.arange(n_seqs), seq)                    # (T,)
    same_seq = seq_ids[:, None] == seq_ids[None, :]                  # (T, T)
    key_valid = amask.reshape(-1).astype(jnp.float32)                # (T,)
    mask_tt = jnp.where(same_seq,
                        (1.0 - key_valid)[None, :] * -10000.0,
                        jnp.float32(-1e9)).astype(jnp.float32)       # (T, T)

    if labels is not None:
        onehot = jax.nn.one_hot(labels, NUM_CLASSES, dtype=jnp.float32)
    else:
        onehot = jnp.zeros((batch, NUM_CLASSES), jnp.float32)

    logits, loss = _fused_encoder_call(params, x0, mask_tt, onehot, batch, seq)

    return {
        "loss": (loss[0, 0] if labels is not None else None),   # 'cross_entropy' loss_fn
        "logits": logits,
    }


# ----------------------------- deterministic parameters -------------------------
def init_params(key):
    keys = iter(jax.random.split(key, 16))

    def nrm(shape):
        return (0.02 * jax.random.normal(next(keys), shape)).astype(jnp.float32)

    L, NH, DH = N_LAYERS, N_HEADS, D_HEAD

    # coalesced per-layer row vectors: [bo, ln1_g, ln1_b, b2, ln2_g, ln2_b, pad, pad]
    zeros_h = jnp.zeros((L, 1, H), jnp.float32)
    ones_h = jnp.ones((L, 1, H), jnp.float32)
    vecs = jnp.concatenate(
        [zeros_h, ones_h, zeros_h, zeros_h, ones_h, zeros_h, zeros_h, zeros_h], axis=1)

    return {
        "word_emb": nrm((VOCAB, H)),
        "pos_emb": nrm((MAX_POS, H)),
        "type_emb": nrm((2, H)),
        "emb_ln": jnp.stack(
            [jnp.ones((H,), jnp.float32), jnp.zeros((H,), jnp.float32)], axis=0),  # (2,H)
        # per-(layer, q/k/v, head) projection weights: lane-0-aligned per-head outputs
        "wqkv": nrm((L * 3 * NH, H, DH)),
        "bqkv": jnp.zeros((L * 3 * NH, 1, DH), jnp.float32),
        # per-(layer, head) output-projection blocks (heads recombined by accumulation)
        "wo": nrm((L * NH, DH, H)),
        "vecs": vecs,                                   # (L, 8, H)
        "w1": nrm((L, H, INTER)),
        "b1": jnp.zeros((L, 1, INTER), jnp.float32),
        "w2": nrm((L, INTER, H)),
        # classifier Linear(2H -> C): slab 0 acts on cls1, slab 1 on cls2
        "clf_w": nrm((2, H, NUM_CLASSES)),
        "clf_b": jnp.zeros((1, NUM_CLASSES), jnp.float32),
    }


# ----------------------------- main ----------------------------------------------
if __name__ == "__main__":
    key = jax.random.PRNGKey(0)
    k_param, k_id1, k_id2, k_lbl = jax.random.split(key, 4)

    params = init_params(k_param)

    input_ids_text1 = jax.random.randint(k_id1, (B, S), 0, VOCAB, dtype=jnp.int32)
    input_ids_text2 = jax.random.randint(k_id2, (B, S), 0, VOCAB, dtype=jnp.int32)
    attention_mask_text1 = jnp.ones((B, S), jnp.int32)
    attention_mask_text2 = jnp.ones((B, S), jnp.int32).at[:, -2:].set(0)  # some padding
    labels = jax.random.randint(k_lbl, (B,), 0, NUM_CLASSES, dtype=jnp.int32)

    fwd = jax.jit(bi_encoder_forward)
    out = fwd(params, input_ids_text1, attention_mask_text1,
              input_ids_text2, attention_mask_text2, labels)

    jax.block_until_ready(out["logits"])
    jax.block_until_ready(out["loss"])
    assert out["logits"].shape == (B, NUM_CLASSES)
    assert out["loss"].shape == ()
    assert bool(jnp.isfinite(out["loss"]))
    assert bool(jnp.all(jnp.isfinite(out["logits"])))
    print("KERNEL_OK")
</pallas_src>

<mosaic_0001>
module attributes {stable_mosaic.version = 11 : i64} {
  func.func @_bi_encoder_kernel(%arg0: memref<32x32xf32, #tpu.memory_space<vmem>>, %arg1: memref<32x32xf32, #tpu.memory_space<vmem>>, %arg2: memref<2x32xf32, #tpu.memory_space<vmem>>, %arg3: memref<12x32x16xf32, #tpu.memory_space<vmem>>, %arg4: memref<12x1x16xf32, #tpu.memory_space<vmem>>, %arg5: memref<4x16x32xf32, #tpu.memory_space<vmem>>, %arg6: memref<2x8x32xf32, #tpu.memory_space<vmem>>, %arg7: memref<2x32x64xf32, #tpu.memory_space<vmem>>, %arg8: memref<2x1x64xf32, #tpu.memory_space<vmem>>, %arg9: memref<2x64x32xf32, #tpu.memory_space<vmem>>, %arg10: memref<2x32x4xf32, #tpu.memory_space<vmem>>, %arg11: memref<1x4xf32, #tpu.memory_space<vmem>>, %arg12: memref<2x4xf32, #tpu.memory_space<vmem>>, %arg13: memref<2x4xf32, #tpu.memory_space<vmem>>, %arg14: memref<1x1xf32, #tpu.memory_space<vmem>>, %arg15: memref<32x32xf32, #tpu.memory_space<vmem>>) attributes {dimension_semantics = [], scalar_prefetch = 0 : i64, scratch_operands = 1 : i64, tpu.core_type = #tpu.core_type<tc>} {
    %c0 = arith.constant 0 : index
    %c0_0 = arith.constant 0 : index
    %0 = vector.load %arg1[%c0, %c0_0] : memref<32x32xf32, #tpu.memory_space<vmem>>, vector<32x32xf32>
    %c0_1 = arith.constant 0 : index
    %c0_2 = arith.constant 0 : index
    %1 = vector.load %arg0[%c0_1, %c0_2] : memref<32x32xf32, #tpu.memory_space<vmem>>, vector<32x32xf32>
    %c0_3 = arith.constant 0 : index
    %c0_4 = arith.constant 0 : index
    %2 = vector.load %arg2[%c0_3, %c0_4] : memref<2x32xf32, #tpu.memory_space<vmem>>, vector<1x32xf32>
    %c1 = arith.constant 1 : index
    %c0_5 = arith.constant 0 : index
    %3 = vector.load %arg2[%c1, %c0_5] : memref<2x32xf32, #tpu.memory_space<vmem>>, vector<1x32xf32>
    %cst = arith.constant dense<0.000000e+00> : vector<32xf32>
    %4 = vector.multi_reduction <add>, %1, %cst [1] : vector<32x32xf32> to vector<32xf32>
    %5 = vector.shape_cast %4 : vector<32xf32> to vector<32x1xf32>
    %cst_6 = arith.constant 3.200000e+01 : f32
    %6 = vector.broadcast %cst_6 : f32 to vector<32x1xf32>
    %7 = arith.divf %5, %6 : vector<32x1xf32>
    %8 = vector.broadcast %7 : vector<32x1xf32> to vector<32x32xf32>
    %9 = arith.subf %1, %8 : vector<32x32xf32>
    %10 = arith.mulf %9, %9 : vector<32x32xf32>
    %cst_7 = arith.constant dense<0.000000e+00> : vector<32xf32>
    %11 = vector.multi_reduction <add>, %10, %cst_7 [1] : vector<32x32xf32> to vector<32xf32>
    %12 = vector.shape_cast %11 : vector<32xf32> to vector<32x1xf32>
    %cst_8 = arith.constant 3.200000e+01 : f32
    %13 = vector.broadcast %cst_8 : f32 to vector<32x1xf32>
    %14 = arith.divf %12, %13 : vector<32x1xf32>
    %cst_9 = arith.constant 9.99999996E-13 : f32
    %15 = vector.broadcast %cst_9 : f32 to vector<32x1xf32>
    %16 = arith.addf %14, %15 : vector<32x1xf32>
    %17 = math.rsqrt %16 : vector<32x1xf32>
    %18 = vector.broadcast %17 : vector<32x1xf32> to vector<32x32xf32>
    %19 = arith.mulf %9, %18 : vector<32x32xf32>
    %20 = vector.broadcast %2 : vector<1x32xf32> to vector<32x32xf32>
    %21 = arith.mulf %19, %20 : vector<32x32xf32>
    %22 = vector.broadcast %3 : vector<1x32xf32> to vector<32x32xf32>
    %23 = arith.addf %21, %22 : vector<32x32xf32>
    %c0_10 = arith.constant 0 : index
    %c0_11 = arith.constant 0 : index
    %c0_12 = arith.constant 0 : index
    %24 = vector.load %arg6[%c0_10, %c0_11, %c0_12] : memref<2x8x32xf32, #tpu.memory_space<vmem>>, vector<1x8x32xf32>
    %25 = vector.shape_cast %24 : vector<1x8x32xf32> to vector<8x32xf32>
    %cst_13 = arith.constant 0.000000e+00 : f32
    %26 = vector.broadcast %cst_13 : f32 to vector<32x32xf32>
    %c0_14 = arith.constant 0 : index
    %c0_15 = arith.constant 0 : index
    %c0_16 = arith.constant 0 : index
    %27 = vector.load %arg3[%c0_14, %c0_15, %c0_16] : memref<12x32x16xf32, #tpu.memory_space<vmem>>, vector<1x32x16xf32>
    %28 = vector.shape_cast %27 : vector<1x32x16xf32> to vector<32x16xf32>
    %cst_17 = arith.constant dense<0.000000e+00> : vector<32x16xf32>
    %29 = tpu.matmul %23, %28, %cst_17 {dimension_numbers = #tpu.dot_dimension_numbers<[1], [0], [0], [1], [0, 0, 1, 1], [], []>} : vector<32x32xf32>, vector<32x16xf32>, vector<32x16xf32> -> vector<32x16xf32>
    %c0_18 = arith.constant 0 : index
    %c0_19 = arith.constant 0 : index
    %c0_20 = arith.constant 0 : index
    %30 = vector.load %arg4[%c0_18, %c0_19, %c0_20] : memref<12x1x16xf32, #tpu.memory_space<vmem>>, vector<1x1x16xf32>
    %31 = vector.shape_cast %30 : vector<1x1x16xf32> to vector<1x16xf32>
    %32 = vector.broadcast %31 : vector<1x16xf32> to vector<32x16xf32>
    %33 = arith.addf %29, %32 : vector<32x16xf32>
    %c2 = arith.constant 2 : index
    %c0_21 = arith.constant 0 : index
    %c0_22 = arith.constant 0 : index
    %34 = vector.load %arg3[%c2, %c0_21, %c0_22] : memref<12x32x16xf32, #tpu.memory_space<vmem>>, vector<1x32x16xf32>
    %35 = vector.shape_cast %34 : vector<1x32x16xf32> to vector<32x16xf32>
    %cst_23 = arith.constant dense<0.000000e+00> : vector<32x16xf32>
    %36 = tpu.matmul %23, %35, %cst_23 {dimension_numbers = #tpu.dot_dimension_numbers<[1], [0], [0], [1], [0, 0, 1, 1], [], []>} : vector<32x32xf32>, vector<32x16xf32>, vector<32x16xf32> -> vector<32x16xf32>
    %c2_24 = arith.constant 2 : index
    %c0_25 = arith.constant 0 : index
    %c0_26 = arith.constant 0 : index
    %37 = vector.load %arg4[%c2_24, %c0_25, %c0_26] : memref<12x1x16xf32, #tpu.memory_space<vmem>>, vector<1x1x16xf32>
    %38 = vector.shape_cast %37 : vector<1x1x16xf32> to vector<1x16xf32>
    %39 = vector.broadcast %38 : vector<1x16xf32> to vector<32x16xf32>
    %40 = arith.addf %36, %39 : vector<32x16xf32>
    %c4 = arith.constant 4 : index
    %c0_27 = arith.constant 0 : index
    %c0_28 = arith.constant 0 : index
    %41 = vector.load %arg3[%c4, %c0_27, %c0_28] : memref<12x32x16xf32, #tpu.memory_space<vmem>>, vector<1x32x16xf32>
    %42 = vector.shape_cast %41 : vector<1x32x16xf32> to vector<32x16xf32>
    %cst_29 = arith.constant dense<0.000000e+00> : vector<32x16xf32>
    %43 = tpu.matmul %23, %42, %cst_29 {dimension_numbers = #tpu.dot_dimension_numbers<[1], [0], [0], [1], [0, 0, 1, 1], [], []>} : vector<32x32xf32>, vector<32x16xf32>, vector<32x16xf32> -> vector<32x16xf32>
    %c4_30 = arith.constant 4 : index
    %c0_31 = arith.constant 0 : index
    %c0_32 = arith.constant 0 : index
    %44 = vector.load %arg4[%c4_30, %c0_31, %c0_32] : memref<12x1x16xf32, #tpu.memory_space<vmem>>, vector<1x1x16xf32>
    %45 = vector.shape_cast %44 : vector<1x1x16xf32> to vector<1x16xf32>
    %46 = vector.broadcast %45 : vector<1x16xf32> to vector<32x16xf32>
    %47 = arith.addf %43, %46 : vector<32x16xf32>
    %cst_33 = arith.constant dense<0.000000e+00> : vector<32x32xf32>
    %48 = tpu.matmul %33, %40, %cst_33 {dimension_numbers = #tpu.dot_dimension_numbers<[1], [1], [0], [0], [0, 0, 1, 0], [], []>} : vector<32x16xf32>, vector<32x16xf32>, vector<32x32xf32> -> vector<32x32xf32>
    %cst_34 = arith.constant 2.500000e-01 : f32
    %49 = vector.broadcast %cst_34 : f32 to vector<32x32xf32>
    %50 = arith.mulf %48, %49 : vector<32x32xf32>
    %51 = arith.addf %50, %0 : vector<32x32xf32>
    %cst_35 = arith.constant dense<0xFF800000> : vector<32xf32>
    %52 = vector.multi_reduction <maximumf>, %51, %cst_35 [1] : vector<32x32xf32> to vector<32xf32>
    %53 = vector.shape_cast %52 : vector<32xf32> to vector<32x1xf32>
    %54 = vector.broadcast %53 : vector<32x1xf32> to vector<32x32xf32>
    %55 = arith.subf %51, %54 : vector<32x32xf32>
    %56 = math.exp %55 : vector<32x32xf32>
    %cst_36 = arith.constant dense<0.000000e+00> : vector<32xf32>
    %57 = vector.multi_reduction <add>, %56, %cst_36 [1] : vector<32x32xf32> to vector<32xf32>
    %58 = vector.shape_cast %57 : vector<32xf32> to vector<32x1xf32>
    %59 = tpu.reciprocal %58 {approx = true} : vector<32x1xf32> -> vector<32x1xf32>
    %60 = vector.broadcast %59 : vector<32x1xf32> to vector<32x32xf32>
    %61 = arith.mulf %56, %60 : vector<32x32xf32>
    %cst_37 = arith.constant dense<0.000000e+00> : vector<32x16xf32>
    %62 = tpu.matmul %61, %47, %cst_37 {dimension_numbers = #tpu.dot_dimension_numbers<[1], [0], [0], [1], [0, 0, 1, 1], [], []>} : vector<32x32xf32>, vector<32x16xf32>, vector<32x16xf32> -> vector<32x16xf32>
    %c0_38 = arith.constant 0 : index
    %c0_39 = arith.constant 0 : index
    %c0_40 = arith.constant 0 : index
    %63 = vector.load %arg5[%c0_38, %c0_39, %c0_40] : memref<4x16x32xf32, #tpu.memory_space<vmem>>, vector<1x16x32xf32>
    %64 = vector.shape_cast %63 : vector<1x16x32xf32> to vector<16x32xf32>
    %cst_41 = arith.constant dense<0.000000e+00> : vector<32x32xf32>
    %65 = tpu.matmul %62, %64, %cst_41 {dimension_numbers = #tpu.dot_dimension_numbers<[1], [0], [0], [1], [0, 0, 1, 1], [], []>} : vector<32x16xf32>, vector<16x32xf32>, vector<32x32xf32> -> vector<32x32xf32>
    %66 = arith.addf %26, %65 : vector<32x32xf32>
    %c1_42 = arith.constant 1 : index
    %c0_43 = arith.constant 0 : index
    %c0_44 = arith.constant 0 : index
    %67 = vector.load %arg3[%c1_42, %c0_43, %c0_44] : memref<12x32x16xf32, #tpu.memory_space<vmem>>, vector<1x32x16xf32>
    %68 = vector.shape_cast %67 : vector<1x32x16xf32> to vector<32x16xf32>
    %cst_45 = arith.constant dense<0.000000e+00> : vector<32x16xf32>
    %69 = tpu.matmul %23, %68, %cst_45 {dimension_numbers = #tpu.dot_dimension_numbers<[1], [0], [0], [1], [0, 0, 1, 1], [], []>} : vector<32x32xf32>, vector<32x16xf32>, vector<32x16xf32> -> vector<32x16xf32>
    %c1_46 = arith.constant 1 : index
    %c0_47 = arith.constant 0 : index
    %c0_48 = arith.constant 0 : index
    %70 = vector.load %arg4[%c1_46, %c0_47, %c0_48] : memref<12x1x16xf32, #tpu.memory_space<vmem>>, vector<1x1x16xf32>
    %71 = vector.shape_cast %70 : vector<1x1x16xf32> to vector<1x16xf32>
    %72 = vector.broadcast %71 : vector<1x16xf32> to vector<32x16xf32>
    %73 = arith.addf %69, %72 : vector<32x16xf32>
    %c3 = arith.constant 3 : index
    %c0_49 = arith.constant 0 : index
    %c0_50 = arith.constant 0 : index
    %74 = vector.load %arg3[%c3, %c0_49, %c0_50] : memref<12x32x16xf32, #tpu.memory_space<vmem>>, vector<1x32x16xf32>
    %75 = vector.shape_cast %74 : vector<1x32x16xf32> to vector<32x16xf32>
    %cst_51 = arith.constant dense<0.000000e+00> : vector<32x16xf32>
    %76 = tpu.matmul %23, %75, %cst_51 {dimension_numbers = #tpu.dot_dimension_numbers<[1], [0], [0], [1], [0, 0, 1, 1], [], []>} : vector<32x32xf32>, vector<32x16xf32>, vector<32x16xf32> -> vector<32x16xf32>
    %c3_52 = arith.constant 3 : index
    %c0_53 = arith.constant 0 : index
    %c0_54 = arith.constant 0 : index
    %77 = vector.load %arg4[%c3_52, %c0_53, %c0_54] : memref<12x1x16xf32, #tpu.memory_space<vmem>>, vector<1x1x16xf32>
    %78 = vector.shape_cast %77 : vector<1x1x16xf32> to vector<1x16xf32>
    %79 = vector.broadcast %78 : vector<1x16xf32> to vector<32x16xf32>
    %80 = arith.addf %76, %79 : vector<32x16xf32>
    %c5 = arith.constant 5 : index
    %c0_55 = arith.constant 0 : index
    %c0_56 = arith.constant 0 : index
    %81 = vector.load %arg3[%c5, %c0_55, %c0_56] : memref<12x32x16xf32, #tpu.memory_space<vmem>>, vector<1x32x16xf32>
    %82 = vector.shape_cast %81 : vector<1x32x16xf32> to vector<32x16xf32>
    %cst_57 = arith.constant dense<0.000000e+00> : vector<32x16xf32>
    %83 = tpu.matmul %23, %82, %cst_57 {dimension_numbers = #tpu.dot_dimension_numbers<[1], [0], [0], [1], [0, 0, 1, 1], [], []>} : vector<32x32xf32>, vector<32x16xf32>, vector<32x16xf32> -> vector<32x16xf32>
    %c5_58 = arith.constant 5 : index
    %c0_59 = arith.constant 0 : index
    %c0_60 = arith.constant 0 : index
    %84 = vector.load %arg4[%c5_58, %c0_59, %c0_60] : memref<12x1x16xf32, #tpu.memory_space<vmem>>, vector<1x1x16xf32>
    %85 = vector.shape_cast %84 : vector<1x1x16xf32> to vector<1x16xf32>
    %86 = vector.broadcast %85 : vector<1x16xf32> to vector<32x16xf32>
    %87 = arith.addf %83, %86 : vector<32x16xf32>
    %cst_61 = arith.constant dense<0.000000e+00> : vector<32x32xf32>
    %88 = tpu.matmul %73, %80, %cst_61 {dimension_numbers = #tpu.dot_dimension_numbers<[1], [1], [0], [0], [0, 0, 1, 0], [], []>} : vector<32x16xf32>, vector<32x16xf32>, vector<32x32xf32> -> vector<32x32xf32>
    %cst_62 = arith.constant 2.500000e-01 : f32
    %89 = vector.broadcast %cst_62 : f32 to vector<32x32xf32>
    %90 = arith.mulf %88, %89 : vector<32x32xf32>
    %91 = arith.addf %90, %0 : vector<32x32xf32>
    %cst_63 = arith.constant dense<0xFF800000> : vector<32xf32>
    %92 = vector.multi_reduction <maximumf>, %91, %cst_63 [1] : vector<32x32xf32> to vector<32xf32>
    %93 = vector.shape_cast %92 : vector<32xf32> to vector<32x1xf32>
    %94 = vector.broadcast %93 : vector<32x1xf32> to vector<32x32xf32>
    %95 = arith.subf %91, %94 : vector<32x32xf32>
    %96 = math.exp %95 : vector<32x32xf32>
    %cst_64 = arith.constant dense<0.000000e+00> : vector<32xf32>
    %97 = vector.multi_reduction <add>, %96, %cst_64 [1] : vector<32x32xf32> to vector<32xf32>
    %98 = vector.shape_cast %97 : vector<32xf32> to vector<32x1xf32>
    %99 = tpu.reciprocal %98 {approx = true} : vector<32x1xf32> -> vector<32x1xf32>
    %100 = vector.broadcast %99 : vector<32x1xf32> to vector<32x32xf32>
    %101 = arith.mulf %96, %100 : vector<32x32xf32>
    %cst_65 = arith.constant dense<0.000000e+00> : vector<32x16xf32>
    %102 = tpu.matmul %101, %87, %cst_65 {dimension_numbers = #tpu.dot_dimension_numbers<[1], [0], [0], [1], [0, 0, 1, 1], [], []>} : vector<32x32xf32>, vector<32x16xf32>, vector<32x16xf32> -> vector<32x16xf32>
    %c1_66 = arith.constant 1 : index
    %c0_67 = arith.constant 0 : index
    %c0_68 = arith.constant 0 : index
    %103 = vector.load %arg5[%c1_66, %c0_67, %c0_68] : memref<4x16x32xf32, #tpu.memory_space<vmem>>, vector<1x16x32xf32>
    %104 = vector.shape_cast %103 : vector<1x16x32xf32> to vector<16x32xf32>
    %cst_69 = arith.constant dense<0.000000e+00> : vector<32x32xf32>
    %105 = tpu.matmul %102, %104, %cst_69 {dimension_numbers = #tpu.dot_dimension_numbers<[1], [0], [0], [1], [0, 0, 1, 1], [], []>} : vector<32x16xf32>, vector<16x32xf32>, vector<32x32xf32> -> vector<32x32xf32>
    %106 = arith.addf %66, %105 : vector<32x32xf32>
    %107 = vector.extract_strided_slice %25 {offsets = [0, 0], sizes = [1, 32], strides = [1, 1]} : vector<8x32xf32> to vector<1x32xf32>
    %108 = vector.broadcast %107 : vector<1x32xf32> to vector<32x32xf32>
    %109 = arith.addf %106, %108 : vector<32x32xf32>
    %110 = arith.addf %109, %23 : vector<32x32xf32>
    %111 = vector.extract_strided_slice %25 {offsets = [1, 0], sizes = [1, 32], strides = [1, 1]} : vector<8x32xf32> to vector<1x32xf32>
    %112 = vector.extract_strided_slice %25 {offsets = [2, 0], sizes = [1, 32], strides = [1, 1]} : vector<8x32xf32> to vector<1x32xf32>
    %cst_70 = arith.constant dense<0.000000e+00> : vector<32xf32>
    %113 = vector.multi_reduction <add>, %110, %cst_70 [1] : vector<32x32xf32> to vector<32xf32>
    %114 = vector.shape_cast %113 : vector<32xf32> to vector<32x1xf32>
    %cst_71 = arith.constant 3.200000e+01 : f32
    %115 = vector.broadcast %cst_71 : f32 to vector<32x1xf32>
    %116 = arith.divf %114, %115 : vector<32x1xf32>
    %117 = vector.broadcast %116 : vector<32x1xf32> to vector<32x32xf32>
    %118 = arith.subf %110, %117 : vector<32x32xf32>
    %119 = arith.mulf %118, %118 : vector<32x32xf32>
    %cst_72 = arith.constant dense<0.000000e+00> : vector<32xf32>
    %120 = vector.multi_reduction <add>, %119, %cst_72 [1] : vector<32x32xf32> to vector<32xf32>
    %121 = vector.shape_cast %120 : vector<32xf32> to vector<32x1xf32>
    %cst_73 = arith.constant 3.200000e+01 : f32
    %122 = vector.broadcast %cst_73 : f32 to vector<32x1xf32>
    %123 = arith.divf %121, %122 : vector<32x1xf32>
    %cst_74 = arith.constant 9.99999996E-13 : f32
    %124 = vector.broadcast %cst_74 : f32 to vector<32x1xf32>
    %125 = arith.addf %123, %124 : vector<32x1xf32>
    %126 = math.rsqrt %125 : vector<32x1xf32>
    %127 = vector.broadcast %126 : vector<32x1xf32> to vector<32x32xf32>
    %128 = arith.mulf %118, %127 : vector<32x32xf32>
    %129 = vector.broadcast %111 : vector<1x32xf32> to vector<32x32xf32>
    %130 = arith.mulf %128, %129 : vector<32x32xf32>
    %131 = vector.broadcast %112 : vector<1x32xf32> to vector<32x32xf32>
    %132 = arith.addf %130, %131 : vector<32x32xf32>
    %c0_75 = arith.constant 0 : index
    %c0_76 = arith.constant 0 : index
    %c0_77 = arith.constant 0 : index
    %133 = vector.load %arg7[%c0_75, %c0_76, %c0_77] : memref<2x32x64xf32, #tpu.memory_space<vmem>>, vector<1x32x64xf32>
    %134 = vector.shape_cast %133 : vector<1x32x64xf32> to vector<32x64xf32>
    %cst_78 = arith.constant dense<0.000000e+00> : vector<32x64xf32>
    %135 = tpu.matmul %132, %134, %cst_78 {dimension_numbers = #tpu.dot_dimension_numbers<[1], [0], [0], [1], [0, 0, 1, 1], [], []>} : vector<32x32xf32>, vector<32x64xf32>, vector<32x64xf32> -> vector<32x64xf32>
    %c0_79 = arith.constant 0 : index
    %c0_80 = arith.constant 0 : index
    %c0_81 = arith.constant 0 : index
    %136 = vector.load %arg8[%c0_79, %c0_80, %c0_81] : memref<2x1x64xf32, #tpu.memory_space<vmem>>, vector<1x1x64xf32>
    %137 = vector.shape_cast %136 : vector<1x1x64xf32> to vector<1x64xf32>
    %138 = vector.broadcast %137 : vector<1x64xf32> to vector<32x64xf32>
    %139 = arith.addf %135, %138 : vector<32x64xf32>
    %140 = arith.mulf %139, %139 : vector<32x64xf32>
    %141 = arith.mulf %139, %140 : vector<32x64xf32>
    %cst_82 = arith.constant 4.471500e-02 : f32
    %142 = vector.broadcast %cst_82 : f32 to vector<32x64xf32>
    %143 = arith.mulf %142, %141 : vector<32x64xf32>
    %144 = arith.addf %139, %143 : vector<32x64xf32>
    %cst_83 = arith.constant 0.797884583 : f32
    %145 = vector.broadcast %cst_83 : f32 to vector<32x64xf32>
    %146 = arith.mulf %145, %144 : vector<32x64xf32>
    %147 = math.tanh %146 : vector<32x64xf32>
    %cst_84 = arith.constant 1.000000e+00 : f32
    %148 = vector.broadcast %cst_84 : f32 to vector<32x64xf32>
    %149 = arith.addf %148, %147 : vector<32x64xf32>
    %cst_85 = arith.constant 5.000000e-01 : f32
    %150 = vector.broadcast %cst_85 : f32 to vector<32x64xf32>
    %151 = arith.mulf %150, %149 : vector<32x64xf32>
    %152 = arith.mulf %139, %151 : vector<32x64xf32>
    %c0_86 = arith.constant 0 : index
    %c0_87 = arith.constant 0 : index
    %c0_88 = arith.constant 0 : index
    %153 = vector.load %arg9[%c0_86, %c0_87, %c0_88] : memref<2x64x32xf32, #tpu.memory_space<vmem>>, vector<1x64x32xf32>
    %154 = vector.shape_cast %153 : vector<1x64x32xf32> to vector<64x32xf32>
    %cst_89 = arith.constant dense<0.000000e+00> : vector<32x32xf32>
    %155 = tpu.matmul %152, %154, %cst_89 {dimension_numbers = #tpu.dot_dimension_numbers<[1], [0], [0], [1], [0, 0, 1, 1], [], []>} : vector<32x64xf32>, vector<64x32xf32>, vector<32x32xf32> -> vector<32x32xf32>
    %156 = vector.extract_strided_slice %25 {offsets = [3, 0], sizes = [1, 32], strides = [1, 1]} : vector<8x32xf32> to vector<1x32xf32>
    %157 = vector.broadcast %156 : vector<1x32xf32> to vector<32x32xf32>
    %158 = arith.addf %155, %157 : vector<32x32xf32>
    %159 = arith.addf %158, %132 : vector<32x32xf32>
    %160 = vector.extract_strided_slice %25 {offsets = [4, 0], sizes = [1, 32], strides = [1, 1]} : vector<8x32xf32> to vector<1x32xf32>
    %161 = vector.extract_strided_slice %25 {offsets = [5, 0], sizes = [1, 32], strides = [1, 1]} : vector<8x32xf32> to vector<1x32xf32>
    %cst_90 = arith.constant dense<0.000000e+00> : vector<32xf32>
    %162 = vector.multi_reduction <add>, %159, %cst_90 [1] : vector<32x32xf32> to vector<32xf32>
    %163 = vector.shape_cast %162 : vector<32xf32> to vector<32x1xf32>
    %cst_91 = arith.constant 3.200000e+01 : f32
    %164 = vector.broadcast %cst_91 : f32 to vector<32x1xf32>
    %165 = arith.divf %163, %164 : vector<32x1xf32>
    %166 = vector.broadcast %165 : vector<32x1xf32> to vector<32x32xf32>
    %167 = arith.subf %159, %166 : vector<32x32xf32>
    %168 = arith.mulf %167, %167 : vector<32x32xf32>
    %cst_92 = arith.constant dense<0.000000e+00> : vector<32xf32>
    %169 = vector.multi_reduction <add>, %168, %cst_92 [1] : vector<32x32xf32> to vector<32xf32>
    %170 = vector.shape_cast %169 : vector<32xf32> to vector<32x1xf32>
    %cst_93 = arith.constant 3.200000e+01 : f32
    %171 = vector.broadcast %cst_93 : f32 to vector<32x1xf32>
    %172 = arith.divf %170, %171 : vector<32x1xf32>
    %cst_94 = arith.constant 9.99999996E-13 : f32
    %173 = vector.broadcast %cst_94 : f32 to vector<32x1xf32>
    %174 = arith.addf %172, %173 : vector<32x1xf32>
    %175 = math.rsqrt %174 : vector<32x1xf32>
    %176 = vector.broadcast %175 : vector<32x1xf32> to vector<32x32xf32>
    %177 = arith.mulf %167, %176 : vector<32x32xf32>
    %178 = vector.broadcast %160 : vector<1x32xf32> to vector<32x32xf32>
    %179 = arith.mulf %177, %178 : vector<32x32xf32>
    %180 = vector.broadcast %161 : vector<1x32xf32> to vector<32x32xf32>
    %181 = arith.addf %179, %180 : vector<32x32xf32>
    %c1_95 = arith.constant 1 : index
    %c0_96 = arith.constant 0 : index
    %c0_97 = arith.constant 0 : index
    %182 = vector.load %arg6[%c1_95, %c0_96, %c0_97] : memref<2x8x32xf32, #tpu.memory_space<vmem>>, vector<1x8x32xf32>
    %183 = vector.shape_cast %182 : vector<1x8x32xf32> to vector<8x32xf32>
    %cst_98 = arith.constant 0.000000e+00 : f32
    %184 = vector.broadcast %cst_98 : f32 to vector<32x32xf32>
    %c6 = arith.constant 6 : index
    %c0_99 = arith.constant 0 : index
    %c0_100 = arith.constant 0 : index
    %185 = vector.load %arg3[%c6, %c0_99, %c0_100] : memref<12x32x16xf32, #tpu.memory_space<vmem>>, vector<1x32x16xf32>
    %186 = vector.shape_cast %185 : vector<1x32x16xf32> to vector<32x16xf32>
    %cst_101 = arith.constant dense<0.000000e+00> : vector<32x16xf32>
    %187 = tpu.matmul %181, %186, %cst_101 {dimension_numbers = #tpu.dot_dimension_numbers<[1], [0], [0], [1], [0, 0, 1, 1], [], []>} : vector<32x32xf32>, vector<32x16xf32>, vector<32x16xf32> -> vector<32x16xf32>
    %c6_102 = arith.constant 6 : index
    %c0_103 = arith.constant 0 : index
    %c0_104 = arith.constant 0 : index
    %188 = vector.load %arg4[%c6_102, %c0_103, %c0_104] : memref<12x1x16xf32, #tpu.memory_space<vmem>>, vector<1x1x16xf32>
    %189 = vector.shape_cast %188 : vector<1x1x16xf32> to vector<1x16xf32>
    %190 = vector.broadcast %189 : vector<1x16xf32> to vector<32x16xf32>
    %191 = arith.addf %187, %190 : vector<32x16xf32>
    %c8 = arith.constant 8 : index
    %c0_105 = arith.constant 0 : index
    %c0_106 = arith.constant 0 : index
    %192 = vector.load %arg3[%c8, %c0_105, %c0_106] : memref<12x32x16xf32, #tpu.memory_space<vmem>>, vector<1x32x16xf32>
    %193 = vector.shape_cast %192 : vector<1x32x16xf32> to vector<32x16xf32>
    %cst_107 = arith.constant dense<0.000000e+00> : vector<32x16xf32>
    %194 = tpu.matmul %181, %193, %cst_107 {dimension_numbers = #tpu.dot_dimension_numbers<[1], [0], [0], [1], [0, 0, 1, 1], [], []>} : vector<32x32xf32>, vector<32x16xf32>, vector<32x16xf32> -> vector<32x16xf32>
    %c8_108 = arith.constant 8 : index
    %c0_109 = arith.constant 0 : index
    %c0_110 = arith.constant 0 : index
    %195 = vector.load %arg4[%c8_108, %c0_109, %c0_110] : memref<12x1x16xf32, #tpu.memory_space<vmem>>, vector<1x1x16xf32>
    %196 = vector.shape_cast %195 : vector<1x1x16xf32> to vector<1x16xf32>
    %197 = vector.broadcast %196 : vector<1x16xf32> to vector<32x16xf32>
    %198 = arith.addf %194, %197 : vector<32x16xf32>
    %c10 = arith.constant 10 : index
    %c0_111 = arith.constant 0 : index
    %c0_112 = arith.constant 0 : index
    %199 = vector.load %arg3[%c10, %c0_111, %c0_112] : memref<12x32x16xf32, #tpu.memory_space<vmem>>, vector<1x32x16xf32>
    %200 = vector.shape_cast %199 : vector<1x32x16xf32> to vector<32x16xf32>
    %cst_113 = arith.constant dense<0.000000e+00> : vector<32x16xf32>
    %201 = tpu.matmul %181, %200, %cst_113 {dimension_numbers = #tpu.dot_dimension_numbers<[1], [0], [0], [1], [0, 0, 1, 1], [], []>} : vector<32x32xf32>, vector<32x16xf32>, vector<32x16xf32> -> vector<32x16xf32>
    %c10_114 = arith.constant 10 : index
    %c0_115 = arith.constant 0 : index
    %c0_116 = arith.constant 0 : index
    %202 = vector.load %arg4[%c10_114, %c0_115, %c0_116] : memref<12x1x16xf32, #tpu.memory_space<vmem>>, vector<1x1x16xf32>
    %203 = vector.shape_cast %202 : vector<1x1x16xf32> to vector<1x16xf32>
    %204 = vector.broadcast %203 : vector<1x16xf32> to vector<32x16xf32>
    %205 = arith.addf %201, %204 : vector<32x16xf32>
    %cst_117 = arith.constant dense<0.000000e+00> : vector<32x32xf32>
    %206 = tpu.matmul %191, %198, %cst_117 {dimension_numbers = #tpu.dot_dimension_numbers<[1], [1], [0], [0], [0, 0, 1, 0], [], []>} : vector<32x16xf32>, vector<32x16xf32>, vector<32x32xf32> -> vector<32x32xf32>
    %cst_118 = arith.constant 2.500000e-01 : f32
    %207 = vector.broadcast %cst_118 : f32 to vector<32x32xf32>
    %208 = arith.mulf %206, %207 : vector<32x32xf32>
    %209 = arith.addf %208, %0 : vector<32x32xf32>
    %cst_119 = arith.constant dense<0xFF800000> : vector<32xf32>
    %210 = vector.multi_reduction <maximumf>, %209, %cst_119 [1] : vector<32x32xf32> to vector<32xf32>
    %211 = vector.shape_cast %210 : vector<32xf32> to vector<32x1xf32>
    %212 = vector.broadcast %211 : vector<32x1xf32> to vector<32x32xf32>
    %213 = arith.subf %209, %212 : vector<32x32xf32>
    %214 = math.exp %213 : vector<32x32xf32>
    %cst_120 = arith.constant dense<0.000000e+00> : vector<32xf32>
    %215 = vector.multi_reduction <add>, %214, %cst_120 [1] : vector<32x32xf32> to vector<32xf32>
    %216 = vector.shape_cast %215 : vector<32xf32> to vector<32x1xf32>
    %217 = tpu.reciprocal %216 {approx = true} : vector<32x1xf32> -> vector<32x1xf32>
    %218 = vector.broadcast %217 : vector<32x1xf32> to vector<32x32xf32>
    %219 = arith.mulf %214, %218 : vector<32x32xf32>
    %cst_121 = arith.constant dense<0.000000e+00> : vector<32x16xf32>
    %220 = tpu.matmul %219, %205, %cst_121 {dimension_numbers = #tpu.dot_dimension_numbers<[1], [0], [0], [1], [0, 0, 1, 1], [], []>} : vector<32x32xf32>, vector<32x16xf32>, vector<32x16xf32> -> vector<32x16xf32>
    %c2_122 = arith.constant 2 : index
    %c0_123 = arith.constant 0 : index
    %c0_124 = arith.constant 0 : index
    %221 = vector.load %arg5[%c2_122, %c0_123, %c0_124] : memref<4x16x32xf32, #tpu.memory_space<vmem>>, vector<1x16x32xf32>
    %222 = vector.shape_cast %221 : vector<1x16x32xf32> to vector<16x32xf32>
    %cst_125 = arith.constant dense<0.000000e+00> : vector<32x32xf32>
    %223 = tpu.matmul %220, %222, %cst_125 {dimension_numbers = #tpu.dot_dimension_numbers<[1], [0], [0], [1], [0, 0, 1, 1], [], []>} : vector<32x16xf32>, vector<16x32xf32>, vector<32x32xf32> -> vector<32x32xf32>
    %224 = arith.addf %184, %223 : vector<32x32xf32>
    %c7 = arith.constant 7 : index
    %c0_126 = arith.constant 0 : index
    %c0_127 = arith.constant 0 : index
    %225 = vector.load %arg3[%c7, %c0_126, %c0_127] : memref<12x32x16xf32, #tpu.memory_space<vmem>>, vector<1x32x16xf32>
    %226 = vector.shape_cast %225 : vector<1x32x16xf32> to vector<32x16xf32>
    %cst_128 = arith.constant dense<0.000000e+00> : vector<32x16xf32>
    %227 = tpu.matmul %181, %226, %cst_128 {dimension_numbers = #tpu.dot_dimension_numbers<[1], [0], [0], [1], [0, 0, 1, 1], [], []>} : vector<32x32xf32>, vector<32x16xf32>, vector<32x16xf32> -> vector<32x16xf32>
    %c7_129 = arith.constant 7 : index
    %c0_130 = arith.constant 0 : index
    %c0_131 = arith.constant 0 : index
    %228 = vector.load %arg4[%c7_129, %c0_130, %c0_131] : memref<12x1x16xf32, #tpu.memory_space<vmem>>, vector<1x1x16xf32>
    %229 = vector.shape_cast %228 : vector<1x1x16xf32> to vector<1x16xf32>
    %230 = vector.broadcast %229 : vector<1x16xf32> to vector<32x16xf32>
    %231 = arith.addf %227, %230 : vector<32x16xf32>
    %c9 = arith.constant 9 : index
    %c0_132 = arith.constant 0 : index
    %c0_133 = arith.constant 0 : index
    %232 = vector.load %arg3[%c9, %c0_132, %c0_133] : memref<12x32x16xf32, #tpu.memory_space<vmem>>, vector<1x32x16xf32>
    %233 = vector.shape_cast %232 : vector<1x32x16xf32> to vector<32x16xf32>
    %cst_134 = arith.constant dense<0.000000e+00> : vector<32x16xf32>
    %234 = tpu.matmul %181, %233, %cst_134 {dimension_numbers = #tpu.dot_dimension_numbers<[1], [0], [0], [1], [0, 0, 1, 1], [], []>} : vector<32x32xf32>, vector<32x16xf32>, vector<32x16xf32> -> vector<32x16xf32>
    %c9_135 = arith.constant 9 : index
    %c0_136 = arith.constant 0 : index
    %c0_137 = arith.constant 0 : index
    %235 = vector.load %arg4[%c9_135, %c0_136, %c0_137] : memref<12x1x16xf32, #tpu.memory_space<vmem>>, vector<1x1x16xf32>
    %236 = vector.shape_cast %235 : vector<1x1x16xf32> to vector<1x16xf32>
    %237 = vector.broadcast %236 : vector<1x16xf32> to vector<32x16xf32>
    %238 = arith.addf %234, %237 : vector<32x16xf32>
    %c11 = arith.constant 11 : index
    %c0_138 = arith.constant 0 : index
    %c0_139 = arith.constant 0 : index
    %239 = vector.load %arg3[%c11, %c0_138, %c0_139] : memref<12x32x16xf32, #tpu.memory_space<vmem>>, vector<1x32x16xf32>
    %240 = vector.shape_cast %239 : vector<1x32x16xf32> to vector<32x16xf32>
    %cst_140 = arith.constant dense<0.000000e+00> : vector<32x16xf32>
    %241 = tpu.matmul %181, %240, %cst_140 {dimension_numbers = #tpu.dot_dimension_numbers<[1], [0], [0], [1], [0, 0, 1, 1], [], []>} : vector<32x32xf32>, vector<32x16xf32>, vector<32x16xf32> -> vector<32x16xf32>
    %c11_141 = arith.constant 11 : index
    %c0_142 = arith.constant 0 : index
    %c0_143 = arith.constant 0 : index
    %242 = vector.load %arg4[%c11_141, %c0_142, %c0_143] : memref<12x1x16xf32, #tpu.memory_space<vmem>>, vector<1x1x16xf32>
    %243 = vector.shape_cast %242 : vector<1x1x16xf32> to vector<1x16xf32>
    %244 = vector.broadcast %243 : vector<1x16xf32> to vector<32x16xf32>
    %245 = arith.addf %241, %244 : vector<32x16xf32>
    %cst_144 = arith.constant dense<0.000000e+00> : vector<32x32xf32>
    %246 = tpu.matmul %231, %238, %cst_144 {dimension_numbers = #tpu.dot_dimension_numbers<[1], [1], [0], [0], [0, 0, 1, 0], [], []>} : vector<32x16xf32>, vector<32x16xf32>, vector<32x32xf32> -> vector<32x32xf32>
    %cst_145 = arith.constant 2.500000e-01 : f32
    %247 = vector.broadcast %cst_145 : f32 to vector<32x32xf32>
    %248 = arith.mulf %246, %247 : vector<32x32xf32>
    %249 = arith.addf %248, %0 : vector<32x32xf32>
    %cst_146 = arith.constant dense<0xFF800000> : vector<32xf32>
    %250 = vector.multi_reduction <maximumf>, %249, %cst_146 [1] : vector<32x32xf32> to vector<32xf32>
    %251 = vector.shape_cast %250 : vector<32xf32> to vector<32x1xf32>
    %252 = vector.broadcast %251 : vector<32x1xf32> to vector<32x32xf32>
    %253 = arith.subf %249, %252 : vector<32x32xf32>
    %254 = math.exp %253 : vector<32x32xf32>
    %cst_147 = arith.constant dense<0.000000e+00> : vector<32xf32>
    %255 = vector.multi_reduction <add>, %254, %cst_147 [1] : vector<32x32xf32> to vector<32xf32>
    %256 = vector.shape_cast %255 : vector<32xf32> to vector<32x1xf32>
    %257 = tpu.reciprocal %256 {approx = true} : vector<32x1xf32> -> vector<32x1xf32>
    %258 = vector.broadcast %257 : vector<32x1xf32> to vector<32x32xf32>
    %259 = arith.mulf %254, %258 : vector<32x32xf32>
    %cst_148 = arith.constant dense<0.000000e+00> : vector<32x16xf32>
    %260 = tpu.matmul %259, %245, %cst_148 {dimension_numbers = #tpu.dot_dimension_numbers<[1], [0], [0], [1], [0, 0, 1, 1], [], []>} : vector<32x32xf32>, vector<32x16xf32>, vector<32x16xf32> -> vector<32x16xf32>
    %c3_149 = arith.constant 3 : index
    %c0_150 = arith.constant 0 : index
    %c0_151 = arith.constant 0 : index
    %261 = vector.load %arg5[%c3_149, %c0_150, %c0_151] : memref<4x16x32xf32, #tpu.memory_space<vmem>>, vector<1x16x32xf32>
    %262 = vector.shape_cast %261 : vector<1x16x32xf32> to vector<16x32xf32>
    %cst_152 = arith.constant dense<0.000000e+00> : vector<32x32xf32>
    %263 = tpu.matmul %260, %262, %cst_152 {dimension_numbers = #tpu.dot_dimension_numbers<[1], [0], [0], [1], [0, 0, 1, 1], [], []>} : vector<32x16xf32>, vector<16x32xf32>, vector<32x32xf32> -> vector<32x32xf32>
    %264 = arith.addf %224, %263 : vector<32x32xf32>
    %265 = vector.extract_strided_slice %183 {offsets = [0, 0], sizes = [1, 32], strides = [1, 1]} : vector<8x32xf32> to vector<1x32xf32>
    %266 = vector.broadcast %265 : vector<1x32xf32> to vector<32x32xf32>
    %267 = arith.addf %264, %266 : vector<32x32xf32>
    %268 = arith.addf %267, %181 : vector<32x32xf32>
    %269 = vector.extract_strided_slice %183 {offsets = [1, 0], sizes = [1, 32], strides = [1, 1]} : vector<8x32xf32> to vector<1x32xf32>
    %270 = vector.extract_strided_slice %183 {offsets = [2, 0], sizes = [1, 32], strides = [1, 1]} : vector<8x32xf32> to vector<1x32xf32>
    %cst_153 = arith.constant dense<0.000000e+00> : vector<32xf32>
    %271 = vector.multi_reduction <add>, %268, %cst_153 [1] : vector<32x32xf32> to vector<32xf32>
    %272 = vector.shape_cast %271 : vector<32xf32> to vector<32x1xf32>
    %cst_154 = arith.constant 3.200000e+01 : f32
    %273 = vector.broadcast %cst_154 : f32 to vector<32x1xf32>
    %274 = arith.divf %272, %273 : vector<32x1xf32>
    %275 = vector.broadcast %274 : vector<32x1xf32> to vector<32x32xf32>
    %276 = arith.subf %268, %275 : vector<32x32xf32>
    %277 = arith.mulf %276, %276 : vector<32x32xf32>
    %cst_155 = arith.constant dense<0.000000e+00> : vector<32xf32>
    %278 = vector.multi_reduction <add>, %277, %cst_155 [1] : vector<32x32xf32> to vector<32xf32>
    %279 = vector.shape_cast %278 : vector<32xf32> to vector<32x1xf32>
    %cst_156 = arith.constant 3.200000e+01 : f32
    %280 = vector.broadcast %cst_156 : f32 to vector<32x1xf32>
    %281 = arith.divf %279, %280 : vector<32x1xf32>
    %cst_157 = arith.constant 9.99999996E-13 : f32
    %282 = vector.broadcast %cst_157 : f32 to vector<32x1xf32>
    %283 = arith.addf %281, %282 : vector<32x1xf32>
    %284 = math.rsqrt %283 : vector<32x1xf32>
    %285 = vector.broadcast %284 : vector<32x1xf32> to vector<32x32xf32>
    %286 = arith.mulf %276, %285 : vector<32x32xf32>
    %287 = vector.broadcast %269 : vector<1x32xf32> to vector<32x32xf32>
    %288 = arith.mulf %286, %287 : vector<32x32xf32>
    %289 = vector.broadcast %270 : vector<1x32xf32> to vector<32x32xf32>
    %290 = arith.addf %288, %289 : vector<32x32xf32>
    %c1_158 = arith.constant 1 : index
    %c0_159 = arith.constant 0 : index
    %c0_160 = arith.constant 0 : index
    %291 = vector.load %arg7[%c1_158, %c0_159, %c0_160] : memref<2x32x64xf32, #tpu.memory_space<vmem>>, vector<1x32x64xf32>
    %292 = vector.shape_cast %291 : vector<1x32x64xf32> to vector<32x64xf32>
    %cst_161 = arith.constant dense<0.000000e+00> : vector<32x64xf32>
    %293 = tpu.matmul %290, %292, %cst_161 {dimension_numbers = #tpu.dot_dimension_numbers<[1], [0], [0], [1], [0, 0, 1, 1], [], []>} : vector<32x32xf32>, vector<32x64xf32>, vector<32x64xf32> -> vector<32x64xf32>
    %c1_162 = arith.constant 1 : index
    %c0_163 = arith.constant 0 : index
    %c0_164 = arith.constant 0 : index
    %294 = vector.load %arg8[%c1_162, %c0_163, %c0_164] : memref<2x1x64xf32, #tpu.memory_space<vmem>>, vector<1x1x64xf32>
    %295 = vector.shape_cast %294 : vector<1x1x64xf32> to vector<1x64xf32>
    %296 = vector.broadcast %295 : vector<1x64xf32> to vector<32x64xf32>
    %297 = arith.addf %293, %296 : vector<32x64xf32>
    %298 = arith.mulf %297, %297 : vector<32x64xf32>
    %299 = arith.mulf %297, %298 : vector<32x64xf32>
    %cst_165 = arith.constant 4.471500e-02 : f32
    %300 = vector.broadcast %cst_165 : f32 to vector<32x64xf32>
    %301 = arith.mulf %300, %299 : vector<32x64xf32>
    %302 = arith.addf %297, %301 : vector<32x64xf32>
    %cst_166 = arith.constant 0.797884583 : f32
    %303 = vector.broadcast %cst_166 : f32 to vector<32x64xf32>
    %304 = arith.mulf %303, %302 : vector<32x64xf32>
    %305 = math.tanh %304 : vector<32x64xf32>
    %cst_167 = arith.constant 1.000000e+00 : f32
    %306 = vector.broadcast %cst_167 : f32 to vector<32x64xf32>
    %307 = arith.addf %306, %305 : vector<32x64xf32>
    %cst_168 = arith.constant 5.000000e-01 : f32
    %308 = vector.broadcast %cst_168 : f32 to vector<32x64xf32>
    %309 = arith.mulf %308, %307 : vector<32x64xf32>
    %310 = arith.mulf %297, %309 : vector<32x64xf32>
    %c1_169 = arith.constant 1 : index
    %c0_170 = arith.constant 0 : index
    %c0_171 = arith.constant 0 : index
    %311 = vector.load %arg9[%c1_169, %c0_170, %c0_171] : memref<2x64x32xf32, #tpu.memory_space<vmem>>, vector<1x64x32xf32>
    %312 = vector.shape_cast %311 : vector<1x64x32xf32> to vector<64x32xf32>
    %cst_172 = arith.constant dense<0.000000e+00> : vector<32x32xf32>
    %313 = tpu.matmul %310, %312, %cst_172 {dimension_numbers = #tpu.dot_dimension_numbers<[1], [0], [0], [1], [0, 0, 1, 1], [], []>} : vector<32x64xf32>, vector<64x32xf32>, vector<32x32xf32> -> vector<32x32xf32>
    %314 = vector.extract_strided_slice %183 {offsets = [3, 0], sizes = [1, 32], strides = [1, 1]} : vector<8x32xf32> to vector<1x32xf32>
    %315 = vector.broadcast %314 : vector<1x32xf32> to vector<32x32xf32>
    %316 = arith.addf %313, %315 : vector<32x32xf32>
    %317 = arith.addf %316, %290 : vector<32x32xf32>
    %318 = vector.extract_strided_slice %183 {offsets = [4, 0], sizes = [1, 32], strides = [1, 1]} : vector<8x32xf32> to vector<1x32xf32>
    %319 = vector.extract_strided_slice %183 {offsets = [5, 0], sizes = [1, 32], strides = [1, 1]} : vector<8x32xf32> to vector<1x32xf32>
    %cst_173 = arith.constant dense<0.000000e+00> : vector<32xf32>
    %320 = vector.multi_reduction <add>, %317, %cst_173 [1] : vector<32x32xf32> to vector<32xf32>
    %321 = vector.shape_cast %320 : vector<32xf32> to vector<32x1xf32>
    %cst_174 = arith.constant 3.200000e+01 : f32
    %322 = vector.broadcast %cst_174 : f32 to vector<32x1xf32>
    %323 = arith.divf %321, %322 : vector<32x1xf32>
    %324 = vector.broadcast %323 : vector<32x1xf32> to vector<32x32xf32>
    %325 = arith.subf %317, %324 : vector<32x32xf32>
    %326 = arith.mulf %325, %325 : vector<32x32xf32>
    %cst_175 = arith.constant dense<0.000000e+00> : vector<32xf32>
    %327 = vector.multi_reduction <add>, %326, %cst_175 [1] : vector<32x32xf32> to vector<32xf32>
    %328 = vector.shape_cast %327 : vector<32xf32> to vector<32x1xf32>
    %cst_176 = arith.constant 3.200000e+01 : f32
    %329 = vector.broadcast %cst_176 : f32 to vector<32x1xf32>
    %330 = arith.divf %328, %329 : vector<32x1xf32>
    %cst_177 = arith.constant 9.99999996E-13 : f32
    %331 = vector.broadcast %cst_177 : f32 to vector<32x1xf32>
    %332 = arith.addf %330, %331 : vector<32x1xf32>
    %333 = math.rsqrt %332 : vector<32x1xf32>
    %334 = vector.broadcast %333 : vector<32x1xf32> to vector<32x32xf32>
    %335 = arith.mulf %325, %334 : vector<32x32xf32>
    %336 = vector.broadcast %318 : vector<1x32xf32> to vector<32x32xf32>
    %337 = arith.mulf %335, %336 : vector<32x32xf32>
    %338 = vector.broadcast %319 : vector<1x32xf32> to vector<32x32xf32>
    %339 = arith.addf %337, %338 : vector<32x32xf32>
    %c0_178 = arith.constant 0 : index
    %c0_179 = arith.constant 0 : index
    %340 = vector.load %arg15[%c0_178, %c0_179] : memref<32x32xf32, #tpu.memory_space<vmem>>, vector<32x32xf32>
    tpu.vector_store %arg15[%c0_178, %c0_179], %339 {strides = array<i32>} : memref<32x32xf32, #tpu.memory_space<vmem>>, vector<32x32xf32>,
    %c0_180 = arith.constant 0 : index
    %c0_181 = arith.constant 0 : index
    %341 = tpu.strided_load %arg15[%c0_180, %c0_181] {strides = array<i32: 8, 1>} : memref<32x32xf32, #tpu.memory_space<vmem>>, vector<2x32xf32>
    %c16 = arith.constant 16 : index
    %c0_182 = arith.constant 0 : index
    %342 = tpu.strided_load %arg15[%c16, %c0_182] {strides = array<i32: 8, 1>} : memref<32x32xf32, #tpu.memory_space<vmem>>, vector<2x32xf32>
    %c0_183 = arith.constant 0 : index
    %c0_184 = arith.constant 0 : index
    %c0_185 = arith.constant 0 : index
    %343 = vector.load %arg10[%c0_183, %c0_184, %c0_185] : memref<2x32x4xf32, #tpu.memory_space<vmem>>, vector<1x32x4xf32>
    %344 = vector.shape_cast %343 : vector<1x32x4xf32> to vector<32x4xf32>
    %cst_186 = arith.constant dense<0.000000e+00> : vector<2x4xf32>
    %345 = tpu.matmul %341, %344, %cst_186 {dimension_numbers = #tpu.dot_dimension_numbers<[1], [0], [0], [1], [0, 0, 1, 1], [], []>} : vector<2x32xf32>, vector<32x4xf32>, vector<2x4xf32> -> vector<2x4xf32>
    %c1_187 = arith.constant 1 : index
    %c0_188 = arith.constant 0 : index
    %c0_189 = arith.constant 0 : index
    %346 = vector.load %arg10[%c1_187, %c0_188, %c0_189] : memref<2x32x4xf32, #tpu.memory_space<vmem>>, vector<1x32x4xf32>
    %347 = vector.shape_cast %346 : vector<1x32x4xf32> to vector<32x4xf32>
    %cst_190 = arith.constant dense<0.000000e+00> : vector<2x4xf32>
    %348 = tpu.matmul %342, %347, %cst_190 {dimension_numbers = #tpu.dot_dimension_numbers<[1], [0], [0], [1], [0, 0, 1, 1], [], []>} : vector<2x32xf32>, vector<32x4xf32>, vector<2x4xf32> -> vector<2x4xf32>
    %349 = arith.addf %345, %348 : vector<2x4xf32>
    %c0_191 = arith.constant 0 : index
    %c0_192 = arith.constant 0 : index
    %350 = vector.load %arg11[%c0_191, %c0_192] : memref<1x4xf32, #tpu.memory_space<vmem>>, vector<1x4xf32>
    %351 = vector.broadcast %350 : vector<1x4xf32> to vector<2x4xf32>
    %352 = arith.addf %349, %351 : vector<2x4xf32>
    %c0_193 = arith.constant 0 : index
    %c0_194 = arith.constant 0 : index
    %353 = vector.load %arg13[%c0_193, %c0_194] : memref<2x4xf32, #tpu.memory_space<vmem>>, vector<2x4xf32>
    tpu.vector_store %arg13[%c0_193, %c0_194], %352 {strides = array<i32>} : memref<2x4xf32, #tpu.memory_space<vmem>>, vector<2x4xf32>,
    %cst_195 = arith.constant dense<0xFF800000> : vector<2xf32>
    %354 = vector.multi_reduction <maximumf>, %352, %cst_195 [1] : vector<2x4xf32> to vector<2xf32>
    %355 = vector.shape_cast %354 : vector<2xf32> to vector<2x1xf32>
    %356 = vector.broadcast %355 : vector<2x1xf32> to vector<2x4xf32>
    %357 = arith.subf %352, %356 : vector<2x4xf32>
    %358 = math.exp %357 : vector<2x4xf32>
    %cst_196 = arith.constant dense<0.000000e+00> : vector<2xf32>
    %359 = vector.multi_reduction <add>, %358, %cst_196 [1] : vector<2x4xf32> to vector<2xf32>
    %360 = vector.shape_cast %359 : vector<2xf32> to vector<2x1xf32>
    %361 = math.log %360 : vector<2x1xf32>
    %362 = vector.broadcast %361 : vector<2x1xf32> to vector<2x4xf32>
    %363 = arith.subf %357, %362 : vector<2x4xf32>
    %c0_197 = arith.constant 0 : index
    %c0_198 = arith.constant 0 : index
    %364 = vector.load %arg12[%c0_197, %c0_198] : memref<2x4xf32, #tpu.memory_space<vmem>>, vector<2x4xf32>
    %365 = arith.mulf %364, %363 : vector<2x4xf32>
    %cst_199 = arith.constant dense<0.000000e+00> : vector<2xf32>
    %366 = vector.multi_reduction <add>, %365, %cst_199 [1] : vector<2x4xf32> to vector<2xf32>
    %367 = vector.shape_cast %366 : vector<2xf32> to vector<2x1xf32>
    %cst_200 = arith.constant 0.000000e+00 : f32
    %368 = vector.broadcast %cst_200 : f32 to vector<2x1xf32>
    %369 = arith.subf %368, %367 : vector<2x1xf32>
    %cst_201 = arith.constant dense<0.000000e+00> : vector<1xf32>
    %370 = vector.multi_reduction <add>, %369, %cst_201 [0] : vector<2x1xf32> to vector<1xf32>
    %371 = vector.shape_cast %370 : vector<1xf32> to vector<1x1xf32>
    %cst_202 = arith.constant 2.000000e+00 : f32
    %372 = vector.broadcast %cst_202 : f32 to vector<1x1xf32>
    %373 = arith.divf %371, %372 : vector<1x1xf32>
    %c0_203 = arith.constant 0 : index
    %c0_204 = arith.constant 0 : index
    %374 = vector.load %arg14[%c0_203, %c0_204] : memref<1x1xf32, #tpu.memory_space<vmem>>, vector<1x1xf32>
    tpu.vector_store %arg14[%c0_203, %c0_204], %373 {strides = array<i32>} : memref<1x1xf32, #tpu.memory_space<vmem>>, vector<1x1xf32>,
    return
  }
}

</mosaic_0001>

<llo_original>
// kernel: eq.22
$region0: #{eq.22}
  %s0 = inlined_call_operand.vmem [shape: s32[4,8], index: 0, kind: input, shape index: {}]
  %s1 = inlined_call_operand.vmem [shape: s32[32], index: 1, kind: output, shape index: {}]
  $region1: #{eq.22} parent=0
    #allocation0 [shape = 'u8[4096]{0}', space=vmem, size = 0x1000, scoped, tag = 'scoped mem for output reshape']
    #allocation1 [shape = 'u8[4096]{0}', space=vmem, size = 0x1000, scoped, tag = 'scoped mem for input reshape']
    %s3 = sshllo.u32 0, 4
    %v4 = vld [vmem:[%s0] sm:%s3]
    %5 = vst [vmem:[#allocation1] sm:%s3] %v4
    %v6 = vld [vmem:[#allocation1] sm:$0x1]
    %vm7 = vcmask 64512
    %8 = vst.msk [vmem:[#allocation0] sm:$0x1] %vm7, %v6
    %s9 = scalar_lea.vmem [#allocation1], 3
    %v10 = vld [vmem:[%s9] sm:$0x1]
    %11 = vrot.lane.b32.xlu0 %v10, 24
    %v12 = vpop.permute.xlu0 %11
    %vm13 = vcmask 261312
    %14 = vst.msk [vmem:[#allocation0] sm:$0x1] %vm13, %v12
    %s15 = scalar_lea.vmem [#allocation1], 2
    %v16 = vld [vmem:[%s15] sm:$0x1]
    %17 = vrot.lane.b32.xlu0 %v16, 16
    %v18 = vpop.permute.xlu0 %17
    %vm19 = vcmask 195712
    %20 = vst.msk [vmem:[#allocation0] sm:$0x1] %vm19, %v18
    %s21 = scalar_lea.vmem [#allocation1], 1
    %v22 = vld [vmem:[%s21] sm:$0x1]
    %23 = vrot.lane.b32.xlu0 %v22, 8
    %v24 = vpop.permute.xlu0 %23
    %vm25 = vcmask 130112
    %26 = vst.msk [vmem:[#allocation0] sm:$0x1] %vm25, %v24
    %s28 = sshllo.u32 0, 1
    %v30 = vld [vmem:[#allocation0] sm:%s28]
    %s31 = sshllo.u32 0, 1
    %32 = vst [vmem:[%s1] sm:%s31] %v30

// kernel: bi_encoder_forward.1
$region0: #{bi_encoder_forward.1}
  #allocation0 [shape = 'u32[]', space=smem, size = 0x4, offset = 0x4, fixed_abs, tag = 'smem constant byte address 0x4 - core index']
  #allocation1 [shape = 'u32[144,128]{1,0:T(1,128)}', space=vmem, size = 0x12000, scoped, tag = 'internal scratch']
  #allocation2 [shape = 'f32[32,32]{1,0:T(8,128)}', space=vmem, size = 0x4000, scoped, tag = 'scratch operand']
  %s0 = inlined_call_operand.vmem [shape: f32[32,32], index: 0, kind: input, shape index: {}]
  %s1 = inlined_call_operand.vmem [shape: f32[32,32], index: 1, kind: input, shape index: {}]
  %s2 = inlined_call_operand.vmem [shape: f32[2,32], index: 2, kind: input, shape index: {}]
  %s3 = inlined_call_operand.vmem [shape: f32[12,32,16], index: 3, kind: input, shape index: {}]
  %s4 = inlined_call_operand.vmem [shape: f32[12,1,16], index: 4, kind: input, shape index: {}]
  %s5 = inlined_call_operand.vmem [shape: f32[4,16,32], index: 5, kind: input, shape index: {}]
  %s6 = inlined_call_operand.vmem [shape: f32[2,8,32], index: 6, kind: input, shape index: {}]
  %s7 = inlined_call_operand.vmem [shape: f32[2,32,64], index: 7, kind: input, shape index: {}]
  %s8 = inlined_call_operand.vmem [shape: f32[2,1,64], index: 8, kind: input, shape index: {}]
  %s9 = inlined_call_operand.vmem [shape: f32[2,64,32], index: 9, kind: input, shape index: {}]
  %s10 = inlined_call_operand.vmem [shape: f32[2,32,4], index: 10, kind: input, shape index: {}]
  %s11 = inlined_call_operand.vmem [shape: f32[1,4], index: 11, kind: input, shape index: {}]
  %s12 = inlined_call_operand.vmem [shape: f32[2,4], index: 12, kind: input, shape index: {}]
  %s13 = inlined_call_operand.hbm [shape: f32[2,4], index: 13, kind: output, shape index: {0}]
  %s14 = inlined_call_operand.hbm [shape: f32[1,1], index: 14, kind: output, shape index: {1}]
  %15 = xla_tuple %s13, %s14
  %s16 = sld [smem:[#allocation0]]
  $region70: #{bi_encoder_forward.1} parent=0
    _
  %s18 = ssub.s32 1, %s16
  %s19 = scalar_select 0, %s18, %s16
  $region1: #{bi_encoder_forward.1} parent=0
    #allocation3 [shape = 'u8[1024]{0}', space=vmem, size = 0x400, scoped, tag = 'output window, operand 0, single buffered']
    #allocation4 [shape = 's32[1]{0}', space=sflag, size = 0x4, scoped, tag = 'scoped memory for bi_encoder_forward.1']
    #allocation5 [shape = 'u8[512]{0}', space=vmem, size = 0x400, scoped, tag = 'output window, operand 1, single buffered']
    #allocation6 [shape = 's32[1]{0}', space=sflag, size = 0x4, scoped, tag = 'scoped memory for bi_encoder_forward.1']
    %20 = vsyncpa [#allocation4], 0
    %21 = vsyncpa [#allocation6], 0
    // Predicated region
    $region2: #{bi_encoder_forward.1} parent=1 // pred_check
      _
    $region3: #{bi_encoder_forward.1} parent=1 // pred_check_branch
      %23 = sbr.rel (0) target = $region5
    $region4: #{bi_encoder_forward.1} parent=1 // pred_region
      _
    $region5: #{bi_encoder_forward.1} parent=1 // pred_fallthru
      _
    // Predicated region
    $region6: #{bi_encoder_forward.1} parent=1 // pred_check
      _
    $region7: #{bi_encoder_forward.1} parent=1 // pred_check_branch
      %25 = sbr.rel (0) target = $region9
    $region8: #{bi_encoder_forward.1} parent=1 // pred_region
      _
    $region9: #{bi_encoder_forward.1} parent=1 // pred_fallthru
      _
    // Predicated region
    $region10: #{bi_encoder_forward.1} parent=1 // pred_check
      _
    $region11: #{bi_encoder_forward.1} parent=1 // pred_check_branch
      %27 = sbr.rel (0) target = $region13
    $region12: #{bi_encoder_forward.1} parent=1 // pred_region
      _
    $region13: #{bi_encoder_forward.1} parent=1 // pred_fallthru
      _
    // Predicated region
    $region14: #{bi_encoder_forward.1} parent=1 // pred_check
      _
    $region15: #{bi_encoder_forward.1} parent=1 // pred_check_branch
      %29 = sbr.rel (0) target = $region17
    $region16: #{bi_encoder_forward.1} parent=1 // pred_region
      _
    $region17: #{bi_encoder_forward.1} parent=1 // pred_fallthru
      _
    // Predicated region
    $region18: #{bi_encoder_forward.1} parent=1 // pred_check
      _
    $region19: #{bi_encoder_forward.1} parent=1 // pred_check_branch
      %31 = sbr.rel (0) target = $region21
    $region20: #{bi_encoder_forward.1} parent=1 // pred_region
      _
    $region21: #{bi_encoder_forward.1} parent=1 // pred_fallthru
      _
    // Predicated region
    $region22: #{bi_encoder_forward.1} parent=1 // pred_check
      _
    $region23: #{bi_encoder_forward.1} parent=1 // pred_check_branch
      %33 = sbr.rel (0) target = $region25
    $region24: #{bi_encoder_forward.1} parent=1 // pred_region
      _
    $region25: #{bi_encoder_forward.1} parent=1 // pred_fallthru
      _
    // Predicated region
    $region26: #{bi_encoder_forward.1} parent=1 // pred_check
      _
    $region27: #{bi_encoder_forward.1} parent=1 // pred_check_branch
      %35 = sbr.rel (0) target = $region29
    $region28: #{bi_encoder_forward.1} parent=1 // pred_region
      _
    $region29: #{bi_encoder_forward.1} parent=1 // pred_fallthru
      _
    // Predicated region
    $region30: #{bi_encoder_forward.1} parent=1 // pred_check
      _
    $region31: #{bi_encoder_forward.1} parent=1 // pred_check_branch
      %37 = sbr.rel (0) target = $region33
    $region32: #{bi_encoder_forward.1} parent=1 // pred_region
      _
    $region33: #{bi_encoder_forward.1} parent=1 // pred_fallthru
      _
    // Predicated region
    $region34: #{bi_encoder_forward.1} parent=1 // pred_check
      _
    $region35: #{bi_encoder_forward.1} parent=1 // pred_check_branch
      %39 = sbr.rel (0) target = $region37
    $region36: #{bi_encoder_forward.1} parent=1 // pred_region
      _
    $region37: #{bi_encoder_forward.1} parent=1 // pred_fallthru
      _
    // Predicated region
    $region38: #{bi_encoder_forward.1} parent=1 // pred_check
      _
    $region39: #{bi_encoder_forward.1} parent=1 // pred_check_branch
      %41 = sbr.rel (0) target = $region41
    $region40: #{bi_encoder_forward.1} parent=1 // pred_region
      _
    $region41: #{bi_encoder_forward.1} parent=1 // pred_fallthru
      _
    // Predicated region
    $region42: #{bi_encoder_forward.1} parent=1 // pred_check
      _
    $region43: #{bi_encoder_forward.1} parent=1 // pred_check_branch
      %43 = sbr.rel (0) target = $region45
    $region44: #{bi_encoder_forward.1} parent=1 // pred_region
      _
    $region45: #{bi_encoder_forward.1} parent=1 // pred_fallthru
      _
    // Predicated region
    $region46: #{bi_encoder_forward.1} parent=1 // pred_check
      _
    $region47: #{bi_encoder_forward.1} parent=1 // pred_check_branch
      %45 = sbr.rel (0) target = $region49
    $region48: #{bi_encoder_forward.1} parent=1 // pred_region
      _
    $region49: #{bi_encoder_forward.1} parent=1 // pred_fallthru
      _
    // Predicated region
    $region50: #{bi_encoder_forward.1} parent=1 // pred_check
      _
    $region51: #{bi_encoder_forward.1} parent=1 // pred_check_branch
      %47 = sbr.rel (0) target = $region53
    $region52: #{bi_encoder_forward.1} parent=1 // pred_region
      _
    $region53: #{bi_encoder_forward.1} parent=1 // pred_fallthru
      _
    %v48 = vld [vmem:[%s1] sm:$0xff]
    %v49 = vld [vmem:[%s1 + $0x8] sm:$0xff]
    %v50 = vld [vmem:[%s1 + $0x10] sm:$0xff]
    %v51 = vld [vmem:[%s1 + $0x18] sm:$0xff]
    %v52 = vld [vmem:[%s0] sm:$0xff]
    %v53 = vld [vmem:[%s0 + $0x8] sm:$0xff]
    %v54 = vld [vmem:[%s0 + $0x10] sm:$0xff]
    %v55 = vld [vmem:[%s0 + $0x18] sm:$0xff]
    %v56 = vld [vmem:[%s2] sm:$0x1]
    %v57 = vld [vmem:[%s2 + $0x1] sm:$0x1]
    %vm58 = vcmask 261120
    %v59 = vsel %vm58, %v52, 0.0
    %60 = vadd.xlane.f32.xlu0 %v59
    %v61 = vpop.xlane.xlu0 %60
    %v62 = vsel %vm58, %v53, 0.0
    %63 = vadd.xlane.f32.xlu0 %v62
    %v64 = vpop.xlane.xlu0 %63
    %v65 = vsel %vm58, %v54, 0.0
    %66 = vadd.xlane.f32.xlu0 %v65
    %v67 = vpop.xlane.xlu0 %66
    %v68 = vsel %vm58, %v55, 0.0
    %69 = vadd.xlane.f32.xlu0 %v68
    %v70 = vpop.xlane.xlu0 %69
    %v71 = vrcp.pop 32.0
    %v72 = vmul.f32 %v61, %v71
    %v73 = vmul.f32 %v64, %v71
    %v74 = vmul.f32 %v67, %v71
    %v75 = vmul.f32 %v70, %v71
    %v76 = vsub.f32 %v52, %v72
    %v77 = vsub.f32 %v53, %v73
    %v78 = vsub.f32 %v54, %v74
    %v79 = vsub.f32 %v55, %v75
    %v80 = vmul.f32 %v76, %v76
    %v81 = vmul.f32 %v77, %v77
    %v82 = vmul.f32 %v78, %v78
    %v83 = vmul.f32 %v79, %v79
    %v84 = vsel %vm58, %v80, 0.0
    %85 = vadd.xlane.f32.xlu0 %v84
    %v86 = vpop.xlane.xlu0 %85
    %v87 = vsel %vm58, %v81, 0.0
    %88 = vadd.xlane.f32.xlu0 %v87
    %v89 = vpop.xlane.xlu0 %88
    %v90 = vsel %vm58, %v82, 0.0
    %91 = vadd.xlane.f32.xlu0 %v90
    %v92 = vpop.xlane.xlu0 %91
    %v93 = vsel %vm58, %v83, 0.0
    %94 = vadd.xlane.f32.xlu0 %v93
    %v95 = vpop.xlane.xlu0 %94
    %v96 = vmul.f32 %v86, %v71
    %v97 = vmul.f32 %v89, %v71
    %v98 = vmul.f32 %v92, %v71
    %v99 = vmul.f32 %v95, %v71
    %v100 = vadd.f32 %v96, 1e-12
    %v101 = vadd.f32 %v97, 1e-12
    %v102 = vadd.f32 %v98, 1e-12
    %v103 = vadd.f32 %v99, 1e-12
    %v104 = vrsqrt.pop %v100
    %v105 = vrsqrt.pop %v101
    %v106 = vrsqrt.pop %v102
    %v107 = vrsqrt.pop %v103
    %v108 = vmul.f32 %v76, %v104
    %v109 = vmul.f32 %v77, %v105
    %v110 = vmul.f32 %v78, %v106
    %v111 = vmul.f32 %v79, %v107
    %v112 = vlaneseq
    %v113 = vshrl.u32 %v112, 7
    %v114 = vsub.s32 0, %v113
    %v115 = vrot.slane %v56, %v114
    %v116 = vmul.f32 %v108, %v115
    %v117 = vmul.f32 %v109, %v115
    %v118 = vmul.f32 %v110, %v115
    %v119 = vmul.f32 %v111, %v115
    %v120 = vlaneseq
    %v121 = vshrl.u32 %v120, 7
    %v122 = vsub.s32 0, %v121
    %v123 = vrot.slane %v57, %v122
    %v124 = vadd.f32 %v116, %v123
    %v125 = vadd.f32 %v117, %v123
    %v126 = vadd.f32 %v118, %v123
    %v127 = vadd.f32 %v119, %v123
    %v128 = vld [vmem:[%s6] sm:$0xff]
    %v129 = vld [vmem:[%s3] sm:$0xff]
    %v130 = vld [vmem:[%s3 + $0x8] sm:$0xff]
    %v131 = vld [vmem:[%s3 + $0x10] sm:$0xff]
    %v132 = vld [vmem:[%s3 + $0x18] sm:$0xff]
    %v133 = vld [vmem:[%s4] sm:$0x1]
    %v135 = vlaneseq
    %v136 = vshrl.u32 %v135, 7
    %v137 = vsub.s32 0, %v136
    %v138 = vrot.slane %v133, %v137
    %v141 = vsel %vm58, %v124, 0
    %v144 = vsel %vm58, %v125, 0
    %v147 = vsel %vm58, %v126, 0
    %v150 = vsel %vm58, %v127, 0
    %152 = vmatprep.subr.mxu0 0.0
    %153 = vmatpush1.msra.mxu0 %v129
    %154 = vmatprep.subr.mxu0 0.0
    %155 = vmatpush1.msra.mxu0 %v130
    %156 = vmatprep.subr.mxu0 0.0
    %157 = vmatpush1.msra.mxu0 %v131
    %158 = vmatprep.subr.mxu0 0.0
    %159 = vmatpush1.msra.mxu0 %v132
    %160 = vmatprep.subr.mxu0 0.0
    %161 = vmatpush1.msra.mxu0 0.0
    %162 = vmatprep.subr.mxu0 0.0
    %163 = vmatpush1.msra.mxu0 0.0
    %164 = vmatprep.subr.mxu0 0.0
    %165 = vmatpush1.msra.mxu0 0.0
    %166 = vmatprep.subr.mxu0 0.0
    %167 = vmatpush1.msra.mxu0 0.0
    %168 = vmatprep.subr.mxu0 0.0
    %169 = vmatpush1.msra.mxu0 0.0
    %170 = vmatprep.subr.mxu0 0.0
    %171 = vmatpush1.msra.mxu0 0.0
    %172 = vmatprep.subr.mxu0 0.0
    %173 = vmatpush1.msra.mxu0 0.0
    %174 = vmatprep.subr.mxu0 0.0
    %175 = vmatpush1.msra.mxu0 0.0
    %176 = vmatprep.subr.mxu0 0.0
    %177 = vmatpush1.msra.mxu0 0.0
    %178 = vmatprep.subr.mxu0 0.0
    %179 = vmatpush1.msra.mxu0 0.0
    %180 = vmatprep.subr.mxu0 0.0
    %181 = vmatpush1.msra.mxu0 0.0
    %182 = vmatprep.subr.mxu0 0.0
    %183 = vmatpush1.msra.mxu0 0.0
    %184 = vmatprep.subr.mxu0 0.0
    %185 = vmatpush1.msra.mxu0 0.0
    %186 = vmatprep.subr.mxu0 0.0
    %187 = vmatpush1.msra.mxu0 0.0
    %188 = vmatprep.subr.mxu0 0.0
    %189 = vmatpush1.msra.mxu0 0.0
    %190 = vmatprep.subr.mxu0 0.0
    %191 = vmatpush1.msra.mxu0 0.0
    %192 = vmatprep.subr.mxu0 0.0
    %193 = vmatpush1.msra.mxu0 0.0
    %194 = vmatprep.subr.mxu0 0.0
    %195 = vmatpush1.msra.mxu0 0.0
    %196 = vmatprep.subr.mxu0 0.0
    %197 = vmatpush1.msra.mxu0 0.0
    %198 = vmatprep.subr.mxu0 0.0
    %199 = vmatpush1.msra.mxu0 0.0
    %200 = vmatprep.subr.mxu0 0.0
    %201 = vmatpush1.msra.mxu0 0.0
    %202 = vmatprep.subr.mxu0 0.0
    %203 = vmatpush1.msra.mxu0 0.0
    %204 = vmatprep.subr.mxu0 0.0
    %205 = vmatpush1.msra.mxu0 0.0
    %206 = vmatprep.subr.mxu0 0.0
    %207 = vmatpush1.msra.mxu0 0.0
    %208 = vmatprep.subr.mxu0 0.0
    %209 = vmatpush1.msra.mxu0 0.0
    %210 = vmatprep.subr.mxu0 0.0
    %211 = vmatpush1.msra.mxu0 0.0
    %212 = vmatprep.subr.mxu0 0.0
    %213 = vmatpush1.msra.mxu0 0.0
    %214 = vmatprep.subr.mxu0 0.0
    %215 = vmatpush1.msra.mxu0 0.0
    %216 = vmatprep.mubr.f32.mxu0 0.0
    %217 = vmatmul.mubr.f32.gmra.mrb[0].mxu0 %v141
    %v218 = vpop.f32.mrb[0].mxu0
    %v219 = vadd.f32 %v138, %v218
    %v220 = vpop.f32.mrb[0].mxu0
    %221 = vmatprep.mubr.f32.mxu0 0.0
    %222 = vmatmul.mubr.f32.gmra.mrb[0].mxu0 %v144
    %v223 = vpop.f32.mrb[0].mxu0
    %v224 = vadd.f32 %v138, %v223
    %v225 = vpop.f32.mrb[0].mxu0
    %226 = vmatprep.mubr.f32.mxu0 0.0
    %227 = vmatmul.mubr.f32.gmra.mrb[0].mxu0 %v147
    %v228 = vpop.f32.mrb[0].mxu0
    %v229 = vadd.f32 %v138, %v228
    %v230 = vpop.f32.mrb[0].mxu0
    %231 = vmatprep.mubr.f32.mxu0 0.0
    %232 = vmatmul.mubr.f32.gmra.mrb[0].mxu0 %v150
    %v233 = vpop.f32.mrb[0].mxu0
    %v234 = vadd.f32 %v138, %v233
    %v235 = vpop.f32.mrb[0].mxu0
    %236 = vdwg.mxu0
    %s237 = scalar_lea.vmem %s3, 64
    %v238 = vld [vmem:[%s237] sm:$0xff]
    %v239 = vld [vmem:[%s237 + $0x8] sm:$0xff]
    %v240 = vld [vmem:[%s237 + $0x10] sm:$0xff]
    %v241 = vld [vmem:[%s237 + $0x18] sm:$0xff]
    %s242 = scalar_lea.vmem %s4, 2
    %v243 = vld [vmem:[%s242] sm:$0x1]
    %v245 = vlaneseq
    %v246 = vshrl.u32 %v245, 7
    %v247 = vsub.s32 0, %v246
    %v248 = vrot.slane %v243, %v247
    %250 = vmatprep.subr.mxu0 0.0
    %251 = vmatpush1.msra.mxu0 %v238
    %252 = vmatprep.subr.mxu0 0.0
    %253 = vmatpush1.msra.mxu0 %v239
    %254 = vmatprep.subr.mxu0 0.0
    %255 = vmatpush1.msra.mxu0 %v240
    %256 = vmatprep.subr.mxu0 0.0
    %257 = vmatpush1.msra.mxu0 %v241
    %258 = vmatprep.subr.mxu0 0.0
    %259 = vmatpush1.msra.mxu0 0.0
    %260 = vmatprep.subr.mxu0 0.0
    %261 = vmatpush1.msra.mxu0 0.0
    %262 = vmatprep.subr.mxu0 0.0
    %263 = vmatpush1.msra.mxu0 0.0
    %264 = vmatprep.subr.mxu0 0.0
    %265 = vmatpush1.msra.mxu0 0.0
    %266 = vmatprep.subr.mxu0 0.0
    %267 = vmatpush1.msra.mxu0 0.0
    %268 = vmatprep.subr.mxu0 0.0
    %269 = vmatpush1.msra.mxu0 0.0
    %270 = vmatprep.subr.mxu0 0.0
    %271 = vmatpush1.msra.mxu0 0.0
    %272 = vmatprep.subr.mxu0 0.0
    %273 = vmatpush1.msra.mxu0 0.0
    %274 = vmatprep.subr.mxu0 0.0
    %275 = vmatpush1.msra.mxu0 0.0
    %276 = vmatprep.subr.mxu0 0.0
    %277 = vmatpush1.msra.mxu0 0.0
    %278 = vmatprep.subr.mxu0 0.0
    %279 = vmatpush1.msra.mxu0 0.0
    %280 = vmatprep.subr.mxu0 0.0
    %281 = vmatpush1.msra.mxu0 0.0
    %282 = vmatprep.subr.mxu0 0.0
    %283 = vmatpush1.msra.mxu0 0.0
    %284 = vmatprep.subr.mxu0 0.0
    %285 = vmatpush1.msra.mxu0 0.0
    %286 = vmatprep.subr.mxu0 0.0
    %287 = vmatpush1.msra.mxu0 0.0
    %288 = vmatprep.subr.mxu0 0.0
    %289 = vmatpush1.msra.mxu0 0.0
    %290 = vmatprep.subr.mxu0 0.0
    %291 = vmatpush1.msra.mxu0 0.0
    %292 = vmatprep.subr.mxu0 0.0
    %293 = vmatpush1.msra.mxu0 0.0
    %294 = vmatprep.subr.mxu0 0.0
    %295 = vmatpush1.msra.mxu0 0.0
    %296 = vmatprep.subr.mxu0 0.0
    %297 = vmatpush1.msra.mxu0 0.0
    %298 = vmatprep.subr.mxu0 0.0
    %299 = vmatpush1.msra.mxu0 0.0
    %300 = vmatprep.subr.mxu0 0.0
    %301 = vmatpush1.msra.mxu0 0.0
    %302 = vmatprep.subr.mxu0 0.0
    %303 = vmatpush1.msra.mxu0 0.0
    %304 = vmatprep.subr.mxu0 0.0
    %305 = vmatpush1.msra.mxu0 0.0
    %306 = vmatprep.subr.mxu0 0.0
    %307 = vmatpush1.msra.mxu0 0.0
    %308 = vmatprep.subr.mxu0 0.0
    %309 = vmatpush1.msra.mxu0 0.0
    %310 = vmatprep.subr.mxu0 0.0
    %311 = vmatpush1.msra.mxu0 0.0
    %312 = vmatprep.subr.mxu0 0.0
    %313 = vmatpush1.msra.mxu0 0.0
    %314 = vmatprep.mubr.f32.mxu0 0.0
    %315 = vmatmul.mubr.f32.gmra.mrb[0].mxu0 %v141
    %v316 = vpop.f32.mrb[0].mxu0
    %v317 = vadd.f32 %v248, %v316
    %v318 = vpop.f32.mrb[0].mxu0
    %319 = vmatprep.mubr.f32.mxu0 0.0
    %320 = vmatmul.mubr.f32.gmra.mrb[0].mxu0 %v144
    %v321 = vpop.f32.mrb[0].mxu0
    %v322 = vadd.f32 %v248, %v321
    %v323 = vpop.f32.mrb[0].mxu0
    %324 = vmatprep.mubr.f32.mxu0 0.0
    %325 = vmatmul.mubr.f32.gmra.mrb[0].mxu0 %v147
    %v326 = vpop.f32.mrb[0].mxu0
    %v327 = vadd.f32 %v248, %v326
    %v328 = vpop.f32.mrb[0].mxu0
    %329 = vmatprep.mubr.f32.mxu0 0.0
    %330 = vmatmul.mubr.f32.gmra.mrb[0].mxu0 %v150
    %v331 = vpop.f32.mrb[0].mxu0
    %v332 = vadd.f32 %v248, %v331
    %v333 = vpop.f32.mrb[0].mxu0
    %334 = vdwg.mxu0
    %s335 = scalar_lea.vmem %s3, 128
    %v336 = vld [vmem:[%s335] sm:$0xff]
    %v337 = vld [vmem:[%s335 + $0x8] sm:$0xff]
    %v338 = vld [vmem:[%s335 + $0x10] sm:$0xff]
    %v339 = vld [vmem:[%s335 + $0x18] sm:$0xff]
    %s340 = scalar_lea.vmem %s4, 4
    %v341 = vld [vmem:[%s340] sm:$0x1]
    %v343 = vlaneseq
    %v344 = vshrl.u32 %v343, 7
    %v345 = vsub.s32 0, %v344
    %v346 = vrot.slane %v341, %v345
    %348 = vmatprep.subr.mxu0 0.0
    %349 = vmatpush1.msra.mxu0 %v336
    %350 = vmatprep.subr.mxu0 0.0
    %351 = vmatpush1.msra.mxu0 %v337
    %352 = vmatprep.subr.mxu0 0.0
    %353 = vmatpush1.msra.mxu0 %v338
    %354 = vmatprep.subr.mxu0 0.0
    %355 = vmatpush1.msra.mxu0 %v339
    %356 = vmatprep.subr.mxu0 0.0
    %357 = vmatpush1.msra.mxu0 0.0
    %358 = vmatprep.subr.mxu0 0.0
    %359 = vmatpush1.msra.mxu0 0.0
    %360 = vmatprep.subr.mxu0 0.0
    %361 = vmatpush1.msra.mxu0 0.0
    %362 = vmatprep.subr.mxu0 0.0
    %363 = vmatpush1.msra.mxu0 0.0
    %364 = vmatprep.subr.mxu0 0.0
    %365 = vmatpush1.msra.mxu0 0.0
    %366 = vmatprep.subr.mxu0 0.0
    %367 = vmatpush1.msra.mxu0 0.0
    %368 = vmatprep.subr.mxu0 0.0
    %369 = vmatpush1.msra.mxu0 0.0
    %370 = vmatprep.subr.mxu0 0.0
    %371 = vmatpush1.msra.mxu0 0.0
    %372 = vmatprep.subr.mxu0 0.0
    %373 = vmatpush1.msra.mxu0 0.0
    %374 = vmatprep.subr.mxu0 0.0
    %375 = vmatpush1.msra.mxu0 0.0
    %376 = vmatprep.subr.mxu0 0.0
    %377 = vmatpush1.msra.mxu0 0.0
    %378 = vmatprep.subr.mxu0 0.0
    %379 = vmatpush1.msra.mxu0 0.0
    %380 = vmatprep.subr.mxu0 0.0
    %381 = vmatpush1.msra.mxu0 0.0
    %382 = vmatprep.subr.mxu0 0.0
    %383 = vmatpush1.msra.mxu0 0.0
    %384 = vmatprep.subr.mxu0 0.0
    %385 = vmatpush1.msra.mxu0 0.0
    %386 = vmatprep.subr.mxu0 0.0
    %387 = vmatpush1.msra.mxu0 0.0
    %388 = vmatprep.subr.mxu0 0.0
    %389 = vmatpush1.msra.mxu0 0.0
    %390 = vmatprep.subr.mxu0 0.0
    %391 = vmatpush1.msra.mxu0 0.0
    %392 = vmatprep.subr.mxu0 0.0
    %393 = vmatpush1.msra.mxu0 0.0
    %394 = vmatprep.subr.mxu0 0.0
    %395 = vmatpush1.msra.mxu0 0.0
    %396 = vmatprep.subr.mxu0 0.0
    %397 = vmatpush1.msra.mxu0 0.0
    %398 = vmatprep.subr.mxu0 0.0
    %399 = vmatpush1.msra.mxu0 0.0
    %400 = vmatprep.subr.mxu0 0.0
    %401 = vmatpush1.msra.mxu0 0.0
    %402 = vmatprep.subr.mxu0 0.0
    %403 = vmatpush1.msra.mxu0 0.0
    %404 = vmatprep.subr.mxu0 0.0
    %405 = vmatpush1.msra.mxu0 0.0
    %406 = vmatprep.subr.mxu0 0.0
    %407 = vmatpush1.msra.mxu0 0.0
    %408 = vmatprep.subr.mxu0 0.0
    %409 = vmatpush1.msra.mxu0 0.0
    %410 = vmatprep.subr.mxu0 0.0
    %411 = vmatpush1.msra.mxu0 0.0
    %412 = vmatprep.mubr.f32.mxu0 0.0
    %413 = vmatmul.mubr.f32.gmra.mrb[0].mxu0 %v141
    %v414 = vpop.f32.mrb[0].mxu0
    %v415 = vadd.f32 %v346, %v414
    %v416 = vpop.f32.mrb[0].mxu0
    %417 = vmatprep.mubr.f32.mxu0 0.0
    %418 = vmatmul.mubr.f32.gmra.mrb[0].mxu0 %v144
    %v419 = vpop.f32.mrb[0].mxu0
    %v420 = vadd.f32 %v346, %v419
    %v421 = vpop.f32.mrb[0].mxu0
    %422 = vmatprep.mubr.f32.mxu0 0.0
    %423 = vmatmul.mubr.f32.gmra.mrb[0].mxu0 %v147
    %v424 = vpop.f32.mrb[0].mxu0
    %v425 = vadd.f32 %v346, %v424
    %v426 = vpop.f32.mrb[0].mxu0
    %427 = vmatprep.mubr.f32.mxu0 0.0
    %428 = vmatmul.mubr.f32.gmra.mrb[0].mxu0 %v150
    %v429 = vpop.f32.mrb[0].mxu0
    %v430 = vadd.f32 %v346, %v429
    %v431 = vpop.f32.mrb[0].mxu0
    %432 = vdwg.mxu0
    %vm433 = vcmask 130048
    %v435 = vsel %vm433, %v219, 0
    %v438 = vsel %vm433, %v224, 0
    %v441 = vsel %vm433, %v229, 0
    %v444 = vsel %vm433, %v234, 0
    %v447 = vsel %vm433, %v317, 0
    %v450 = vsel %vm433, %v322, 0
    %v453 = vsel %vm433, %v327, 0
    %v456 = vsel %vm433, %v332, 0
    %458 = vmatprep.subr.mxu0 0.0
    %459 = vmatpush1.xpose.msra.mxu0 %v447
    %460 = vmatprep.subr.mxu0 0.0
    %461 = vmatpush1.xpose.msra.mxu0 %v450
    %462 = vmatprep.subr.mxu0 0.0
    %463 = vmatpush1.xpose.msra.mxu0 %v453
    %464 = vmatprep.subr.mxu0 0.0
    %465 = vmatpush1.xpose.msra.mxu0 %v456
    %466 = vmatprep.subr.mxu0 0.0
    %467 = vmatpush1.xpose.msra.mxu0 0.0
    %468 = vmatprep.subr.mxu0 0.0
    %469 = vmatpush1.xpose.msra.mxu0 0.0
    %470 = vmatprep.subr.mxu0 0.0
    %471 = vmatpush1.xpose.msra.mxu0 0.0
    %472 = vmatprep.subr.mxu0 0.0
    %473 = vmatpush1.xpose.msra.mxu0 0.0
    %474 = vmatprep.subr.mxu0 0.0
    %475 = vmatpush1.xpose.msra.mxu0 0.0
    %476 = vmatprep.subr.mxu0 0.0
    %477 = vmatpush1.xpose.msra.mxu0 0.0
    %478 = vmatprep.subr.mxu0 0.0
    %479 = vmatpush1.xpose.msra.mxu0 0.0
    %480 = vmatprep.subr.mxu0 0.0
    %481 = vmatpush1.xpose.msra.mxu0 0.0
    %482 = vmatprep.subr.mxu0 0.0
    %483 = vmatpush1.xpose.msra.mxu0 0.0
    %484 = vmatprep.subr.mxu0 0.0
    %485 = vmatpush1.xpose.msra.mxu0 0.0
    %486 = vmatprep.subr.mxu0 0.0
    %487 = vmatpush1.xpose.msra.mxu0 0.0
    %488 = vmatprep.subr.mxu0 0.0
    %489 = vmatpush1.xpose.msra.mxu0 0.0
    %490 = vmatprep.subr.mxu0 0.0
    %491 = vmatpush1.xpose.msra.mxu0 0.0
    %492 = vmatprep.subr.mxu0 0.0
    %493 = vmatpush1.xpose.msra.mxu0 0.0
    %494 = vmatprep.subr.mxu0 0.0
    %495 = vmatpush1.xpose.msra.mxu0 0.0
    %496 = vmatprep.subr.mxu0 0.0
    %497 = vmatpush1.xpose.msra.mxu0 0.0
    %498 = vmatprep.subr.mxu0 0.0
    %499 = vmatpush1.xpose.msra.mxu0 0.0
    %500 = vmatprep.subr.mxu0 0.0
    %501 = vmatpush1.xpose.msra.mxu0 0.0
    %502 = vmatprep.subr.mxu0 0.0
    %503 = vmatpush1.xpose.msra.mxu0 0.0
    %504 = vmatprep.subr.mxu0 0.0
    %505 = vmatpush1.xpose.msra.mxu0 0.0
    %506 = vmatprep.subr.mxu0 0.0
    %507 = vmatpush1.xpose.msra.mxu0 0.0
    %508 = vmatprep.subr.mxu0 0.0
    %509 = vmatpush1.xpose.msra.mxu0 0.0
    %510 = vmatprep.subr.mxu0 0.0
    %511 = vmatpush1.xpose.msra.mxu0 0.0
    %512 = vmatprep.subr.mxu0 0.0
    %513 = vmatpush1.xpose.msra.mxu0 0.0
    %514 = vmatprep.subr.mxu0 0.0
    %515 = vmatpush1.xpose.msra.mxu0 0.0
    %516 = vmatprep.subr.mxu0 0.0
    %517 = vmatpush1.xpose.msra.mxu0 0.0
    %518 = vmatprep.subr.mxu0 0.0
    %519 = vmatpush1.xpose.msra.mxu0 0.0
    %520 = vmatprep.subr.mxu0 0.0
    %521 = vmatpush1.xpose.msra.mxu0 0.0
    %522 = vmatprep.mubr.f32.mxu0 0.0
    %523 = vmatmul.mubr.f32.gmra.mrb[0].mxu0 %v435
    %v524 = vpop.f32.mrb[0].mxu0
    %v525 = vadd.f32 0.0, %v524
    %v526 = vpop.f32.mrb[0].mxu0
    %527 = vmatprep.mubr.f32.mxu0 0.0
    %528 = vmatmul.mubr.f32.gmra.mrb[0].mxu0 %v438
    %v529 = vpop.f32.mrb[0].mxu0
    %v530 = vadd.f32 0.0, %v529
    %v531 = vpop.f32.mrb[0].mxu0
    %532 = vmatprep.mubr.f32.mxu0 0.0
    %533 = vmatmul.mubr.f32.gmra.mrb[0].mxu0 %v441
    %v534 = vpop.f32.mrb[0].mxu0
    %v535 = vadd.f32 0.0, %v534
    %v536 = vpop.f32.mrb[0].mxu0
    %537 = vmatprep.mubr.f32.mxu0 0.0
    %538 = vmatmul.mubr.f32.gmra.mrb[0].mxu0 %v444
    %v539 = vpop.f32.mrb[0].mxu0
    %v540 = vadd.f32 0.0, %v539
    %v541 = vpop.f32.mrb[0].mxu0
    %542 = vdwg.mxu0
    %v543 = vmul.f32 %v525, 0.25
    %v544 = vmul.f32 %v530, 0.25
    %v545 = vmul.f32 %v535, 0.25
    %v546 = vmul.f32 %v540, 0.25
    %v547 = vadd.f32 %v543, %v48
    %v548 = vadd.f32 %v544, %v49
    %v549 = vadd.f32 %v545, %v50
    %v550 = vadd.f32 %v546, %v51
    %v551 = vsel %vm58, %v547, -inf
    %552 = vmax.xlane.f32.xlu0 %v551
    %v553 = vpop.xlane.xlu0 %552
    %v554 = vsel %vm58, %v548, -inf
    %555 = vmax.xlane.f32.xlu0 %v554
    %v556 = vpop.xlane.xlu0 %555
    %v557 = vsel %vm58, %v549, -inf
    %558 = vmax.xlane.f32.xlu0 %v557
    %v559 = vpop.xlane.xlu0 %558
    %v560 = vsel %vm58, %v550, -inf
    %561 = vmax.xlane.f32.xlu0 %v560
    %v562 = vpop.xlane.xlu0 %561
    %v563 = vsub.f32 %v547, %v553
    %v564 = vsub.f32 %v548, %v556
    %v565 = vsub.f32 %v549, %v559
    %v566 = vsub.f32 %v550, %v562
    %v567 = vmul.f32 %v563, 1.442695
    %v568 = vpow.pop %v567
    %v569 = vmul.f32 %v564, 1.442695
    %v570 = vpow.pop %v569
    %v571 = vmul.f32 %v565, 1.442695
    %v572 = vpow.pop %v571
    %v573 = vmul.f32 %v566, 1.442695
    %v574 = vpow.pop %v573
    %v575 = vsel %vm58, %v568, 0.0
    %576 = vadd.xlane.f32.xlu0 %v575
    %v577 = vpop.xlane.xlu0 %576
    %v578 = vsel %vm58, %v570, 0.0
    %579 = vadd.xlane.f32.xlu0 %v578
    %v580 = vpop.xlane.xlu0 %579
    %v581 = vsel %vm58, %v572, 0.0
    %582 = vadd.xlane.f32.xlu0 %v581
    %v583 = vpop.xlane.xlu0 %582
    %v584 = vsel %vm58, %v574, 0.0
    %585 = vadd.xlane.f32.xlu0 %v584
    %v586 = vpop.xlane.xlu0 %585
    %v587 = vrcp.pop %v577
    %v588 = vrcp.pop %v580
    %v589 = vrcp.pop %v583
    %v590 = vrcp.pop %v586
    %v591 = vmul.f32 %v568, %v587
    %v592 = vmul.f32 %v570, %v588
    %v593 = vmul.f32 %v572, %v589
    %v594 = vmul.f32 %v574, %v590
    %v596 = vsel %vm58, %v591, 0
    %v599 = vsel %vm58, %v592, 0
    %v602 = vsel %vm58, %v593, 0
    %v605 = vsel %vm58, %v594, 0
    %607 = vmatprep.subr.mxu0 0.0
    %608 = vmatpush1.msra.mxu0 %v415
    %609 = vmatprep.subr.mxu0 0.0
    %610 = vmatpush1.msra.mxu0 %v420
    %611 = vmatprep.subr.mxu0 0.0
    %612 = vmatpush1.msra.mxu0 %v425
    %613 = vmatprep.subr.mxu0 0.0
    %614 = vmatpush1.msra.mxu0 %v430
    %615 = vmatprep.subr.mxu0 0.0
    %616 = vmatpush1.msra.mxu0 0.0
    %617 = vmatprep.subr.mxu0 0.0
    %618 = vmatpush1.msra.mxu0 0.0
    %619 = vmatprep.subr.mxu0 0.0
    %620 = vmatpush1.msra.mxu0 0.0
    %621 = vmatprep.subr.mxu0 0.0
    %622 = vmatpush1.msra.mxu0 0.0
    %623 = vmatprep.subr.mxu0 0.0
    %624 = vmatpush1.msra.mxu0 0.0
    %625 = vmatprep.subr.mxu0 0.0
    %626 = vmatpush1.msra.mxu0 0.0
    %627 = vmatprep.subr.mxu0 0.0
    %628 = vmatpush1.msra.mxu0 0.0
    %629 = vmatprep.subr.mxu0 0.0
    %630 = vmatpush1.msra.mxu0 0.0
    %631 = vmatprep.subr.mxu0 0.0
    %632 = vmatpush1.msra.mxu0 0.0
    %633 = vmatprep.subr.mxu0 0.0
    %634 = vmatpush1.msra.mxu0 0.0
    %635 = vmatprep.subr.mxu0 0.0
    %636 = vmatpush1.msra.mxu0 0.0
    %637 = vmatprep.subr.mxu0 0.0
    %638 = vmatpush1.msra.mxu0 0.0
    %639 = vmatprep.subr.mxu0 0.0
    %640 = vmatpush1.msra.mxu0 0.0
    %641 = vmatprep.subr.mxu0 0.0
    %642 = vmatpush1.msra.mxu0 0.0
    %643 = vmatprep.subr.mxu0 0.0
    %644 = vmatpush1.msra.mxu0 0.0
    %645 = vmatprep.subr.mxu0 0.0
    %646 = vmatpush1.msra.mxu0 0.0
    %647 = vmatprep.subr.mxu0 0.0
    %648 = vmatpush1.msra.mxu0 0.0
    %649 = vmatprep.subr.mxu0 0.0
    %650 = vmatpush1.msra.mxu0 0.0
    %651 = vmatprep.subr.mxu0 0.0
    %652 = vmatpush1.msra.mxu0 0.0
    %653 = vmatprep.subr.mxu0 0.0
    %654 = vmatpush1.msra.mxu0 0.0
    %655 = vmatprep.subr.mxu0 0.0
    %656 = vmatpush1.msra.mxu0 0.0
    %657 = vmatprep.subr.mxu0 0.0
    %658 = vmatpush1.msra.mxu0 0.0
    %659 = vmatprep.subr.mxu0 0.0
    %660 = vmatpush1.msra.mxu0 0.0
    %661 = vmatprep.subr.mxu0 0.0
    %662 = vmatpush1.msra.mxu0 0.0
    %663 = vmatprep.subr.mxu0 0.0
    %664 = vmatpush1.msra.mxu0 0.0
    %665 = vmatprep.subr.mxu0 0.0
    %666 = vmatpush1.msra.mxu0 0.0
    %667 = vmatprep.subr.mxu0 0.0
    %668 = vmatpush1.msra.mxu0 0.0
    %669 = vmatprep.subr.mxu0 0.0
    %670 = vmatpush1.msra.mxu0 0.0
    %671 = vmatprep.mubr.f32.mxu0 0.0
    %672 = vmatmul.mubr.f32.gmra.mrb[0].mxu0 %v596
    %v673 = vpop.f32.mrb[0].mxu0
    %v674 = vadd.f32 0.0, %v673
    %v675 = vpop.f32.mrb[0].mxu0
    %676 = vmatprep.mubr.f32.mxu0 0.0
    %677 = vmatmul.mubr.f32.gmra.mrb[0].mxu0 %v599
    %v678 = vpop.f32.mrb[0].mxu0
    %v679 = vadd.f32 0.0, %v678
    %v680 = vpop.f32.mrb[0].mxu0
    %681 = vmatprep.mubr.f32.mxu0 0.0
    %682 = vmatmul.mubr.f32.gmra.mrb[0].mxu0 %v602
    %v683 = vpop.f32.mrb[0].mxu0
    %v684 = vadd.f32 0.0, %v683
    %v685 = vpop.f32.mrb[0].mxu0
    %686 = vmatprep.mubr.f32.mxu0 0.0
    %687 = vmatmul.mubr.f32.gmra.mrb[0].mxu0 %v605
    %v688 = vpop.f32.mrb[0].mxu0
    %v689 = vadd.f32 0.0, %v688
    %v690 = vpop.f32.mrb[0].mxu0
    %691 = vdwg.mxu0
    %v692 = vld [vmem:[%s5] sm:$0xff]
    %v693 = vld [vmem:[%s5 + $0x8] sm:$0xff]
    %s694 = scalar_lea.vmem %s3, 32
    %v695 = vld [vmem:[%s694] sm:$0xff]
    %v696 = vld [vmem:[%s694 + $0x8] sm:$0xff]
    %v697 = vld [vmem:[%s694 + $0x10] sm:$0xff]
    %v698 = vld [vmem:[%s694 + $0x18] sm:$0xff]
    %s699 = scalar_lea.vmem %s4, 1
    %v700 = vld [vmem:[%s699] sm:$0x1]
    %v702 = vlaneseq
    %v703 = vshrl.u32 %v702, 7
    %v704 = vsub.s32 0, %v703
    %v705 = vrot.slane %v700, %v704
    %707 = vmatprep.subr.mxu0 0.0
    %708 = vmatpush1.msra.mxu0 %v695
    %709 = vmatprep.subr.mxu0 0.0
    %710 = vmatpush1.msra.mxu0 %v696
    %711 = vmatprep.subr.mxu0 0.0
    %712 = vmatpush1.msra.mxu0 %v697
    %713 = vmatprep.subr.mxu0 0.0
    %714 = vmatpush1.msra.mxu0 %v698
    %715 = vmatprep.subr.mxu0 0.0
    %716 = vmatpush1.msra.mxu0 0.0
    %717 = vmatprep.subr.mxu0 0.0
    %718 = vmatpush1.msra.mxu0 0.0
    %719 = vmatprep.subr.mxu0 0.0
    %720 = vmatpush1.msra.mxu0 0.0
    %721 = vmatprep.subr.mxu0 0.0
    %722 = vmatpush1.msra.mxu0 0.0
    %723 = vmatprep.subr.mxu0 0.0
    %724 = vmatpush1.msra.mxu0 0.0
    %725 = vmatprep.subr.mxu0 0.0
    %726 = vmatpush1.msra.mxu0 0.0
    %727 = vmatprep.subr.mxu0 0.0
    %728 = vmatpush1.msra.mxu0 0.0
    %729 = vmatprep.subr.mxu0 0.0
    %730 = vmatpush1.msra.mxu0 0.0
    %731 = vmatprep.subr.mxu0 0.0
    %732 = vmatpush1.msra.mxu0 0.0
    %733 = vmatprep.subr.mxu0 0.0
    %734 = vmatpush1.msra.mxu0 0.0
    %735 = vmatprep.subr.mxu0 0.0
    %736 = vmatpush1.msra.mxu0 0.0
    %737 = vmatprep.subr.mxu0 0.0
    %738 = vmatpush1.msra.mxu0 0.0
    %739 = vmatprep.subr.mxu0 0.0
    %740 = vmatpush1.msra.mxu0 0.0
    %741 = vmatprep.subr.mxu0 0.0
    %742 = vmatpush1.msra.mxu0 0.0
    %743 = vmatprep.subr.mxu0 0.0
    %744 = vmatpush1.msra.mxu0 0.0
    %745 = vmatprep.subr.mxu0 0.0
    %746 = vmatpush1.msra.mxu0 0.0
    %747 = vmatprep.subr.mxu0 0.0
    %748 = vmatpush1.msra.mxu0 0.0
    %749 = vmatprep.subr.mxu0 0.0
    %750 = vmatpush1.msra.mxu0 0.0
    %751 = vmatprep.subr.mxu0 0.0
    %752 = vmatpush1.msra.mxu0 0.0
    %753 = vmatprep.subr.mxu0 0.0
    %754 = vmatpush1.msra.mxu0 0.0
    %755 = vmatprep.subr.mxu0 0.0
    %756 = vmatpush1.msra.mxu0 0.0
    %757 = vmatprep.subr.mxu0 0.0
    %758 = vmatpush1.msra.mxu0 0.0
    %759 = vmatprep.subr.mxu0 0.0
    %760 = vmatpush1.msra.mxu0 0.0
    %761 = vmatprep.subr.mxu0 0.0
    %762 = vmatpush1.msra.mxu0 0.0
    %763 = vmatprep.subr.mxu0 0.0
    %764 = vmatpush1.msra.mxu0 0.0
    %765 = vmatprep.subr.mxu0 0.0
    %766 = vmatpush1.msra.mxu0 0.0
    %767 = vmatprep.subr.mxu0 0.0
    %768 = vmatpush1.msra.mxu0 0.0
    %769 = vmatprep.subr.mxu0 0.0
    %770 = vmatpush1.msra.mxu0 0.0
    %771 = vmatprep.mubr.f32.mxu0 0.0
    %772 = vmatmul.mubr.f32.gmra.mrb[0].mxu0 %v141
    %v773 = vpop.f32.mrb[0].mxu0
    %v774 = vadd.f32 %v705, %v773
    %v775 = vpop.f32.mrb[0].mxu0
    %776 = vmatprep.mubr.f32.mxu0 0.0
    %777 = vmatmul.mubr.f32.gmra.mrb[0].mxu0 %v144
    %v778 = vpop.f32.mrb[0].mxu0
    %v779 = vadd.f32 %v705, %v778
    %v780 = vpop.f32.mrb[0].mxu0
    %781 = vmatprep.mubr.f32.mxu0 0.0
    %782 = vmatmul.mubr.f32.gmra.mrb[0].mxu0 %v147
    %v783 = vpop.f32.mrb[0].mxu0
    %v784 = vadd.f32 %v705, %v783
    %v785 = vpop.f32.mrb[0].mxu0
    %786 = vmatprep.mubr.f32.mxu0 0.0
    %787 = vmatmul.mubr.f32.gmra.mrb[0].mxu0 %v150
    %v788 = vpop.f32.mrb[0].mxu0
    %v789 = vadd.f32 %v705, %v788
    %v790 = vpop.f32.mrb[0].mxu0
    %791 = vdwg.mxu0
    %s792 = scalar_lea.vmem %s3, 96
    %v793 = vld [vmem:[%s792] sm:$0xff]
    %v794 = vld [vmem:[%s792 + $0x8] sm:$0xff]
    %v795 = vld [vmem:[%s792 + $0x10] sm:$0xff]
    %v796 = vld [vmem:[%s792 + $0x18] sm:$0xff]
    %s797 = scalar_lea.vmem %s4, 3
    %v798 = vld [vmem:[%s797] sm:$0x1]
    %v800 = vlaneseq
    %v801 = vshrl.u32 %v800, 7
    %v802 = vsub.s32 0, %v801
    %v803 = vrot.slane %v798, %v802
    %805 = vmatprep.subr.mxu0 0.0
    %806 = vmatpush1.msra.mxu0 %v793
    %807 = vmatprep.subr.mxu0 0.0
    %808 = vmatpush1.msra.mxu0 %v794
    %809 = vmatprep.subr.mxu0 0.0
    %810 = vmatpush1.msra.mxu0 %v795
    %811 = vmatprep.subr.mxu0 0.0
    %812 = vmatpush1.msra.mxu0 %v796
    %813 = vmatprep.subr.mxu0 0.0
    %814 = vmatpush1.msra.mxu0 0.0
    %815 = vmatprep.subr.mxu0 0.0
    %816 = vmatpush1.msra.mxu0 0.0
    %817 = vmatprep.subr.mxu0 0.0
    %818 = vmatpush1.msra.mxu0 0.0
    %819 = vmatprep.subr.mxu0 0.0
    %820 = vmatpush1.msra.mxu0 0.0
    %821 = vmatprep.subr.mxu0 0.0
    %822 = vmatpush1.msra.mxu0 0.0
    %823 = vmatprep.subr.mxu0 0.0
    %824 = vmatpush1.msra.mxu0 0.0
    %825 = vmatprep.subr.mxu0 0.0
    %826 = vmatpush1.msra.mxu0 0.0
    %827 = vmatprep.subr.mxu0 0.0
    %828 = vmatpush1.msra.mxu0 0.0
    %829 = vmatprep.subr.mxu0 0.0
    %830 = vmatpush1.msra.mxu0 0.0
    %831 = vmatprep.subr.mxu0 0.0
    %832 = vmatpush1.msra.mxu0 0.0
    %833 = vmatprep.subr.mxu0 0.0
    %834 = vmatpush1.msra.mxu0 0.0
    %835 = vmatprep.subr.mxu0 0.0
    %836 = vmatpush1.msra.mxu0 0.0
    %837 = vmatprep.subr.mxu0 0.0
    %838 = vmatpush1.msra.mxu0 0.0
    %839 = vmatprep.subr.mxu0 0.0
    %840 = vmatpush1.msra.mxu0 0.0
    %841 = vmatprep.subr.mxu0 0.0
    %842 = vmatpush1.msra.mxu0 0.0
    %843 = vmatprep.subr.mxu0 0.0
    %844 = vmatpush1.msra.mxu0 0.0
    %845 = vmatprep.subr.mxu0 0.0
    %846 = vmatpush1.msra.mxu0 0.0
    %847 = vmatprep.subr.mxu0 0.0
    %848 = vmatpush1.msra.mxu0 0.0
    %849 = vmatprep.subr.mxu0 0.0
    %850 = vmatpush1.msra.mxu0 0.0
    %851 = vmatprep.subr.mxu0 0.0
    %852 = vmatpush1.msra.mxu0 0.0
    %853 = vmatprep.subr.mxu0 0.0
    %854 = vmatpush1.msra.mxu0 0.0
    %855 = vmatprep.subr.mxu0 0.0
    %856 = vmatpush1.msra.mxu0 0.0
    %857 = vmatprep.subr.mxu0 0.0
    %858 = vmatpush1.msra.mxu0 0.0
    %859 = vmatprep.subr.mxu0 0.0
    %860 = vmatpush1.msra.mxu0 0.0
    %861 = vmatprep.subr.mxu0 0.0
    %862 = vmatpush1.msra.mxu0 0.0
    %863 = vmatprep.subr.mxu0 0.0
    %864 = vmatpush1.msra.mxu0 0.0
    %865 = vmatprep.subr.mxu0 0.0
    %866 = vmatpush1.msra.mxu0 0.0
    %867 = vmatprep.subr.mxu0 0.0
    %868 = vmatpush1.msra.mxu0 0.0
    %869 = vmatprep.mubr.f32.mxu0 0.0
    %870 = vmatmul.mubr.f32.gmra.mrb[0].mxu0 %v141
    %v871 = vpop.f32.mrb[0].mxu0
    %v872 = vadd.f32 %v803, %v871
    %v873 = vpop.f32.mrb[0].mxu0
    %874 = vmatprep.mubr.f32.mxu0 0.0
    %875 = vmatmul.mubr.f32.gmra.mrb[0].mxu0 %v144
    %v876 = vpop.f32.mrb[0].mxu0
    %v877 = vadd.f32 %v803, %v876
    %v878 = vpop.f32.mrb[0].mxu0
    %879 = vmatprep.mubr.f32.mxu0 0.0
    %880 = vmatmul.mubr.f32.gmra.mrb[0].mxu0 %v147
    %v881 = vpop.f32.mrb[0].mxu0
    %v882 = vadd.f32 %v803, %v881
    %v883 = vpop.f32.mrb[0].mxu0
    %884 = vmatprep.mubr.f32.mxu0 0.0
    %885 = vmatmul.mubr.f32.gmra.mrb[0].mxu0 %v150
    %v886 = vpop.f32.mrb[0].mxu0
    %v887 = vadd.f32 %v803, %v886
    %v888 = vpop.f32.mrb[0].mxu0
    %889 = vdwg.mxu0
    %s890 = scalar_lea.vmem %s3, 160
    %v891 = vld [vmem:[%s890] sm:$0xff]
    %v892 = vld [vmem:[%s890 + $0x8] sm:$0xff]
    %v893 = vld [vmem:[%s890 + $0x10] sm:$0xff]
    %v894 = vld [vmem:[%s890 + $0x18] sm:$0xff]
    %s895 = scalar_lea.vmem %s4, 5
    %v896 = vld [vmem:[%s895] sm:$0x1]
    %v898 = vlaneseq
    %v899 = vshrl.u32 %v898, 7
    %v900 = vsub.s32 0, %v899
    %v901 = vrot.slane %v896, %v900
    %903 = vmatprep.subr.mxu0 0.0
    %904 = vmatpush1.msra.mxu0 %v891
    %905 = vmatprep.subr.mxu0 0.0
    %906 = vmatpush1.msra.mxu0 %v892
    %907 = vmatprep.subr.mxu0 0.0
    %908 = vmatpush1.msra.mxu0 %v893
    %909 = vmatprep.subr.mxu0 0.0
    %910 = vmatpush1.msra.mxu0 %v894
    %911 = vmatprep.subr.mxu0 0.0
    %912 = vmatpush1.msra.mxu0 0.0
    %913 = vmatprep.subr.mxu0 0.0
    %914 = vmatpush1.msra.mxu0 0.0
    %915 = vmatprep.subr.mxu0 0.0
    %916 = vmatpush1.msra.mxu0 0.0
    %917 = vmatprep.subr.mxu0 0.0
    %918 = vmatpush1.msra.mxu0 0.0
    %919 = vmatprep.subr.mxu0 0.0
    %920 = vmatpush1.msra.mxu0 0.0
    %921 = vmatprep.subr.mxu0 0.0
    %922 = vmatpush1.msra.mxu0 0.0
    %923 = vmatprep.subr.mxu0 0.0
    %924 = vmatpush1.msra.mxu0 0.0
    %925 = vmatprep.subr.mxu0 0.0
    %926 = vmatpush1.msra.mxu0 0.0
    %927 = vmatprep.subr.mxu0 0.0
    %928 = vmatpush1.msra.mxu0 0.0
    %929 = vmatprep.subr.mxu0 0.0
    %930 = vmatpush1.msra.mxu0 0.0
    %931 = vmatprep.subr.mxu0 0.0
    %932 = vmatpush1.msra.mxu0 0.0
    %933 = vmatprep.subr.mxu0 0.0
    %934 = vmatpush1.msra.mxu0 0.0
    %935 = vmatprep.subr.mxu0 0.0
    %936 = vmatpush1.msra.mxu0 0.0
    %937 = vmatprep.subr.mxu0 0.0
    %938 = vmatpush1.msra.mxu0 0.0
    %939 = vmatprep.subr.mxu0 0.0
    %940 = vmatpush1.msra.mxu0 0.0
    %941 = vmatprep.subr.mxu0 0.0
    %942 = vmatpush1.msra.mxu0 0.0
    %943 = vmatprep.subr.mxu0 0.0
    %944 = vmatpush1.msra.mxu0 0.0
    %945 = vmatprep.subr.mxu0 0.0
    %946 = vmatpush1.msra.mxu0 0.0
    %947 = vmatprep.subr.mxu0 0.0
    %948 = vmatpush1.msra.mxu0 0.0
    %949 = vmatprep.subr.mxu0 0.0
    %950 = vmatpush1.msra.mxu0 0.0
    %951 = vmatprep.subr.mxu0 0.0
    %952 = vmatpush1.msra.mxu0 0.0
    %953 = vmatprep.subr.mxu0 0.0
    %954 = vmatpush1.msra.mxu0 0.0
    %955 = vmatprep.subr.mxu0 0.0
    %956 = vmatpush1.msra.mxu0 0.0
    %957 = vmatprep.subr.mxu0 0.0
    %958 = vmatpush1.msra.mxu0 0.0
    %959 = vmatprep.subr.mxu0 0.0
    %960 = vmatpush1.msra.mxu0 0.0
    %961 = vmatprep.subr.mxu0 0.0
    %962 = vmatpush1.msra.mxu0 0.0
    %963 = vmatprep.subr.mxu0 0.0
    %964 = vmatpush1.msra.mxu0 0.0
    %965 = vmatprep.subr.mxu0 0.0
    %966 = vmatpush1.msra.mxu0 0.0
    %967 = vmatprep.mubr.f32.mxu0 0.0
    %968 = vmatmul.mubr.f32.gmra.mrb[0].mxu0 %v141
    %v969 = vpop.f32.mrb[0].mxu0
    %v970 = vadd.f32 %v901, %v969
    %v971 = vpop.f32.mrb[0].mxu0
    %972 = vmatprep.mubr.f32.mxu0 0.0
    %973 = vmatmul.mubr.f32.gmra.mrb[0].mxu0 %v144
    %v974 = vpop.f32.mrb[0].mxu0
    %v975 = vadd.f32 %v901, %v974
    %v976 = vpop.f32.mrb[0].mxu0
    %977 = vmatprep.mubr.f32.mxu0 0.0
    %978 = vmatmul.mubr.f32.gmra.mrb[0].mxu0 %v147
    %v979 = vpop.f32.mrb[0].mxu0
    %v980 = vadd.f32 %v901, %v979
    %v981 = vpop.f32.mrb[0].mxu0
    %982 = vmatprep.mubr.f32.mxu0 0.0
    %983 = vmatmul.mubr.f32.gmra.mrb[0].mxu0 %v150
    %v984 = vpop.f32.mrb[0].mxu0
    %v985 = vadd.f32 %v901, %v984
    %v986 = vpop.f32.mrb[0].mxu0
    %987 = vdwg.mxu0
    %v989 = vsel %vm433, %v774, 0
    %v992 = vsel %vm433, %v779, 0
    %v995 = vsel %vm433, %v784, 0
    %v998 = vsel %vm433, %v789, 0
    %v1001 = vsel %vm433, %v872, 0
    %v1004 = vsel %vm433, %v877, 0
    %v1007 = vsel %vm433, %v882, 0
    %v1010 = vsel %vm433, %v887, 0
    %1012 = vmatprep.subr.mxu0 0.0
    %1013 = vmatpush1.xpose.msra.mxu0 %v1001
    %1014 = vmatprep.subr.mxu0 0.0
    %1015 = vmatpush1.xpose.msra.mxu0 %v1004
    %1016 = vmatprep.subr.mxu0 0.0
    %1017 = vmatpush1.xpose.msra.mxu0 %v1007
    %1018 = vmatprep.subr.mxu0 0.0
    %1019 = vmatpush1.xpose.msra.mxu0 %v1010
    %1020 = vmatprep.subr.mxu0 0.0
    %1021 = vmatpush1.xpose.msra.mxu0 0.0
    %1022 = vmatprep.subr.mxu0 0.0
    %1023 = vmatpush1.xpose.msra.mxu0 0.0
    %1024 = vmatprep.subr.mxu0 0.0
    %1025 = vmatpush1.xpose.msra.mxu0 0.0
    %1026 = vmatprep.subr.mxu0 0.0
    %1027 = vmatpush1.xpose.msra.mxu0 0.0
    %1028 = vmatprep.subr.mxu0 0.0
    %1029 = vmatpush1.xpose.msra.mxu0 0.0
    %1030 = vmatprep.subr.mxu0 0.0
    %1031 = vmatpush1.xpose.msra.mxu0 0.0
    %1032 = vmatprep.subr.mxu0 0.0
    %1033 = vmatpush1.xpose.msra.mxu0 0.0
    %1034 = vmatprep.subr.mxu0 0.0
    %1035 = vmatpush1.xpose.msra.mxu0 0.0
    %1036 = vmatprep.subr.mxu0 0.0
    %1037 = vmatpush1.xpose.msra.mxu0 0.0
    %1038 = vmatprep.subr.mxu0 0.0
    %1039 = vmatpush1.xpose.msra.mxu0 0.0
    %1040 = vmatprep.subr.mxu0 0.0
    %1041 = vmatpush1.xpose.msra.mxu0 0.0
    %1042 = vmatprep.subr.mxu0 0.0
    %1043 = vmatpush1.xpose.msra.mxu0 0.0
    %1044 = vmatprep.subr.mxu0 0.0
    %1045 = vmatpush1.xpose.msra.mxu0 0.0
    %1046 = vmatprep.subr.mxu0 0.0
    %1047 = vmatpush1.xpose.msra.mxu0 0.0
    %1048 = vmatprep.subr.mxu0 0.0
    %1049 = vmatpush1.xpose.msra.mxu0 0.0
    %1050 = vmatprep.subr.mxu0 0.0
    %1051 = vmatpush1.xpose.msra.mxu0 0.0
    %1052 = vmatprep.subr.mxu0 0.0
    %1053 = vmatpush1.xpose.msra.mxu0 0.0
    %1054 = vmatprep.subr.mxu0 0.0
    %1055 = vmatpush1.xpose.msra.mxu0 0.0
    %1056 = vmatprep.subr.mxu0 0.0
    %1057 = vmatpush1.xpose.msra.mxu0 0.0
    %1058 = vmatprep.subr.mxu0 0.0
    %1059 = vmatpush1.xpose.msra.mxu0 0.0
    %1060 = vmatprep.subr.mxu0 0.0
    %1061 = vmatpush1.xpose.msra.mxu0 0.0
    %1062 = vmatprep.subr.mxu0 0.0
    %1063 = vmatpush1.xpose.msra.mxu0 0.0
    %1064 = vmatprep.subr.mxu0 0.0
    %1065 = vmatpush1.xpose.msra.mxu0 0.0
    %1066 = vmatprep.subr.mxu0 0.0
    %1067 = vmatpush1.xpose.msra.mxu0 0.0
    %1068 = vmatprep.subr.mxu0 0.0
    %1069 = vmatpush1.xpose.msra.mxu0 0.0
    %1070 = vmatprep.subr.mxu0 0.0
    %1071 = vmatpush1.xpose.msra.mxu0 0.0
    %1072 = vmatprep.subr.mxu0 0.0
    %1073 = vmatpush1.xpose.msra.mxu0 0.0
    %1074 = vmatprep.subr.mxu0 0.0
    %1075 = vmatpush1.xpose.msra.mxu0 0.0
    %1076 = vmatprep.mubr.f32.mxu0 0.0
    %1077 = vmatmul.mubr.f32.gmra.mrb[0].mxu0 %v989
    %v1078 = vpop.f32.mrb[0].mxu0
    %v1079 = vadd.f32 0.0, %v1078
    %v1080 = vpop.f32.mrb[0].mxu0
    %1081 = vmatprep.mubr.f32.mxu0 0.0
    %1082 = vmatmul.mubr.f32.gmra.mrb[0].mxu0 %v992
    %v1083 = vpop.f32.mrb[0].mxu0
    %v1084 = vadd.f32 0.0, %v1083
    %v1085 = vpop.f32.mrb[0].mxu0
    %1086 = vmatprep.mubr.f32.mxu0 0.0
    %1087 = vmatmul.mubr.f32.gmra.mrb[0].mxu0 %v995
    %v1088 = vpop.f32.mrb[0].mxu0
    %v1089 = vadd.f32 0.0, %v1088
    %v1090 = vpop.f32.mrb[0].mxu0
    %1091 = vmatprep.mubr.f32.mxu0 0.0
    %1092 = vmatmul.mubr.f32.gmra.mrb[0].mxu0 %v998
    %v1093 = vpop.f32.mrb[0].mxu0
    %v1094 = vadd.f32 0.0, %v1093
    %v1095 = vpop.f32.mrb[0].mxu0
    %1096 = vdwg.mxu0
    %v1097 = vmul.f32 %v1079, 0.25
    %v1098 = vmul.f32 %v1084, 0.25
    %v1099 = vmul.f32 %v1089, 0.25
    %v1100 = vmul.f32 %v1094, 0.25
    %v1101 = vadd.f32 %v1097, %v48
    %v1102 = vadd.f32 %v1098, %v49
    %v1103 = vadd.f32 %v1099, %v50
    %v1104 = vadd.f32 %v1100, %v51
    %v1105 = vsel %vm58, %v1101, -inf
    %1106 = vmax.xlane.f32.xlu0 %v1105
    %v1107 = vpop.xlane.xlu0 %1106
    %v1108 = vsel %vm58, %v1102, -inf
    %1109 = vmax.xlane.f32.xlu0 %v1108
    %v1110 = vpop.xlane.xlu0 %1109
    %v1111 = vsel %vm58, %v1103, -inf
    %1112 = vmax.xlane.f32.xlu0 %v1111
    %v1113 = vpop.xlane.xlu0 %1112
    %v1114 = vsel %vm58, %v1104, -inf
    %1115 = vmax.xlane.f32.xlu0 %v1114
    %v1116 = vpop.xlane.xlu0 %1115
    %v1117 = vsub.f32 %v1101, %v1107
    %v1118 = vsub.f32 %v1102, %v1110
    %v1119 = vsub.f32 %v1103, %v1113
    %v1120 = vsub.f32 %v1104, %v1116
    %v1121 = vmul.f32 %v1117, 1.442695
    %v1122 = vpow.pop %v1121
    %v1123 = vmul.f32 %v1118, 1.442695
    %v1124 = vpow.pop %v1123
    %v1125 = vmul.f32 %v1119, 1.442695
    %v1126 = vpow.pop %v1125
    %v1127 = vmul.f32 %v1120, 1.442695
    %v1128 = vpow.pop %v1127
    %v1129 = vsel %vm58, %v1122, 0.0
    %1130 = vadd.xlane.f32.xlu0 %v1129
    %v1131 = vpop.xlane.xlu0 %1130
    %v1132 = vsel %vm58, %v1124, 0.0
    %1133 = vadd.xlane.f32.xlu0 %v1132
    %v1134 = vpop.xlane.xlu0 %1133
    %v1135 = vsel %vm58, %v1126, 0.0
    %1136 = vadd.xlane.f32.xlu0 %v1135
    %v1137 = vpop.xlane.xlu0 %1136
    %v1138 = vsel %vm58, %v1128, 0.0
    %1139 = vadd.xlane.f32.xlu0 %v1138
    %v1140 = vpop.xlane.xlu0 %1139
    %v1141 = vrcp.pop %v1131
    %v1142 = vrcp.pop %v1134
    %v1143 = vrcp.pop %v1137
    %v1144 = vrcp.pop %v1140
    %v1145 = vmul.f32 %v1122, %v1141
    %v1146 = vmul.f32 %v1124, %v1142
    %v1147 = vmul.f32 %v1126, %v1143
    %v1148 = vmul.f32 %v1128, %v1144
    %v1150 = vsel %vm58, %v1145, 0
    %v1153 = vsel %vm58, %v1146, 0
    %v1156 = vsel %vm58, %v1147, 0
    %v1159 = vsel %vm58, %v1148, 0
    %1161 = vmatprep.subr.mxu0 0.0
    %1162 = vmatpush1.msra.mxu0 %v970
    %1163 = vmatprep.subr.mxu0 0.0
    %1164 = vmatpush1.msra.mxu0 %v975
    %1165 = vmatprep.subr.mxu0 0.0
    %1166 = vmatpush1.msra.mxu0 %v980
    %1167 = vmatprep.subr.mxu0 0.0
    %1168 = vmatpush1.msra.mxu0 %v985
    %1169 = vmatprep.subr.mxu0 0.0
    %1170 = vmatpush1.msra.mxu0 0.0
    %1171 = vmatprep.subr.mxu0 0.0
    %1172 = vmatpush1.msra.mxu0 0.0
    %1173 = vmatprep.subr.mxu0 0.0
    %1174 = vmatpush1.msra.mxu0 0.0
    %1175 = vmatprep.subr.mxu0 0.0
    %1176 = vmatpush1.msra.mxu0 0.0
    %1177 = vmatprep.subr.mxu0 0.0
    %1178 = vmatpush1.msra.mxu0 0.0
    %1179 = vmatprep.subr.mxu0 0.0
    %1180 = vmatpush1.msra.mxu0 0.0
    %1181 = vmatprep.subr.mxu0 0.0
    %1182 = vmatpush1.msra.mxu0 0.0
    %1183 = vmatprep.subr.mxu0 0.0
    %1184 = vmatpush1.msra.mxu0 0.0
    %1185 = vmatprep.subr.mxu0 0.0
    %1186 = vmatpush1.msra.mxu0 0.0
    %1187 = vmatprep.subr.mxu0 0.0
    %1188 = vmatpush1.msra.mxu0 0.0
    %1189 = vmatprep.subr.mxu0 0.0
    %1190 = vmatpush1.msra.mxu0 0.0
    %1191 = vmatprep.subr.mxu0 0.0
    %1192 = vmatpush1.msra.mxu0 0.0
    %1193 = vmatprep.subr.mxu0 0.0
    %1194 = vmatpush1.msra.mxu0 0.0
    %1195 = vmatprep.subr.mxu0 0.0
    %1196 = vmatpush1.msra.mxu0 0.0
    %1197 = vmatprep.subr.mxu0 0.0
    %1198 = vmatpush1.msra.mxu0 0.0
    %1199 = vmatprep.subr.mxu0 0.0
    %1200 = vmatpush1.msra.mxu0 0.0
    %1201 = vmatprep.subr.mxu0 0.0
    %1202 = vmatpush1.msra.mxu0 0.0
    %1203 = vmatprep.subr.mxu0 0.0
    %1204 = vmatpush1.msra.mxu0 0.0
    %1205 = vmatprep.subr.mxu0 0.0
    %1206 = vmatpush1.msra.mxu0 0.0
    %1207 = vmatprep.subr.mxu0 0.0
    %1208 = vmatpush1.msra.mxu0 0.0
    %1209 = vmatprep.subr.mxu0 0.0
    %1210 = vmatpush1.msra.mxu0 0.0
    %1211 = vmatprep.subr.mxu0 0.0
    %1212 = vmatpush1.msra.mxu0 0.0
    %1213 = vmatprep.subr.mxu0 0.0
    %1214 = vmatpush1.msra.mxu0 0.0
    %1215 = vmatprep.subr.mxu0 0.0
    %1216 = vmatpush1.msra.mxu0 0.0
    %1217 = vmatprep.subr.mxu0 0.0
    %1218 = vmatpush1.msra.mxu0 0.0
    %1219 = vmatprep.subr.mxu0 0.0
    %1220 = vmatpush1.msra.mxu0 0.0
    %1221 = vmatprep.subr.mxu0 0.0
    %1222 = vmatpush1.msra.mxu0 0.0
    %1223 = vmatprep.subr.mxu0 0.0
    %1224 = vmatpush1.msra.mxu0 0.0
    %1225 = vmatprep.mubr.f32.mxu0 0.0
    %1226 = vmatmul.mubr.f32.gmra.mrb[0].mxu0 %v1150
    %v1227 = vpop.f32.mrb[0].mxu0
    %v1228 = vadd.f32 0.0, %v1227
    %v1229 = vpop.f32.mrb[0].mxu0
    %1230 = vmatprep.mubr.f32.mxu0 0.0
    %1231 = vmatmul.mubr.f32.gmra.mrb[0].mxu0 %v1153
    %v1232 = vpop.f32.mrb[0].mxu0
    %v1233 = vadd.f32 0.0, %v1232
    %v1234 = vpop.f32.mrb[0].mxu0
    %1235 = vmatprep.mubr.f32.mxu0 0.0
    %1236 = vmatmul.mubr.f32.gmra.mrb[0].mxu0 %v1156
    %v1237 = vpop.f32.mrb[0].mxu0
    %v1238 = vadd.f32 0.0, %v1237
    %v1239 = vpop.f32.mrb[0].mxu0
    %1240 = vmatprep.mubr.f32.mxu0 0.0
    %1241 = vmatmul.mubr.f32.gmra.mrb[0].mxu0 %v1159
    %v1242 = vpop.f32.mrb[0].mxu0
    %v1243 = vadd.f32 0.0, %v1242
    %v1244 = vpop.f32.mrb[0].mxu0
    %1245 = vdwg.mxu0
    %s1246 = scalar_lea.vmem %s5, 16
    %v1247 = vld [vmem:[%s1246] sm:$0xff]
    %v1248 = vld [vmem:[%s1246 + $0x8] sm:$0xff]
    %v1250 = vsel %vm433, %v1228, 0
    %v1253 = vsel %vm433, %v1233, 0
    %v1256 = vsel %vm433, %v1238, 0
    %v1259 = vsel %vm433, %v1243, 0
    %1261 = vmatprep.subr.mxu0 0.0
    %1262 = vmatpush1.msra.mxu0 %v1247
    %1263 = vmatprep.subr.mxu0 0.0
    %1264 = vmatpush1.msra.mxu0 %v1248
    %1265 = vmatprep.subr.mxu0 0.0
    %1266 = vmatpush1.msra.mxu0 0.0
    %1267 = vmatprep.subr.mxu0 0.0
    %1268 = vmatpush1.msra.mxu0 0.0
    %1269 = vmatprep.subr.mxu0 0.0
    %1270 = vmatpush1.msra.mxu0 0.0
    %1271 = vmatprep.subr.mxu0 0.0
    %1272 = vmatpush1.msra.mxu0 0.0
    %1273 = vmatprep.subr.mxu0 0.0
    %1274 = vmatpush1.msra.mxu0 0.0
    %1275 = vmatprep.subr.mxu0 0.0
    %1276 = vmatpush1.msra.mxu0 0.0
    %1277 = vmatprep.subr.mxu0 0.0
    %1278 = vmatpush1.msra.mxu0 0.0
    %1279 = vmatprep.subr.mxu0 0.0
    %1280 = vmatpush1.msra.mxu0 0.0
    %1281 = vmatprep.subr.mxu0 0.0
    %1282 = vmatpush1.msra.mxu0 0.0
    %1283 = vmatprep.subr.mxu0 0.0
    %1284 = vmatpush1.msra.mxu0 0.0
    %1285 = vmatprep.subr.mxu0 0.0
    %1286 = vmatpush1.msra.mxu0 0.0
    %1287 = vmatprep.subr.mxu0 0.0
    %1288 = vmatpush1.msra.mxu0 0.0
    %1289 = vmatprep.subr.mxu0 0.0
    %1290 = vmatpush1.msra.mxu0 0.0
    %1291 = vmatprep.subr.mxu0 0.0
    %1292 = vmatpush1.msra.mxu0 0.0
    %1293 = vmatprep.subr.mxu0 0.0
    %1294 = vmatpush1.msra.mxu0 0.0
    %1295 = vmatprep.subr.mxu0 0.0
    %1296 = vmatpush1.msra.mxu0 0.0
    %1297 = vmatprep.subr.mxu0 0.0
    %1298 = vmatpush1.msra.mxu0 0.0
    %1299 = vmatprep.subr.mxu0 0.0
    %1300 = vmatpush1.msra.mxu0 0.0
    %1301 = vmatprep.subr.mxu0 0.0
    %1302 = vmatpush1.msra.mxu0 0.0
    %1303 = vmatprep.subr.mxu0 0.0
    %1304 = vmatpush1.msra.mxu0 0.0
    %1305 = vmatprep.subr.mxu0 0.0
    %1306 = vmatpush1.msra.mxu0 0.0
    %1307 = vmatprep.subr.mxu0 0.0
    %1308 = vmatpush1.msra.mxu0 0.0
    %1309 = vmatprep.subr.mxu0 0.0
    %1310 = vmatpush1.msra.mxu0 0.0
    %1311 = vmatprep.subr.mxu0 0.0
    %1312 = vmatpush1.msra.mxu0 0.0
    %1313 = vmatprep.subr.mxu0 0.0
    %1314 = vmatpush1.msra.mxu0 0.0
    %1315 = vmatprep.subr.mxu0 0.0
    %1316 = vmatpush1.msra.mxu0 0.0
    %1317 = vmatprep.subr.mxu0 0.0
    %1318 = vmatpush1.msra.mxu0 0.0
    %1319 = vmatprep.subr.mxu0 0.0
    %1320 = vmatpush1.msra.mxu0 0.0
    %1321 = vmatprep.subr.mxu0 0.0
    %1322 = vmatpush1.msra.mxu0 0.0
    %1323 = vmatprep.subr.mxu0 0.0
    %1324 = vmatpush1.msra.mxu0 0.0
    %1325 = vmatprep.mubr.f32.mxu0 0.0
    %1326 = vmatmul.mubr.f32.gmra.mrb[0].mxu0 %v1250
    %v1327 = vpop.f32.mrb[0].mxu0
    %v1328 = vadd.f32 0.0, %v1327
    %v1329 = vpop.f32.mrb[0].mxu0
    %1330 = vmatprep.mubr.f32.mxu0 0.0
    %1331 = vmatmul.mubr.f32.gmra.mrb[0].mxu0 %v1253
    %v1332 = vpop.f32.mrb[0].mxu0
    %v1333 = vadd.f32 0.0, %v1332
    %v1334 = vpop.f32.mrb[0].mxu0
    %1335 = vmatprep.mubr.f32.mxu0 0.0
    %1336 = vmatmul.mubr.f32.gmra.mrb[0].mxu0 %v1256
    %v1337 = vpop.f32.mrb[0].mxu0
    %v1338 = vadd.f32 0.0, %v1337
    %v1339 = vpop.f32.mrb[0].mxu0
    %1340 = vmatprep.mubr.f32.mxu0 0.0
    %1341 = vmatmul.mubr.f32.gmra.mrb[0].mxu0 %v1259
    %v1342 = vpop.f32.mrb[0].mxu0
    %v1343 = vadd.f32 0.0, %v1342
    %v1344 = vpop.f32.mrb[0].mxu0
    %1345 = vdwg.mxu0
    %v1347 = vsel %vm433, %v674, 0
    %v1350 = vsel %vm433, %v679, 0
    %v1353 = vsel %vm433, %v684, 0
    %v1356 = vsel %vm433, %v689, 0
    %1358 = vmatprep.subr.mxu0 0.0
    %1359 = vmatpush1.msra.mxu0 %v692
    %1360 = vmatprep.subr.mxu0 0.0
    %1361 = vmatpush1.msra.mxu0 %v693
    %1362 = vmatprep.subr.mxu0 0.0
    %1363 = vmatpush1.msra.mxu0 0.0
    %1364 = vmatprep.subr.mxu0 0.0
    %1365 = vmatpush1.msra.mxu0 0.0
    %1366 = vmatprep.subr.mxu0 0.0
    %1367 = vmatpush1.msra.mxu0 0.0
    %1368 = vmatprep.subr.mxu0 0.0
    %1369 = vmatpush1.msra.mxu0 0.0
    %1370 = vmatprep.subr.mxu0 0.0
    %1371 = vmatpush1.msra.mxu0 0.0
    %1372 = vmatprep.subr.mxu0 0.0
    %1373 = vmatpush1.msra.mxu0 0.0
    %1374 = vmatprep.subr.mxu0 0.0
    %1375 = vmatpush1.msra.mxu0 0.0
    %1376 = vmatprep.subr.mxu0 0.0
    %1377 = vmatpush1.msra.mxu0 0.0
    %1378 = vmatprep.subr.mxu0 0.0
    %1379 = vmatpush1.msra.mxu0 0.0
    %1380 = vmatprep.subr.mxu0 0.0
    %1381 = vmatpush1.msra.mxu0 0.0
    %1382 = vmatprep.subr.mxu0 0.0
    %1383 = vmatpush1.msra.mxu0 0.0
    %1384 = vmatprep.subr.mxu0 0.0
    %1385 = vmatpush1.msra.mxu0 0.0
    %1386 = vmatprep.subr.mxu0 0.0
    %1387 = vmatpush1.msra.mxu0 0.0
    %1388 = vmatprep.subr.mxu0 0.0
    %1389 = vmatpush1.msra.mxu0 0.0
    %1390 = vmatprep.subr.mxu0 0.0
    %1391 = vmatpush1.msra.mxu0 0.0
    %1392 = vmatprep.subr.mxu0 0.0
    %1393 = vmatpush1.msra.mxu0 0.0
    %1394 = vmatprep.subr.mxu0 0.0
    %1395 = vmatpush1.msra.mxu0 0.0
    %1396 = vmatprep.subr.mxu0 0.0
    %1397 = vmatpush1.msra.mxu0 0.0
    %1398 = vmatprep.subr.mxu0 0.0
    %1399 = vmatpush1.msra.mxu0 0.0
    %1400 = vmatprep.subr.mxu0 0.0
    %1401 = vmatpush1.msra.mxu0 0.0
    %1402 = vmatprep.subr.mxu0 0.0
    %1403 = vmatpush1.msra.mxu0 0.0
    %1404 = vmatprep.subr.mxu0 0.0
    %1405 = vmatpush1.msra.mxu0 0.0
    %1406 = vmatprep.subr.mxu0 0.0
    %1407 = vmatpush1.msra.mxu0 0.0
    %1408 = vmatprep.subr.mxu0 0.0
    %1409 = vmatpush1.msra.mxu0 0.0
    %1410 = vmatprep.subr.mxu0 0.0
    %1411 = vmatpush1.msra.mxu0 0.0
    %1412 = vmatprep.subr.mxu0 0.0
    %1413 = vmatpush1.msra.mxu0 0.0
    %1414 = vmatprep.subr.mxu0 0.0
    %1415 = vmatpush1.msra.mxu0 0.0
    %1416 = vmatprep.subr.mxu0 0.0
    %1417 = vmatpush1.msra.mxu0 0.0
    %1418 = vmatprep.subr.mxu0 0.0
    %1419 = vmatpush1.msra.mxu0 0.0
    %1420 = vmatprep.subr.mxu0 0.0
    %1421 = vmatpush1.msra.mxu0 0.0
    %1422 = vmatprep.mubr.f32.mxu0 0.0
    %1423 = vmatmul.mubr.f32.gmra.mrb[0].mxu0 %v1347
    %v1424 = vpop.f32.mrb[0].mxu0
    %v1425 = vadd.f32 %v1328, %v1424
    %v1426 = vpop.f32.mrb[0].mxu0
    %1427 = vmatprep.mubr.f32.mxu0 0.0
    %1428 = vmatmul.mubr.f32.gmra.mrb[0].mxu0 %v1350
    %v1429 = vpop.f32.mrb[0].mxu0
    %v1430 = vadd.f32 %v1333, %v1429
    %v1431 = vpop.f32.mrb[0].mxu0
    %1432 = vmatprep.mubr.f32.mxu0 0.0
    %1433 = vmatmul.mubr.f32.gmra.mrb[0].mxu0 %v1353
    %v1434 = vpop.f32.mrb[0].mxu0
    %v1435 = vadd.f32 %v1338, %v1434
    %v1436 = vpop.f32.mrb[0].mxu0
    %1437 = vmatprep.mubr.f32.mxu0 0.0
    %1438 = vmatmul.mubr.f32.gmra.mrb[0].mxu0 %v1356
    %v1439 = vpop.f32.mrb[0].mxu0
    %v1440 = vadd.f32 %v1343, %v1439
    %v1441 = vpop.f32.mrb[0].mxu0
    %1442 = vdwg.mxu0
    %v1443 = vlaneseq
    %v1444 = vshrl.u32 %v1443, 7
    %v1445 = vsub.s32 0, %v1444
    %v1446 = vrot.slane %v128, %v1445
    %v1447 = vadd.f32 %v1425, %v1446
    %v1448 = vadd.f32 %v1430, %v1446
    %v1449 = vadd.f32 %v1435, %v1446
    %v1450 = vadd.f32 %v1440, %v1446
    %v1451 = vadd.f32 %v1447, %v124
    %v1452 = vadd.f32 %v1448, %v125
    %v1453 = vadd.f32 %v1449, %v126
    %v1454 = vadd.f32 %v1450, %v127
    %v1455 = vsel %vm58, %v1451, 0.0
    %1456 = vadd.xlane.f32.xlu0 %v1455
    %v1457 = vpop.xlane.xlu0 %1456
    %v1458 = vsel %vm58, %v1452, 0.0
    %1459 = vadd.xlane.f32.xlu0 %v1458
    %v1460 = vpop.xlane.xlu0 %1459
    %v1461 = vsel %vm58, %v1453, 0.0
    %1462 = vadd.xlane.f32.xlu0 %v1461
    %v1463 = vpop.xlane.xlu0 %1462
    %v1464 = vsel %vm58, %v1454, 0.0
    %1465 = vadd.xlane.f32.xlu0 %v1464
    %v1466 = vpop.xlane.xlu0 %1465
    %v1467 = vmul.f32 %v1457, %v71
    %v1468 = vmul.f32 %v1460, %v71
    %v1469 = vmul.f32 %v1463, %v71
    %v1470 = vmul.f32 %v1466, %v71
    %v1471 = vsub.f32 %v1451, %v1467
    %v1472 = vsub.f32 %v1452, %v1468
    %v1473 = vsub.f32 %v1453, %v1469
    %v1474 = vsub.f32 %v1454, %v1470
    %v1475 = vmul.f32 %v1471, %v1471
    %v1476 = vmul.f32 %v1472, %v1472
    %v1477 = vmul.f32 %v1473, %v1473
    %v1478 = vmul.f32 %v1474, %v1474
    %v1479 = vsel %vm58, %v1475, 0.0
    %1480 = vadd.xlane.f32.xlu0 %v1479
    %v1481 = vpop.xlane.xlu0 %1480
    %v1482 = vsel %vm58, %v1476, 0.0
    %1483 = vadd.xlane.f32.xlu0 %v1482
    %v1484 = vpop.xlane.xlu0 %1483
    %v1485 = vsel %vm58, %v1477, 0.0
    %1486 = vadd.xlane.f32.xlu0 %v1485
    %v1487 = vpop.xlane.xlu0 %1486
    %v1488 = vsel %vm58, %v1478, 0.0
    %1489 = vadd.xlane.f32.xlu0 %v1488
    %v1490 = vpop.xlane.xlu0 %1489
    %v1491 = vmul.f32 %v1481, %v71
    %v1492 = vmul.f32 %v1484, %v71
    %v1493 = vmul.f32 %v1487, %v71
    %v1494 = vmul.f32 %v1490, %v71
    %v1495 = vadd.f32 %v1491, 1e-12
    %v1496 = vadd.f32 %v1492, 1e-12
    %v1497 = vadd.f32 %v1493, 1e-12
    %v1498 = vadd.f32 %v1494, 1e-12
    %v1499 = vrsqrt.pop %v1495
    %v1500 = vrsqrt.pop %v1496
    %v1501 = vrsqrt.pop %v1497
    %v1502 = vrsqrt.pop %v1498
    %v1503 = vmul.f32 %v1471, %v1499
    %v1504 = vmul.f32 %v1472, %v1500
    %v1505 = vmul.f32 %v1473, %v1501
    %v1506 = vmul.f32 %v1474, %v1502
    %v1507 = vlaneseq
    %v1508 = vshrl.u32 %v1507, 7
    %v1509 = vsub.s32 1, %v1508
    %v1510 = vrot.slane %v128, %v1509
    %v1511 = vmul.f32 %v1503, %v1510
    %v1512 = vmul.f32 %v1504, %v1510
    %v1513 = vmul.f32 %v1505, %v1510
    %v1514 = vmul.f32 %v1506, %v1510
    %v1515 = vlaneseq
    %v1516 = vshrl.u32 %v1515, 7
    %v1517 = vsub.s32 2, %v1516
    %v1518 = vrot.slane %v128, %v1517
    %v1519 = vadd.f32 %v1511, %v1518
    %v1520 = vadd.f32 %v1512, %v1518
    %v1521 = vadd.f32 %v1513, %v1518
    %v1522 = vadd.f32 %v1514, %v1518
    %v1523 = vld [vmem:[%s7] sm:$0xff]
    %v1524 = vld [vmem:[%s7 + $0x8] sm:$0xff]
    %v1525 = vld [vmem:[%s7 + $0x10] sm:$0xff]
    %v1526 = vld [vmem:[%s7 + $0x18] sm:$0xff]
    %v1527 = vld [vmem:[%s8] sm:$0x1]
    %v1529 = vlaneseq
    %v1530 = vshrl.u32 %v1529, 7
    %v1531 = vsub.s32 0, %v1530
    %v1532 = vrot.slane %v1527, %v1531
    %v1535 = vsel %vm58, %v1519, 0
    %v1538 = vsel %vm58, %v1520, 0
    %v1541 = vsel %vm58, %v1521, 0
    %v1544 = vsel %vm58, %v1522, 0
    %1546 = vmatprep.subr.mxu0 0.0
    %1547 = vmatpush1.msra.mxu0 %v1523
    %1548 = vmatprep.subr.mxu0 0.0
    %1549 = vmatpush1.msra.mxu0 %v1524
    %1550 = vmatprep.subr.mxu0 0.0
    %1551 = vmatpush1.msra.mxu0 %v1525
    %1552 = vmatprep.subr.mxu0 0.0
    %1553 = vmatpush1.msra.mxu0 %v1526
    %1554 = vmatprep.subr.mxu0 0.0
    %1555 = vmatpush1.msra.mxu0 0.0
    %1556 = vmatprep.subr.mxu0 0.0
    %1557 = vmatpush1.msra.mxu0 0.0
    %1558 = vmatprep.subr.mxu0 0.0
    %1559 = vmatpush1.msra.mxu0 0.0
    %1560 = vmatprep.subr.mxu0 0.0
    %1561 = vmatpush1.msra.mxu0 0.0
    %1562 = vmatprep.subr.mxu0 0.0
    %1563 = vmatpush1.msra.mxu0 0.0
    %1564 = vmatprep.subr.mxu0 0.0
    %1565 = vmatpush1.msra.mxu0 0.0
    %1566 = vmatprep.subr.mxu0 0.0
    %1567 = vmatpush1.msra.mxu0 0.0
    %1568 = vmatprep.subr.mxu0 0.0
    %1569 = vmatpush1.msra.mxu0 0.0
    %1570 = vmatprep.subr.mxu0 0.0
    %1571 = vmatpush1.msra.mxu0 0.0
    %1572 = vmatprep.subr.mxu0 0.0
    %1573 = vmatpush1.msra.mxu0 0.0
    %1574 = vmatprep.subr.mxu0 0.0
    %1575 = vmatpush1.msra.mxu0 0.0
    %1576 = vmatprep.subr.mxu0 0.0
    %1577 = vmatpush1.msra.mxu0 0.0
    %1578 = vmatprep.subr.mxu0 0.0
    %1579 = vmatpush1.msra.mxu0 0.0
    %1580 = vmatprep.subr.mxu0 0.0
    %1581 = vmatpush1.msra.mxu0 0.0
    %1582 = vmatprep.subr.mxu0 0.0
    %1583 = vmatpush1.msra.mxu0 0.0
    %1584 = vmatprep.subr.mxu0 0.0
    %1585 = vmatpush1.msra.mxu0 0.0
    %1586 = vmatprep.subr.mxu0 0.0
    %1587 = vmatpush1.msra.mxu0 0.0
    %1588 = vmatprep.subr.mxu0 0.0
    %1589 = vmatpush1.msra.mxu0 0.0
    %1590 = vmatprep.subr.mxu0 0.0
    %1591 = vmatpush1.msra.mxu0 0.0
    %1592 = vmatprep.subr.mxu0 0.0
    %1593 = vmatpush1.msra.mxu0 0.0
    %1594 = vmatprep.subr.mxu0 0.0
    %1595 = vmatpush1.msra.mxu0 0.0
    %1596 = vmatprep.subr.mxu0 0.0
    %1597 = vmatpush1.msra.mxu0 0.0
    %1598 = vmatprep.subr.mxu0 0.0
    %1599 = vmatpush1.msra.mxu0 0.0
    %1600 = vmatprep.subr.mxu0 0.0
    %1601 = vmatpush1.msra.mxu0 0.0
    %1602 = vmatprep.subr.mxu0 0.0
    %1603 = vmatpush1.msra.mxu0 0.0
    %1604 = vmatprep.subr.mxu0 0.0
    %1605 = vmatpush1.msra.mxu0 0.0
    %1606 = vmatprep.subr.mxu0 0.0
    %1607 = vmatpush1.msra.mxu0 0.0
    %1608 = vmatprep.subr.mxu0 0.0
    %1609 = vmatpush1.msra.mxu0 0.0
    %1610 = vmatprep.mubr.f32.mxu0 0.0
    %1611 = vmatmul.mubr.f32.gmra.mrb[0].mxu0 %v1535
    %v1612 = vpop.f32.mrb[0].mxu0
    %v1613 = vadd.f32 %v1532, %v1612
    %v1614 = vpop.f32.mrb[0].mxu0
    %1615 = vmatprep.mubr.f32.mxu0 0.0
    %1616 = vmatmul.mubr.f32.gmra.mrb[0].mxu0 %v1538
    %v1617 = vpop.f32.mrb[0].mxu0
    %v1618 = vadd.f32 %v1532, %v1617
    %v1619 = vpop.f32.mrb[0].mxu0
    %1620 = vmatprep.mubr.f32.mxu0 0.0
    %1621 = vmatmul.mubr.f32.gmra.mrb[0].mxu0 %v1541
    %v1622 = vpop.f32.mrb[0].mxu0
    %v1623 = vadd.f32 %v1532, %v1622
    %v1624 = vpop.f32.mrb[0].mxu0
    %1625 = vmatprep.mubr.f32.mxu0 0.0
    %1626 = vmatmul.mubr.f32.gmra.mrb[0].mxu0 %v1544
    %v1627 = vpop.f32.mrb[0].mxu0
    %v1628 = vadd.f32 %v1532, %v1627
    %v1629 = vpop.f32.mrb[0].mxu0
    %1630 = vdwg.mxu0
    %v1631 = vmul.f32 %v1613, %v1613
    %v1632 = vmul.f32 %v1618, %v1618
    %v1633 = vmul.f32 %v1623, %v1623
    %v1634 = vmul.f32 %v1628, %v1628
    %v1635 = vmul.f32 %v1613, %v1631
    %v1636 = vmul.f32 %v1618, %v1632
    %v1637 = vmul.f32 %v1623, %v1633
    %v1638 = vmul.f32 %v1628, %v1634
    %v1639 = vmul.f32 %v1635, 0.044715
    %v1640 = vmul.f32 %v1636, 0.044715
    %v1641 = vmul.f32 %v1637, 0.044715
    %v1642 = vmul.f32 %v1638, 0.044715
    %v1643 = vadd.f32 %v1613, %v1639
    %v1644 = vadd.f32 %v1618, %v1640
    %v1645 = vadd.f32 %v1623, %v1641
    %v1646 = vadd.f32 %v1628, %v1642
    %v1647 = vmul.f32 %v1643, 0.7978846
    %v1648 = vmul.f32 %v1644, 0.7978846
    %v1649 = vmul.f32 %v1645, 0.7978846
    %v1650 = vmul.f32 %v1646, 0.7978846
    %v1651 = vtanh.pop %v1647
    %v1652 = vtanh.pop %v1648
    %v1653 = vtanh.pop %v1649
    %v1654 = vtanh.pop %v1650
    %v1655 = vadd.f32 %v1651, 1.0
    %v1656 = vadd.f32 %v1652, 1.0
    %v1657 = vadd.f32 %v1653, 1.0
    %v1658 = vadd.f32 %v1654, 1.0
    %v1659 = vmul.f32 %v1655, 0.5
    %v1660 = vmul.f32 %v1656, 0.5
    %v1661 = vmul.f32 %v1657, 0.5
    %v1662 = vmul.f32 %v1658, 0.5
    %v1663 = vmul.f32 %v1613, %v1659
    %v1664 = vmul.f32 %v1618, %v1660
    %v1665 = vmul.f32 %v1623, %v1661
    %v1666 = vmul.f32 %v1628, %v1662
    %v1667 = vld [vmem:[%s9] sm:$0xff]
    %v1668 = vld [vmem:[%s9 + $0x8] sm:$0xff]
    %v1669 = vld [vmem:[%s9 + $0x10] sm:$0xff]
    %v1670 = vld [vmem:[%s9 + $0x18] sm:$0xff]
    %v1671 = vld [vmem:[%s9 + $0x20] sm:$0xff]
    %v1672 = vld [vmem:[%s9 + $0x28] sm:$0xff]
    %v1673 = vld [vmem:[%s9 + $0x30] sm:$0xff]
    %v1674 = vld [vmem:[%s9 + $0x38] sm:$0xff]
    %v1675 = vlaneseq
    %v1676 = vshrl.u32 %v1675, 7
    %v1677 = vsub.s32 3, %v1676
    %v1678 = vrot.slane %v128, %v1677
    %vm1679 = vcmask 523264
    %v1681 = vsel %vm1679, %v1663, 0
    %v1684 = vsel %vm1679, %v1664, 0
    %v1687 = vsel %vm1679, %v1665, 0
    %v1690 = vsel %vm1679, %v1666, 0
    %1692 = vmatprep.subr.mxu0 0.0
    %1693 = vmatpush1.msra.mxu0 %v1667
    %1694 = vmatprep.subr.mxu0 0.0
    %1695 = vmatpush1.msra.mxu0 %v1668
    %1696 = vmatprep.subr.mxu0 0.0
    %1697 = vmatpush1.msra.mxu0 %v1669
    %1698 = vmatprep.subr.mxu0 0.0
    %1699 = vmatpush1.msra.mxu0 %v1670
    %1700 = vmatprep.subr.mxu0 0.0
    %1701 = vmatpush1.msra.mxu0 %v1671
    %1702 = vmatprep.subr.mxu0 0.0
    %1703 = vmatpush1.msra.mxu0 %v1672
    %1704 = vmatprep.subr.mxu0 0.0
    %1705 = vmatpush1.msra.mxu0 %v1673
    %1706 = vmatprep.subr.mxu0 0.0
    %1707 = vmatpush1.msra.mxu0 %v1674
    %1708 = vmatprep.subr.mxu0 0.0
    %1709 = vmatpush1.msra.mxu0 0.0
    %1710 = vmatprep.subr.mxu0 0.0
    %1711 = vmatpush1.msra.mxu0 0.0
    %1712 = vmatprep.subr.mxu0 0.0
    %1713 = vmatpush1.msra.mxu0 0.0
    %1714 = vmatprep.subr.mxu0 0.0
    %1715 = vmatpush1.msra.mxu0 0.0
    %1716 = vmatprep.subr.mxu0 0.0
    %1717 = vmatpush1.msra.mxu0 0.0
    %1718 = vmatprep.subr.mxu0 0.0
    %1719 = vmatpush1.msra.mxu0 0.0
    %1720 = vmatprep.subr.mxu0 0.0
    %1721 = vmatpush1.msra.mxu0 0.0
    %1722 = vmatprep.subr.mxu0 0.0
    %1723 = vmatpush1.msra.mxu0 0.0
    %1724 = vmatprep.subr.mxu0 0.0
    %1725 = vmatpush1.msra.mxu0 0.0
    %1726 = vmatprep.subr.mxu0 0.0
    %1727 = vmatpush1.msra.mxu0 0.0
    %1728 = vmatprep.subr.mxu0 0.0
    %1729 = vmatpush1.msra.mxu0 0.0
    %1730 = vmatprep.subr.mxu0 0.0
    %1731 = vmatpush1.msra.mxu0 0.0
    %1732 = vmatprep.subr.mxu0 0.0
    %1733 = vmatpush1.msra.mxu0 0.0
    %1734 = vmatprep.subr.mxu0 0.0
    %1735 = vmatpush1.msra.mxu0 0.0
    %1736 = vmatprep.subr.mxu0 0.0
    %1737 = vmatpush1.msra.mxu0 0.0
    %1738 = vmatprep.subr.mxu0 0.0
    %1739 = vmatpush1.msra.mxu0 0.0
    %1740 = vmatprep.subr.mxu0 0.0
    %1741 = vmatpush1.msra.mxu0 0.0
    %1742 = vmatprep.subr.mxu0 0.0
    %1743 = vmatpush1.msra.mxu0 0.0
    %1744 = vmatprep.subr.mxu0 0.0
    %1745 = vmatpush1.msra.mxu0 0.0
    %1746 = vmatprep.subr.mxu0 0.0
    %1747 = vmatpush1.msra.mxu0 0.0
    %1748 = vmatprep.subr.mxu0 0.0
    %1749 = vmatpush1.msra.mxu0 0.0
    %1750 = vmatprep.subr.mxu0 0.0
    %1751 = vmatpush1.msra.mxu0 0.0
    %1752 = vmatprep.subr.mxu0 0.0
    %1753 = vmatpush1.msra.mxu0 0.0
    %1754 = vmatprep.subr.mxu0 0.0
    %1755 = vmatpush1.msra.mxu0 0.0
    %1756 = vmatprep.mubr.f32.mxu0 0.0
    %1757 = vmatmul.mubr.f32.gmra.mrb[0].mxu0 %v1681
    %v1758 = vpop.f32.mrb[0].mxu0
    %v1759 = vadd.f32 %v1678, %v1758
    %v1760 = vpop.f32.mrb[0].mxu0
    %1761 = vmatprep.mubr.f32.mxu0 0.0
    %1762 = vmatmul.mubr.f32.gmra.mrb[0].mxu0 %v1684
    %v1763 = vpop.f32.mrb[0].mxu0
    %v1764 = vadd.f32 %v1678, %v1763
    %v1765 = vpop.f32.mrb[0].mxu0
    %1766 = vmatprep.mubr.f32.mxu0 0.0
    %1767 = vmatmul.mubr.f32.gmra.mrb[0].mxu0 %v1687
    %v1768 = vpop.f32.mrb[0].mxu0
    %v1769 = vadd.f32 %v1678, %v1768
    %v1770 = vpop.f32.mrb[0].mxu0
    %1771 = vmatprep.mubr.f32.mxu0 0.0
    %1772 = vmatmul.mubr.f32.gmra.mrb[0].mxu0 %v1690
    %v1773 = vpop.f32.mrb[0].mxu0
    %v1774 = vadd.f32 %v1678, %v1773
    %v1775 = vpop.f32.mrb[0].mxu0
    %1776 = vdwg.mxu0
    %v1777 = vadd.f32 %v1759, %v1519
    %v1778 = vadd.f32 %v1764, %v1520
    %v1779 = vadd.f32 %v1769, %v1521
    %v1780 = vadd.f32 %v1774, %v1522
    %v1781 = vsel %vm58, %v1777, 0.0
    %1782 = vadd.xlane.f32.xlu0 %v1781
    %v1783 = vpop.xlane.xlu0 %1782
    %v1784 = vsel %vm58, %v1778, 0.0
    %1785 = vadd.xlane.f32.xlu0 %v1784
    %v1786 = vpop.xlane.xlu0 %1785
    %v1787 = vsel %vm58, %v1779, 0.0
    %1788 = vadd.xlane.f32.xlu0 %v1787
    %v1789 = vpop.xlane.xlu0 %1788
    %v1790 = vsel %vm58, %v1780, 0.0
    %1791 = vadd.xlane.f32.xlu0 %v1790
    %v1792 = vpop.xlane.xlu0 %1791
    %v1793 = vmul.f32 %v1783, %v71
    %v1794 = vmul.f32 %v1786, %v71
    %v1795 = vmul.f32 %v1789, %v71
    %v1796 = vmul.f32 %v1792, %v71
    %v1797 = vsub.f32 %v1777, %v1793
    %v1798 = vsub.f32 %v1778, %v1794
    %v1799 = vsub.f32 %v1779, %v1795
    %v1800 = vsub.f32 %v1780, %v1796
    %v1801 = vmul.f32 %v1797, %v1797
    %v1802 = vmul.f32 %v1798, %v1798
    %v1803 = vmul.f32 %v1799, %v1799
    %v1804 = vmul.f32 %v1800, %v1800
    %v1805 = vsel %vm58, %v1801, 0.0
    %1806 = vadd.xlane.f32.xlu0 %v1805
    %v1807 = vpop.xlane.xlu0 %1806
    %v1808 = vsel %vm58, %v1802, 0.0
    %1809 = vadd.xlane.f32.xlu0 %v1808
    %v1810 = vpop.xlane.xlu0 %1809
    %v1811 = vsel %vm58, %v1803, 0.0
    %1812 = vadd.xlane.f32.xlu0 %v1811
    %v1813 = vpop.xlane.xlu0 %1812
    %v1814 = vsel %vm58, %v1804, 0.0
    %1815 = vadd.xlane.f32.xlu0 %v1814
    %v1816 = vpop.xlane.xlu0 %1815
    %v1817 = vmul.f32 %v1807, %v71
    %v1818 = vmul.f32 %v1810, %v71
    %v1819 = vmul.f32 %v1813, %v71
    %v1820 = vmul.f32 %v1816, %v71
    %v1821 = vadd.f32 %v1817, 1e-12
    %v1822 = vadd.f32 %v1818, 1e-12
    %v1823 = vadd.f32 %v1819, 1e-12
    %v1824 = vadd.f32 %v1820, 1e-12
    %v1825 = vrsqrt.pop %v1821
    %v1826 = vrsqrt.pop %v1822
    %v1827 = vrsqrt.pop %v1823
    %v1828 = vrsqrt.pop %v1824
    %v1829 = vmul.f32 %v1797, %v1825
    %v1830 = vmul.f32 %v1798, %v1826
    %v1831 = vmul.f32 %v1799, %v1827
    %v1832 = vmul.f32 %v1800, %v1828
    %v1833 = vlaneseq
    %v1834 = vshrl.u32 %v1833, 7
    %v1835 = vsub.s32 4, %v1834
    %v1836 = vrot.slane %v128, %v1835
    %v1837 = vmul.f32 %v1829, %v1836
    %v1838 = vmul.f32 %v1830, %v1836
    %v1839 = vmul.f32 %v1831, %v1836
    %v1840 = vmul.f32 %v1832, %v1836
    %v1841 = vlaneseq
    %v1842 = vshrl.u32 %v1841, 7
    %v1843 = vsub.s32 5, %v1842
    %v1844 = vrot.slane %v128, %v1843
    %v1845 = vadd.f32 %v1837, %v1844
    %v1846 = vadd.f32 %v1838, %v1844
    %v1847 = vadd.f32 %v1839, %v1844
    %v1848 = vadd.f32 %v1840, %v1844
    %s1849 = scalar_lea.vmem %s6, 8
    %v1850 = vld [vmem:[%s1849] sm:$0xff]
    %s1851 = scalar_lea.vmem %s3, 192
    %v1852 = vld [vmem:[%s1851] sm:$0xff]
    %v1853 = vld [vmem:[%s1851 + $0x8] sm:$0xff]
    %v1854 = vld [vmem:[%s1851 + $0x10] sm:$0xff]
    %v1855 = vld [vmem:[%s1851 + $0x18] sm:$0xff]
    %s1856 = scalar_lea.vmem %s4, 6
    %v1857 = vld [vmem:[%s1856] sm:$0x1]
    %v1859 = vlaneseq
    %v1860 = vshrl.u32 %v1859, 7
    %v1861 = vsub.s32 0, %v1860
    %v1862 = vrot.slane %v1857, %v1861
    %v1865 = vsel %vm58, %v1845, 0
    %v1868 = vsel %vm58, %v1846, 0
    %v1871 = vsel %vm58, %v1847, 0
    %v1874 = vsel %vm58, %v1848, 0
    %1876 = vmatprep.subr.mxu0 0.0
    %1877 = vmatpush1.msra.mxu0 %v1852
    %1878 = vmatprep.subr.mxu0 0.0
    %1879 = vmatpush1.msra.mxu0 %v1853
    %1880 = vmatprep.subr.mxu0 0.0
    %1881 = vmatpush1.msra.mxu0 %v1854
    %1882 = vmatprep.subr.mxu0 0.0
    %1883 = vmatpush1.msra.mxu0 %v1855
    %1884 = vmatprep.subr.mxu0 0.0
    %1885 = vmatpush1.msra.mxu0 0.0
    %1886 = vmatprep.subr.mxu0 0.0
    %1887 = vmatpush1.msra.mxu0 0.0
    %1888 = vmatprep.subr.mxu0 0.0
    %1889 = vmatpush1.msra.mxu0 0.0
    %1890 = vmatprep.subr.mxu0 0.0
    %1891 = vmatpush1.msra.mxu0 0.0
    %1892 = vmatprep.subr.mxu0 0.0
    %1893 = vmatpush1.msra.mxu0 0.0
    %1894 = vmatprep.subr.mxu0 0.0
    %1895 = vmatpush1.msra.mxu0 0.0
    %1896 = vmatprep.subr.mxu0 0.0
    %1897 = vmatpush1.msra.mxu0 0.0
    %1898 = vmatprep.subr.mxu0 0.0
    %1899 = vmatpush1.msra.mxu0 0.0
    %1900 = vmatprep.subr.mxu0 0.0
    %1901 = vmatpush1.msra.mxu0 0.0
    %1902 = vmatprep.subr.mxu0 0.0
    %1903 = vmatpush1.msra.mxu0 0.0
    %1904 = vmatprep.subr.mxu0 0.0
    %1905 = vmatpush1.msra.mxu0 0.0
    %1906 = vmatprep.subr.mxu0 0.0
    %1907 = vmatpush1.msra.mxu0 0.0
    %1908 = vmatprep.subr.mxu0 0.0
    %1909 = vmatpush1.msra.mxu0 0.0
    %1910 = vmatprep.subr.mxu0 0.0
    %1911 = vmatpush1.msra.mxu0 0.0
    %1912 = vmatprep.subr.mxu0 0.0
    %1913 = vmatpush1.msra.mxu0 0.0
    %1914 = vmatprep.subr.mxu0 0.0
    %1915 = vmatpush1.msra.mxu0 0.0
    %1916 = vmatprep.subr.mxu0 0.0
    %1917 = vmatpush1.msra.mxu0 0.0
    %1918 = vmatprep.subr.mxu0 0.0
    %1919 = vmatpush1.msra.mxu0 0.0
    %1920 = vmatprep.subr.mxu0 0.0
    %1921 = vmatpush1.msra.mxu0 0.0
    %1922 = vmatprep.subr.mxu0 0.0
    %1923 = vmatpush1.msra.mxu0 0.0
    %1924 = vmatprep.subr.mxu0 0.0
    %1925 = vmatpush1.msra.mxu0 0.0
    %1926 = vmatprep.subr.mxu0 0.0
    %1927 = vmatpush1.msra.mxu0 0.0
    %1928 = vmatprep.subr.mxu0 0.0
    %1929 = vmatpush1.msra.mxu0 0.0
    %1930 = vmatprep.subr.mxu0 0.0
    %1931 = vmatpush1.msra.mxu0 0.0
    %1932 = vmatprep.subr.mxu0 0.0
    %1933 = vmatpush1.msra.mxu0 0.0
    %1934 = vmatprep.subr.mxu0 0.0
    %1935 = vmatpush1.msra.mxu0 0.0
    %1936 = vmatprep.subr.mxu0 0.0
    %1937 = vmatpush1.msra.mxu0 0.0
    %1938 = vmatprep.subr.mxu0 0.0
    %1939 = vmatpush1.msra.mxu0 0.0
    %1940 = vmatprep.mubr.f32.mxu0 0.0
    %1941 = vmatmul.mubr.f32.gmra.mrb[0].mxu0 %v1865
    %v1942 = vpop.f32.mrb[0].mxu0
    %v1943 = vadd.f32 %v1862, %v1942
    %v1944 = vpop.f32.mrb[0].mxu0
    %1945 = vmatprep.mubr.f32.mxu0 0.0
    %1946 = vmatmul.mubr.f32.gmra.mrb[0].mxu0 %v1868
    %v1947 = vpop.f32.mrb[0].mxu0
    %v1948 = vadd.f32 %v1862, %v1947
    %v1949 = vpop.f32.mrb[0].mxu0
    %1950 = vmatprep.mubr.f32.mxu0 0.0
    %1951 = vmatmul.mubr.f32.gmra.mrb[0].mxu0 %v1871
    %v1952 = vpop.f32.mrb[0].mxu0
    %v1953 = vadd.f32 %v1862, %v1952
    %v1954 = vpop.f32.mrb[0].mxu0
    %1955 = vmatprep.mubr.f32.mxu0 0.0
    %1956 = vmatmul.mubr.f32.gmra.mrb[0].mxu0 %v1874
    %v1957 = vpop.f32.mrb[0].mxu0
    %v1958 = vadd.f32 %v1862, %v1957
    %v1959 = vpop.f32.mrb[0].mxu0
    %1960 = vdwg.mxu0
    %s1961 = scalar_lea.vmem %s3, 256
    %v1962 = vld [vmem:[%s1961] sm:$0xff]
    %v1963 = vld [vmem:[%s1961 + $0x8] sm:$0xff]
    %v1964 = vld [vmem:[%s1961 + $0x10] sm:$0xff]
    %v1965 = vld [vmem:[%s1961 + $0x18] sm:$0xff]
    %s1966 = scalar_lea.vmem %s4, 8
    %v1967 = vld [vmem:[%s1966] sm:$0x1]
    %v1969 = vlaneseq
    %v1970 = vshrl.u32 %v1969, 7
    %v1971 = vsub.s32 0, %v1970
    %v1972 = vrot.slane %v1967, %v1971
    %1974 = vmatprep.subr.mxu0 0.0
    %1975 = vmatpush1.msra.mxu0 %v1962
    %1976 = vmatprep.subr.mxu0 0.0
    %1977 = vmatpush1.msra.mxu0 %v1963
    %1978 = vmatprep.subr.mxu0 0.0
    %1979 = vmatpush1.msra.mxu0 %v1964
    %1980 = vmatprep.subr.mxu0 0.0
    %1981 = vmatpush1.msra.mxu0 %v1965
    %1982 = vmatprep.subr.mxu0 0.0
    %1983 = vmatpush1.msra.mxu0 0.0
    %1984 = vmatprep.subr.mxu0 0.0
    %1985 = vmatpush1.msra.mxu0 0.0
    %1986 = vmatprep.subr.mxu0 0.0
    %1987 = vmatpush1.msra.mxu0 0.0
    %1988 = vmatprep.subr.mxu0 0.0
    %1989 = vmatpush1.msra.mxu0 0.0
    %1990 = vmatprep.subr.mxu0 0.0
    %1991 = vmatpush1.msra.mxu0 0.0
    %1992 = vmatprep.subr.mxu0 0.0
    %1993 = vmatpush1.msra.mxu0 0.0
    %1994 = vmatprep.subr.mxu0 0.0
    %1995 = vmatpush1.msra.mxu0 0.0
    %1996 = vmatprep.subr.mxu0 0.0
    %1997 = vmatpush1.msra.mxu0 0.0
    %1998 = vmatprep.subr.mxu0 0.0
    %1999 = vmatpush1.msra.mxu0 0.0
    %2000 = vmatprep.subr.mxu0 0.0
    %2001 = vmatpush1.msra.mxu0 0.0
    %2002 = vmatprep.subr.mxu0 0.0
    %2003 = vmatpush1.msra.mxu0 0.0
    %2004 = vmatprep.subr.mxu0 0.0
    %2005 = vmatpush1.msra.mxu0 0.0
    %2006 = vmatprep.subr.mxu0 0.0
    %2007 = vmatpush1.msra.mxu0 0.0
    %2008 = vmatprep.subr.mxu0 0.0
    %2009 = vmatpush1.msra.mxu0 0.0
    %2010 = vmatprep.subr.mxu0 0.0
    %2011 = vmatpush1.msra.mxu0 0.0
    %2012 = vmatprep.subr.mxu0 0.0
    %2013 = vmatpush1.msra.mxu0 0.0
    %2014 = vmatprep.subr.mxu0 0.0
    %2015 = vmatpush1.msra.mxu0 0.0
    %2016 = vmatprep.subr.mxu0 0.0
    %2017 = vmatpush1.msra.mxu0 0.0
    %2018 = vmatprep.subr.mxu0 0.0
    %2019 = vmatpush1.msra.mxu0 0.0
    %2020 = vmatprep.subr.mxu0 0.0
    %2021 = vmatpush1.msra.mxu0 0.0
    %2022 = vmatprep.subr.mxu0 0.0
    %2023 = vmatpush1.msra.mxu0 0.0
    %2024 = vmatprep.subr.mxu0 0.0
    %2025 = vmatpush1.msra.mxu0 0.0
    %2026 = vmatprep.subr.mxu0 0.0
    %2027 = vmatpush1.msra.mxu0 0.0
    %2028 = vmatprep.subr.mxu0 0.0
    %2029 = vmatpush1.msra.mxu0 0.0
    %2030 = vmatprep.subr.mxu0 0.0
    %2031 = vmatpush1.msra.mxu0 0.0
    %2032 = vmatprep.subr.mxu0 0.0
    %2033 = vmatpush1.msra.mxu0 0.0
    %2034 = vmatprep.subr.mxu0 0.0
    %2035 = vmatpush1.msra.mxu0 0.0
    %2036 = vmatprep.subr.mxu0 0.0
    %2037 = vmatpush1.msra.mxu0 0.0
    %2038 = vmatprep.mubr.f32.mxu0 0.0
    %2039 = vmatmul.mubr.f32.gmra.mrb[0].mxu0 %v1865
    %v2040 = vpop.f32.mrb[0].mxu0
    %v2041 = vadd.f32 %v1972, %v2040
    %v2042 = vpop.f32.mrb[0].mxu0
    %2043 = vmatprep.mubr.f32.mxu0 0.0
    %2044 = vmatmul.mubr.f32.gmra.mrb[0].mxu0 %v1868
    %v2045 = vpop.f32.mrb[0].mxu0
    %v2046 = vadd.f32 %v1972, %v2045
    %v2047 = vpop.f32.mrb[0].mxu0
    %2048 = vmatprep.mubr.f32.mxu0 0.0
    %2049 = vmatmul.mubr.f32.gmra.mrb[0].mxu0 %v1871
    %v2050 = vpop.f32.mrb[0].mxu0
    %v2051 = vadd.f32 %v1972, %v2050
    %v2052 = vpop.f32.mrb[0].mxu0
    %2053 = vmatprep.mubr.f32.mxu0 0.0
    %2054 = vmatmul.mubr.f32.gmra.mrb[0].mxu0 %v1874
    %v2055 = vpop.f32.mrb[0].mxu0
    %v2056 = vadd.f32 %v1972, %v2055
    %v2057 = vpop.f32.mrb[0].mxu0
    %2058 = vdwg.mxu0
    %s2059 = scalar_lea.vmem %s3, 320
    %v2060 = vld [vmem:[%s2059] sm:$0xff]
    %v2061 = vld [vmem:[%s2059 + $0x8] sm:$0xff]
    %v2062 = vld [vmem:[%s2059 + $0x10] sm:$0xff]
    %v2063 = vld [vmem:[%s2059 + $0x18] sm:$0xff]
    %s2064 = scalar_lea.vmem %s4, 10
    %v2065 = vld [vmem:[%s2064] sm:$0x1]
    %v2067 = vlaneseq
    %v2068 = vshrl.u32 %v2067, 7
    %v2069 = vsub.s32 0, %v2068
    %v2070 = vrot.slane %v2065, %v2069
    %2072 = vmatprep.subr.mxu0 0.0
    %2073 = vmatpush1.msra.mxu0 %v2060
    %2074 = vmatprep.subr.mxu0 0.0
    %2075 = vmatpush1.msra.mxu0 %v2061
    %2076 = vmatprep.subr.mxu0 0.0
    %2077 = vmatpush1.msra.mxu0 %v2062
    %2078 = vmatprep.subr.mxu0 0.0
    %2079 = vmatpush1.msra.mxu0 %v2063
    %2080 = vmatprep.subr.mxu0 0.0
    %2081 = vmatpush1.msra.mxu0 0.0
    %2082 = vmatprep.subr.mxu0 0.0
    %2083 = vmatpush1.msra.mxu0 0.0
    %2084 = vmatprep.subr.mxu0 0.0
    %2085 = vmatpush1.msra.mxu0 0.0
    %2086 = vmatprep.subr.mxu0 0.0
    %2087 = vmatpush1.msra.mxu0 0.0
    %2088 = vmatprep.subr.mxu0 0.0
    %2089 = vmatpush1.msra.mxu0 0.0
    %2090 = vmatprep.subr.mxu0 0.0
    %2091 = vmatpush1.msra.mxu0 0.0
    %2092 = vmatprep.subr.mxu0 0.0
    %2093 = vmatpush1.msra.mxu0 0.0
    %2094 = vmatprep.subr.mxu0 0.0
    %2095 = vmatpush1.msra.mxu0 0.0
    %2096 = vmatprep.subr.mxu0 0.0
    %2097 = vmatpush1.msra.mxu0 0.0
    %2098 = vmatprep.subr.mxu0 0.0
    %2099 = vmatpush1.msra.mxu0 0.0
    %2100 = vmatprep.subr.mxu0 0.0
    %2101 = vmatpush1.msra.mxu0 0.0
    %2102 = vmatprep.subr.mxu0 0.0
    %2103 = vmatpush1.msra.mxu0 0.0
    %2104 = vmatprep.subr.mxu0 0.0
    %2105 = vmatpush1.msra.mxu0 0.0
    %2106 = vmatprep.subr.mxu0 0.0
    %2107 = vmatpush1.msra.mxu0 0.0
    %2108 = vmatprep.subr.mxu0 0.0
    %2109 = vmatpush1.msra.mxu0 0.0
    %2110 = vmatprep.subr.mxu0 0.0
    %2111 = vmatpush1.msra.mxu0 0.0
    %2112 = vmatprep.subr.mxu0 0.0
    %2113 = vmatpush1.msra.mxu0 0.0
    %2114 = vmatprep.subr.mxu0 0.0
    %2115 = vmatpush1.msra.mxu0 0.0
    %2116 = vmatprep.subr.mxu0 0.0
    %2117 = vmatpush1.msra.mxu0 0.0
    %2118 = vmatprep.subr.mxu0 0.0
    %2119 = vmatpush1.msra.mxu0 0.0
    %2120 = vmatprep.subr.mxu0 0.0
    %2121 = vmatpush1.msra.mxu0 0.0
    %2122 = vmatprep.subr.mxu0 0.0
    %2123 = vmatpush1.msra.mxu0 0.0
    %2124 = vmatprep.subr.mxu0 0.0
    %2125 = vmatpush1.msra.mxu0 0.0
    %2126 = vmatprep.subr.mxu0 0.0
    %2127 = vmatpush1.msra.mxu0 0.0
    %2128 = vmatprep.subr.mxu0 0.0
    %2129 = vmatpush1.msra.mxu0 0.0
    %2130 = vmatprep.subr.mxu0 0.0
    %2131 = vmatpush1.msra.mxu0 0.0
    %2132 = vmatprep.subr.mxu0 0.0
    %2133 = vmatpush1.msra.mxu0 0.0
    %2134 = vmatprep.subr.mxu0 0.0
    %2135 = vmatpush1.msra.mxu0 0.0
    %2136 = vmatprep.mubr.f32.mxu0 0.0
    %2137 = vmatmul.mubr.f32.gmra.mrb[0].mxu0 %v1865
    %v2138 = vpop.f32.mrb[0].mxu0
    %v2139 = vadd.f32 %v2070, %v2138
    %v2140 = vpop.f32.mrb[0].mxu0
    %2141 = vmatprep.mubr.f32.mxu0 0.0
    %2142 = vmatmul.mubr.f32.gmra.mrb[0].mxu0 %v1868
    %v2143 = vpop.f32.mrb[0].mxu0
    %v2144 = vadd.f32 %v2070, %v2143
    %v2145 = vpop.f32.mrb[0].mxu0
    %2146 = vmatprep.mubr.f32.mxu0 0.0
    %2147 = vmatmul.mubr.f32.gmra.mrb[0].mxu0 %v1871
    %v2148 = vpop.f32.mrb[0].mxu0
    %v2149 = vadd.f32 %v2070, %v2148
    %v2150 = vpop.f32.mrb[0].mxu0
    %2151 = vmatprep.mubr.f32.mxu0 0.0
    %2152 = vmatmul.mubr.f32.gmra.mrb[0].mxu0 %v1874
    %v2153 = vpop.f32.mrb[0].mxu0
    %v2154 = vadd.f32 %v2070, %v2153
    %v2155 = vpop.f32.mrb[0].mxu0
    %2156 = vdwg.mxu0
    %v2158 = vsel %vm433, %v1943, 0
    %v2161 = vsel %vm433, %v1948, 0
    %v2164 = vsel %vm433, %v1953, 0
    %v2167 = vsel %vm433, %v1958, 0
    %v2170 = vsel %vm433, %v2041, 0
    %v2173 = vsel %vm433, %v2046, 0
    %v2176 = vsel %vm433, %v2051, 0
    %v2179 = vsel %vm433, %v2056, 0
    %2181 = vmatprep.subr.mxu0 0.0
    %2182 = vmatpush1.xpose.msra.mxu0 %v2170
    %2183 = vmatprep.subr.mxu0 0.0
    %2184 = vmatpush1.xpose.msra.mxu0 %v2173
    %2185 = vmatprep.subr.mxu0 0.0
    %2186 = vmatpush1.xpose.msra.mxu0 %v2176
    %2187 = vmatprep.subr.mxu0 0.0
    %2188 = vmatpush1.xpose.msra.mxu0 %v2179
    %2189 = vmatprep.subr.mxu0 0.0
    %2190 = vmatpush1.xpose.msra.mxu0 0.0
    %2191 = vmatprep.subr.mxu0 0.0
    %2192 = vmatpush1.xpose.msra.mxu0 0.0
    %2193 = vmatprep.subr.mxu0 0.0
    %2194 = vmatpush1.xpose.msra.mxu0 0.0
    %2195 = vmatprep.subr.mxu0 0.0
    %2196 = vmatpush1.xpose.msra.mxu0 0.0
    %2197 = vmatprep.subr.mxu0 0.0
    %2198 = vmatpush1.xpose.msra.mxu0 0.0
    %2199 = vmatprep.subr.mxu0 0.0
    %2200 = vmatpush1.xpose.msra.mxu0 0.0
    %2201 = vmatprep.subr.mxu0 0.0
    %2202 = vmatpush1.xpose.msra.mxu0 0.0
    %2203 = vmatprep.subr.mxu0 0.0
    %2204 = vmatpush1.xpose.msra.mxu0 0.0
    %2205 = vmatprep.subr.mxu0 0.0
    %2206 = vmatpush1.xpose.msra.mxu0 0.0
    %2207 = vmatprep.subr.mxu0 0.0
    %2208 = vmatpush1.xpose.msra.mxu0 0.0
    %2209 = vmatprep.subr.mxu0 0.0
    %2210 = vmatpush1.xpose.msra.mxu0 0.0
    %2211 = vmatprep.subr.mxu0 0.0
    %2212 = vmatpush1.xpose.msra.mxu0 0.0
    %2213 = vmatprep.subr.mxu0 0.0
    %2214 = vmatpush1.xpose.msra.mxu0 0.0
    %2215 = vmatprep.subr.mxu0 0.0
    %2216 = vmatpush1.xpose.msra.mxu0 0.0
    %2217 = vmatprep.subr.mxu0 0.0
    %2218 = vmatpush1.xpose.msra.mxu0 0.0
    %2219 = vmatprep.subr.mxu0 0.0
    %2220 = vmatpush1.xpose.msra.mxu0 0.0
    %2221 = vmatprep.subr.mxu0 0.0
    %2222 = vmatpush1.xpose.msra.mxu0 0.0
    %2223 = vmatprep.subr.mxu0 0.0
    %2224 = vmatpush1.xpose.msra.mxu0 0.0
    %2225 = vmatprep.subr.mxu0 0.0
    %2226 = vmatpush1.xpose.msra.mxu0 0.0
    %2227 = vmatprep.subr.mxu0 0.0
    %2228 = vmatpush1.xpose.msra.mxu0 0.0
    %2229 = vmatprep.subr.mxu0 0.0
    %2230 = vmatpush1.xpose.msra.mxu0 0.0
    %2231 = vmatprep.subr.mxu0 0.0
    %2232 = vmatpush1.xpose.msra.mxu0 0.0
    %2233 = vmatprep.subr.mxu0 0.0
    %2234 = vmatpush1.xpose.msra.mxu0 0.0
    %2235 = vmatprep.subr.mxu0 0.0
    %2236 = vmatpush1.xpose.msra.mxu0 0.0
    %2237 = vmatprep.subr.mxu0 0.0
    %2238 = vmatpush1.xpose.msra.mxu0 0.0
    %2239 = vmatprep.subr.mxu0 0.0
    %2240 = vmatpush1.xpose.msra.mxu0 0.0
    %2241 = vmatprep.subr.mxu0 0.0
    %2242 = vmatpush1.xpose.msra.mxu0 0.0
    %2243 = vmatprep.subr.mxu0 0.0
    %2244 = vmatpush1.xpose.msra.mxu0 0.0
    %2245 = vmatprep.mubr.f32.mxu0 0.0
    %2246 = vmatmul.mubr.f32.gmra.mrb[0].mxu0 %v2158
    %v2247 = vpop.f32.mrb[0].mxu0
    %v2248 = vadd.f32 0.0, %v2247
    %v2249 = vpop.f32.mrb[0].mxu0
    %2250 = vmatprep.mubr.f32.mxu0 0.0
    %2251 = vmatmul.mubr.f32.gmra.mrb[0].mxu0 %v2161
    %v2252 = vpop.f32.mrb[0].mxu0
    %v2253 = vadd.f32 0.0, %v2252
    %v2254 = vpop.f32.mrb[0].mxu0
    %2255 = vmatprep.mubr.f32.mxu0 0.0
    %2256 = vmatmul.mubr.f32.gmra.mrb[0].mxu0 %v2164
    %v2257 = vpop.f32.mrb[0].mxu0
    %v2258 = vadd.f32 0.0, %v2257
    %v2259 = vpop.f32.mrb[0].mxu0
    %2260 = vmatprep.mubr.f32.mxu0 0.0
    %2261 = vmatmul.mubr.f32.gmra.mrb[0].mxu0 %v2167
    %v2262 = vpop.f32.mrb[0].mxu0
    %v2263 = vadd.f32 0.0, %v2262
    %v2264 = vpop.f32.mrb[0].mxu0
    %2265 = vdwg.mxu0
    %v2266 = vmul.f32 %v2248, 0.25
    %v2267 = vmul.f32 %v2253, 0.25
    %v2268 = vmul.f32 %v2258, 0.25
    %v2269 = vmul.f32 %v2263, 0.25
    %v2270 = vadd.f32 %v2266, %v48
    %v2271 = vadd.f32 %v2267, %v49
    %v2272 = vadd.f32 %v2268, %v50
    %v2273 = vadd.f32 %v2269, %v51
    %v2274 = vsel %vm58, %v2270, -inf
    %2275 = vmax.xlane.f32.xlu0 %v2274
    %v2276 = vpop.xlane.xlu0 %2275
    %v2277 = vsel %vm58, %v2271, -inf
    %2278 = vmax.xlane.f32.xlu0 %v2277
    %v2279 = vpop.xlane.xlu0 %2278
    %v2280 = vsel %vm58, %v2272, -inf
    %2281 = vmax.xlane.f32.xlu0 %v2280
    %v2282 = vpop.xlane.xlu0 %2281
    %v2283 = vsel %vm58, %v2273, -inf
    %2284 = vmax.xlane.f32.xlu0 %v2283
    %v2285 = vpop.xlane.xlu0 %2284
    %v2286 = vsub.f32 %v2270, %v2276
    %v2287 = vsub.f32 %v2271, %v2279
    %v2288 = vsub.f32 %v2272, %v2282
    %v2289 = vsub.f32 %v2273, %v2285
    %v2290 = vmul.f32 %v2286, 1.442695
    %v2291 = vpow.pop %v2290
    %v2292 = vmul.f32 %v2287, 1.442695
    %v2293 = vpow.pop %v2292
    %v2294 = vmul.f32 %v2288, 1.442695
    %v2295 = vpow.pop %v2294
    %v2296 = vmul.f32 %v2289, 1.442695
    %v2297 = vpow.pop %v2296
    %v2298 = vsel %vm58, %v2291, 0.0
    %2299 = vadd.xlane.f32.xlu0 %v2298
    %v2300 = vpop.xlane.xlu0 %2299
    %v2301 = vsel %vm58, %v2293, 0.0
    %2302 = vadd.xlane.f32.xlu0 %v2301
    %v2303 = vpop.xlane.xlu0 %2302
    %v2304 = vsel %vm58, %v2295, 0.0
    %2305 = vadd.xlane.f32.xlu0 %v2304
    %v2306 = vpop.xlane.xlu0 %2305
    %v2307 = vsel %vm58, %v2297, 0.0
    %2308 = vadd.xlane.f32.xlu0 %v2307
    %v2309 = vpop.xlane.xlu0 %2308
    %v2310 = vrcp.pop %v2300
    %v2311 = vrcp.pop %v2303
    %v2312 = vrcp.pop %v2306
    %v2313 = vrcp.pop %v2309
    %v2314 = vmul.f32 %v2291, %v2310
    %v2315 = vmul.f32 %v2293, %v2311
    %v2316 = vmul.f32 %v2295, %v2312
    %v2317 = vmul.f32 %v2297, %v2313
    %v2319 = vsel %vm58, %v2314, 0
    %v2322 = vsel %vm58, %v2315, 0
    %v2325 = vsel %vm58, %v2316, 0
    %v2328 = vsel %vm58, %v2317, 0
    %2330 = vmatprep.subr.mxu0 0.0
    %2331 = vmatpush1.msra.mxu0 %v2139
    %2332 = vmatprep.subr.mxu0 0.0
    %2333 = vmatpush1.msra.mxu0 %v2144
    %2334 = vmatprep.subr.mxu0 0.0
    %2335 = vmatpush1.msra.mxu0 %v2149
    %2336 = vmatprep.subr.mxu0 0.0
    %2337 = vmatpush1.msra.mxu0 %v2154
    %2338 = vmatprep.subr.mxu0 0.0
    %2339 = vmatpush1.msra.mxu0 0.0
    %2340 = vmatprep.subr.mxu0 0.0
    %2341 = vmatpush1.msra.mxu0 0.0
    %2342 = vmatprep.subr.mxu0 0.0
    %2343 = vmatpush1.msra.mxu0 0.0
    %2344 = vmatprep.subr.mxu0 0.0
    %2345 = vmatpush1.msra.mxu0 0.0
    %2346 = vmatprep.subr.mxu0 0.0
    %2347 = vmatpush1.msra.mxu0 0.0
    %2348 = vmatprep.subr.mxu0 0.0
    %2349 = vmatpush1.msra.mxu0 0.0
    %2350 = vmatprep.subr.mxu0 0.0
    %2351 = vmatpush1.msra.mxu0 0.0
    %2352 = vmatprep.subr.mxu0 0.0
    %2353 = vmatpush1.msra.mxu0 0.0
    %2354 = vmatprep.subr.mxu0 0.0
    %2355 = vmatpush1.msra.mxu0 0.0
    %2356 = vmatprep.subr.mxu0 0.0
    %2357 = vmatpush1.msra.mxu0 0.0
    %2358 = vmatprep.subr.mxu0 0.0
    %2359 = vmatpush1.msra.mxu0 0.0
    %2360 = vmatprep.subr.mxu0 0.0
    %2361 = vmatpush1.msra.mxu0 0.0
    %2362 = vmatprep.subr.mxu0 0.0
    %2363 = vmatpush1.msra.mxu0 0.0
    %2364 = vmatprep.subr.mxu0 0.0
    %2365 = vmatpush1.msra.mxu0 0.0
    %2366 = vmatprep.subr.mxu0 0.0
    %2367 = vmatpush1.msra.mxu0 0.0
    %2368 = vmatprep.subr.mxu0 0.0
    %2369 = vmatpush1.msra.mxu0 0.0
    %2370 = vmatprep.subr.mxu0 0.0
    %2371 = vmatpush1.msra.mxu0 0.0
    %2372 = vmatprep.subr.mxu0 0.0
    %2373 = vmatpush1.msra.mxu0 0.0
    %2374 = vmatprep.subr.mxu0 0.0
    %2375 = vmatpush1.msra.mxu0 0.0
    %2376 = vmatprep.subr.mxu0 0.0
    %2377 = vmatpush1.msra.mxu0 0.0
    %2378 = vmatprep.subr.mxu0 0.0
    %2379 = vmatpush1.msra.mxu0 0.0
    %2380 = vmatprep.subr.mxu0 0.0
    %2381 = vmatpush1.msra.mxu0 0.0
    %2382 = vmatprep.subr.mxu0 0.0
    %2383 = vmatpush1.msra.mxu0 0.0
    %2384 = vmatprep.subr.mxu0 0.0
    %2385 = vmatpush1.msra.mxu0 0.0
    %2386 = vmatprep.subr.mxu0 0.0
    %2387 = vmatpush1.msra.mxu0 0.0
    %2388 = vmatprep.subr.mxu0 0.0
    %2389 = vmatpush1.msra.mxu0 0.0
    %2390 = vmatprep.subr.mxu0 0.0
    %2391 = vmatpush1.msra.mxu0 0.0
    %2392 = vmatprep.subr.mxu0 0.0
    %2393 = vmatpush1.msra.mxu0 0.0
    %2394 = vmatprep.mubr.f32.mxu0 0.0
    %2395 = vmatmul.mubr.f32.gmra.mrb[0].mxu0 %v2319
    %v2396 = vpop.f32.mrb[0].mxu0
    %v2397 = vadd.f32 0.0, %v2396
    %v2398 = vpop.f32.mrb[0].mxu0
    %2399 = vmatprep.mubr.f32.mxu0 0.0
    %2400 = vmatmul.mubr.f32.gmra.mrb[0].mxu0 %v2322
    %v2401 = vpop.f32.mrb[0].mxu0
    %v2402 = vadd.f32 0.0, %v2401
    %v2403 = vpop.f32.mrb[0].mxu0
    %2404 = vmatprep.mubr.f32.mxu0 0.0
    %2405 = vmatmul.mubr.f32.gmra.mrb[0].mxu0 %v2325
    %v2406 = vpop.f32.mrb[0].mxu0
    %v2407 = vadd.f32 0.0, %v2406
    %v2408 = vpop.f32.mrb[0].mxu0
    %2409 = vmatprep.mubr.f32.mxu0 0.0
    %2410 = vmatmul.mubr.f32.gmra.mrb[0].mxu0 %v2328
    %v2411 = vpop.f32.mrb[0].mxu0
    %v2412 = vadd.f32 0.0, %v2411
    %v2413 = vpop.f32.mrb[0].mxu0
    %2414 = vdwg.mxu0
    %s2415 = scalar_lea.vmem %s5, 32
    %v2416 = vld [vmem:[%s2415] sm:$0xff]
    %v2417 = vld [vmem:[%s2415 + $0x8] sm:$0xff]
    %s2418 = scalar_lea.vmem %s3, 224
    %v2419 = vld [vmem:[%s2418] sm:$0xff]
    %v2420 = vld [vmem:[%s2418 + $0x8] sm:$0xff]
    %v2421 = vld [vmem:[%s2418 + $0x10] sm:$0xff]
    %v2422 = vld [vmem:[%s2418 + $0x18] sm:$0xff]
    %s2423 = scalar_lea.vmem %s4, 7
    %v2424 = vld [vmem:[%s2423] sm:$0x1]
    %v2426 = vlaneseq
    %v2427 = vshrl.u32 %v2426, 7
    %v2428 = vsub.s32 0, %v2427
    %v2429 = vrot.slane %v2424, %v2428
    %2431 = vmatprep.subr.mxu0 0.0
    %2432 = vmatpush1.msra.mxu0 %v2419
    %2433 = vmatprep.subr.mxu0 0.0
    %2434 = vmatpush1.msra.mxu0 %v2420
    %2435 = vmatprep.subr.mxu0 0.0
    %2436 = vmatpush1.msra.mxu0 %v2421
    %2437 = vmatprep.subr.mxu0 0.0
    %2438 = vmatpush1.msra.mxu0 %v2422
    %2439 = vmatprep.subr.mxu0 0.0
    %2440 = vmatpush1.msra.mxu0 0.0
    %2441 = vmatprep.subr.mxu0 0.0
    %2442 = vmatpush1.msra.mxu0 0.0
    %2443 = vmatprep.subr.mxu0 0.0
    %2444 = vmatpush1.msra.mxu0 0.0
    %2445 = vmatprep.subr.mxu0 0.0
    %2446 = vmatpush1.msra.mxu0 0.0
    %2447 = vmatprep.subr.mxu0 0.0
    %2448 = vmatpush1.msra.mxu0 0.0
    %2449 = vmatprep.subr.mxu0 0.0
    %2450 = vmatpush1.msra.mxu0 0.0
    %2451 = vmatprep.subr.mxu0 0.0
    %2452 = vmatpush1.msra.mxu0 0.0
    %2453 = vmatprep.subr.mxu0 0.0
    %2454 = vmatpush1.msra.mxu0 0.0
    %2455 = vmatprep.subr.mxu0 0.0
    %2456 = vmatpush1.msra.mxu0 0.0
    %2457 = vmatprep.subr.mxu0 0.0
    %2458 = vmatpush1.msra.mxu0 0.0
    %2459 = vmatprep.subr.mxu0 0.0
    %2460 = vmatpush1.msra.mxu0 0.0
    %2461 = vmatprep.subr.mxu0 0.0
    %2462 = vmatpush1.msra.mxu0 0.0
    %2463 = vmatprep.subr.mxu0 0.0
    %2464 = vmatpush1.msra.mxu0 0.0
    %2465 = vmatprep.subr.mxu0 0.0
    %2466 = vmatpush1.msra.mxu0 0.0
    %2467 = vmatprep.subr.mxu0 0.0
    %2468 = vmatpush1.msra.mxu0 0.0
    %2469 = vmatprep.subr.mxu0 0.0
    %2470 = vmatpush1.msra.mxu0 0.0
    %2471 = vmatprep.subr.mxu0 0.0
    %2472 = vmatpush1.msra.mxu0 0.0
    %2473 = vmatprep.subr.mxu0 0.0
    %2474 = vmatpush1.msra.mxu0 0.0
    %2475 = vmatprep.subr.mxu0 0.0
    %2476 = vmatpush1.msra.mxu0 0.0
    %2477 = vmatprep.subr.mxu0 0.0
    %2478 = vmatpush1.msra.mxu0 0.0
    %2479 = vmatprep.subr.mxu0 0.0
    %2480 = vmatpush1.msra.mxu0 0.0
    %2481 = vmatprep.subr.mxu0 0.0
    %2482 = vmatpush1.msra.mxu0 0.0
    %2483 = vmatprep.subr.mxu0 0.0
    %2484 = vmatpush1.msra.mxu0 0.0
    %2485 = vmatprep.subr.mxu0 0.0
    %2486 = vmatpush1.msra.mxu0 0.0
    %2487 = vmatprep.subr.mxu0 0.0
    %2488 = vmatpush1.msra.mxu0 0.0
    %2489 = vmatprep.subr.mxu0 0.0
    %2490 = vmatpush1.msra.mxu0 0.0
    %2491 = vmatprep.subr.mxu0 0.0
    %2492 = vmatpush1.msra.mxu0 0.0
    %2493 = vmatprep.subr.mxu0 0.0
    %2494 = vmatpush1.msra.mxu0 0.0
    %2495 = vmatprep.mubr.f32.mxu0 0.0
    %2496 = vmatmul.mubr.f32.gmra.mrb[0].mxu0 %v1865
    %v2497 = vpop.f32.mrb[0].mxu0
    %v2498 = vadd.f32 %v2429, %v2497
    %v2499 = vpop.f32.mrb[0].mxu0
    %2500 = vmatprep.mubr.f32.mxu0 0.0
    %2501 = vmatmul.mubr.f32.gmra.mrb[0].mxu0 %v1868
    %v2502 = vpop.f32.mrb[0].mxu0
    %v2503 = vadd.f32 %v2429, %v2502
    %v2504 = vpop.f32.mrb[0].mxu0
    %2505 = vmatprep.mubr.f32.mxu0 0.0
    %2506 = vmatmul.mubr.f32.gmra.mrb[0].mxu0 %v1871
    %v2507 = vpop.f32.mrb[0].mxu0
    %v2508 = vadd.f32 %v2429, %v2507
    %v2509 = vpop.f32.mrb[0].mxu0
    %2510 = vmatprep.mubr.f32.mxu0 0.0
    %2511 = vmatmul.mubr.f32.gmra.mrb[0].mxu0 %v1874
    %v2512 = vpop.f32.mrb[0].mxu0
    %v2513 = vadd.f32 %v2429, %v2512
    %v2514 = vpop.f32.mrb[0].mxu0
    %2515 = vdwg.mxu0
    %s2516 = scalar_lea.vmem %s3, 288
    %v2517 = vld [vmem:[%s2516] sm:$0xff]
    %v2518 = vld [vmem:[%s2516 + $0x8] sm:$0xff]
    %v2519 = vld [vmem:[%s2516 + $0x10] sm:$0xff]
    %v2520 = vld [vmem:[%s2516 + $0x18] sm:$0xff]
    %s2521 = scalar_lea.vmem %s4, 9
    %v2522 = vld [vmem:[%s2521] sm:$0x1]
    %v2524 = vlaneseq
    %v2525 = vshrl.u32 %v2524, 7
    %v2526 = vsub.s32 0, %v2525
    %v2527 = vrot.slane %v2522, %v2526
    %2529 = vmatprep.subr.mxu0 0.0
    %2530 = vmatpush1.msra.mxu0 %v2517
    %2531 = vmatprep.subr.mxu0 0.0
    %2532 = vmatpush1.msra.mxu0 %v2518
    %2533 = vmatprep.subr.mxu0 0.0
    %2534 = vmatpush1.msra.mxu0 %v2519
    %2535 = vmatprep.subr.mxu0 0.0
    %2536 = vmatpush1.msra.mxu0 %v2520
    %2537 = vmatprep.subr.mxu0 0.0
    %2538 = vmatpush1.msra.mxu0 0.0
    %2539 = vmatprep.subr.mxu0 0.0
    %2540 = vmatpush1.msra.mxu0 0.0
    %2541 = vmatprep.subr.mxu0 0.0
    %2542 = vmatpush1.msra.mxu0 0.0
    %2543 = vmatprep.subr.mxu0 0.0
    %2544 = vmatpush1.msra.mxu0 0.0
    %2545 = vmatprep.subr.mxu0 0.0
    %2546 = vmatpush1.msra.mxu0 0.0
    %2547 = vmatprep.subr.mxu0 0.0
    %2548 = vmatpush1.msra.mxu0 0.0
    %2549 = vmatprep.subr.mxu0 0.0
    %2550 = vmatpush1.msra.mxu0 0.0
    %2551 = vmatprep.subr.mxu0 0.0
    %2552 = vmatpush1.msra.mxu0 0.0
    %2553 = vmatprep.subr.mxu0 0.0
    %2554 = vmatpush1.msra.mxu0 0.0
    %2555 = vmatprep.subr.mxu0 0.0
    %2556 = vmatpush1.msra.mxu0 0.0
    %2557 = vmatprep.subr.mxu0 0.0
    %2558 = vmatpush1.msra.mxu0 0.0
    %2559 = vmatprep.subr.mxu0 0.0
    %2560 = vmatpush1.msra.mxu0 0.0
    %2561 = vmatprep.subr.mxu0 0.0
    %2562 = vmatpush1.msra.mxu0 0.0
    %2563 = vmatprep.subr.mxu0 0.0
    %2564 = vmatpush1.msra.mxu0 0.0
    %2565 = vmatprep.subr.mxu0 0.0
    %2566 = vmatpush1.msra.mxu0 0.0
    %2567 = vmatprep.subr.mxu0 0.0
    %2568 = vmatpush1.msra.mxu0 0.0
    %2569 = vmatprep.subr.mxu0 0.0
    %2570 = vmatpush1.msra.mxu0 0.0
    %2571 = vmatprep.subr.mxu0 0.0
    %2572 = vmatpush1.msra.mxu0 0.0
    %2573 = vmatprep.subr.mxu0 0.0
    %2574 = vmatpush1.msra.mxu0 0.0
    %2575 = vmatprep.subr.mxu0 0.0
    %2576 = vmatpush1.msra.mxu0 0.0
    %2577 = vmatprep.subr.mxu0 0.0
    %2578 = vmatpush1.msra.mxu0 0.0
    %2579 = vmatprep.subr.mxu0 0.0
    %2580 = vmatpush1.msra.mxu0 0.0
    %2581 = vmatprep.subr.mxu0 0.0
    %2582 = vmatpush1.msra.mxu0 0.0
    %2583 = vmatprep.subr.mxu0 0.0
    %2584 = vmatpush1.msra.mxu0 0.0
    %2585 = vmatprep.subr.mxu0 0.0
    %2586 = vmatpush1.msra.mxu0 0.0
    %2587 = vmatprep.subr.mxu0 0.0
    %2588 = vmatpush1.msra.mxu0 0.0
    %2589 = vmatprep.subr.mxu0 0.0
    %2590 = vmatpush1.msra.mxu0 0.0
    %2591 = vmatprep.subr.mxu0 0.0
    %2592 = vmatpush1.msra.mxu0 0.0
    %2593 = vmatprep.mubr.f32.mxu0 0.0
    %2594 = vmatmul.mubr.f32.gmra.mrb[0].mxu0 %v1865
    %v2595 = vpop.f32.mrb[0].mxu0
    %v2596 = vadd.f32 %v2527, %v2595
    %v2597 = vpop.f32.mrb[0].mxu0
    %2598 = vmatprep.mubr.f32.mxu0 0.0
    %2599 = vmatmul.mubr.f32.gmra.mrb[0].mxu0 %v1868
    %v2600 = vpop.f32.mrb[0].mxu0
    %v2601 = vadd.f32 %v2527, %v2600
    %v2602 = vpop.f32.mrb[0].mxu0
    %2603 = vmatprep.mubr.f32.mxu0 0.0
    %2604 = vmatmul.mubr.f32.gmra.mrb[0].mxu0 %v1871
    %v2605 = vpop.f32.mrb[0].mxu0
    %v2606 = vadd.f32 %v2527, %v2605
    %v2607 = vpop.f32.mrb[0].mxu0
    %2608 = vmatprep.mubr.f32.mxu0 0.0
    %2609 = vmatmul.mubr.f32.gmra.mrb[0].mxu0 %v1874
    %v2610 = vpop.f32.mrb[0].mxu0
    %v2611 = vadd.f32 %v2527, %v2610
    %v2612 = vpop.f32.mrb[0].mxu0
    %2613 = vdwg.mxu0
    %s2614 = scalar_lea.vmem %s3, 352
    %v2615 = vld [vmem:[%s2614] sm:$0xff]
    %v2616 = vld [vmem:[%s2614 + $0x8] sm:$0xff]
    %v2617 = vld [vmem:[%s2614 + $0x10] sm:$0xff]
    %v2618 = vld [vmem:[%s2614 + $0x18] sm:$0xff]
    %s2619 = scalar_lea.vmem %s4, 11
    %v2620 = vld [vmem:[%s2619] sm:$0x1]
    %v2622 = vlaneseq
    %v2623 = vshrl.u32 %v2622, 7
    %v2624 = vsub.s32 0, %v2623
    %v2625 = vrot.slane %v2620, %v2624
    %2627 = vmatprep.subr.mxu0 0.0
    %2628 = vmatpush1.msra.mxu0 %v2615
    %2629 = vmatprep.subr.mxu0 0.0
    %2630 = vmatpush1.msra.mxu0 %v2616
    %2631 = vmatprep.subr.mxu0 0.0
    %2632 = vmatpush1.msra.mxu0 %v2617
    %2633 = vmatprep.subr.mxu0 0.0
    %2634 = vmatpush1.msra.mxu0 %v2618
    %2635 = vmatprep.subr.mxu0 0.0
    %2636 = vmatpush1.msra.mxu0 0.0
    %2637 = vmatprep.subr.mxu0 0.0
    %2638 = vmatpush1.msra.mxu0 0.0
    %2639 = vmatprep.subr.mxu0 0.0
    %2640 = vmatpush1.msra.mxu0 0.0
    %2641 = vmatprep.subr.mxu0 0.0
    %2642 = vmatpush1.msra.mxu0 0.0
    %2643 = vmatprep.subr.mxu0 0.0
    %2644 = vmatpush1.msra.mxu0 0.0
    %2645 = vmatprep.subr.mxu0 0.0
    %2646 = vmatpush1.msra.mxu0 0.0
    %2647 = vmatprep.subr.mxu0 0.0
    %2648 = vmatpush1.msra.mxu0 0.0
    %2649 = vmatprep.subr.mxu0 0.0
    %2650 = vmatpush1.msra.mxu0 0.0
    %2651 = vmatprep.subr.mxu0 0.0
    %2652 = vmatpush1.msra.mxu0 0.0
    %2653 = vmatprep.subr.mxu0 0.0
    %2654 = vmatpush1.msra.mxu0 0.0
    %2655 = vmatprep.subr.mxu0 0.0
    %2656 = vmatpush1.msra.mxu0 0.0
    %2657 = vmatprep.subr.mxu0 0.0
    %2658 = vmatpush1.msra.mxu0 0.0
    %2659 = vmatprep.subr.mxu0 0.0
    %2660 = vmatpush1.msra.mxu0 0.0
    %2661 = vmatprep.subr.mxu0 0.0
    %2662 = vmatpush1.msra.mxu0 0.0
    %2663 = vmatprep.subr.mxu0 0.0
    %2664 = vmatpush1.msra.mxu0 0.0
    %2665 = vmatprep.subr.mxu0 0.0
    %2666 = vmatpush1.msra.mxu0 0.0
    %2667 = vmatprep.subr.mxu0 0.0
    %2668 = vmatpush1.msra.mxu0 0.0
    %2669 = vmatprep.subr.mxu0 0.0
    %2670 = vmatpush1.msra.mxu0 0.0
    %2671 = vmatprep.subr.mxu0 0.0
    %2672 = vmatpush1.msra.mxu0 0.0
    %2673 = vmatprep.subr.mxu0 0.0
    %2674 = vmatpush1.msra.mxu0 0.0
    %2675 = vmatprep.subr.mxu0 0.0
    %2676 = vmatpush1.msra.mxu0 0.0
    %2677 = vmatprep.subr.mxu0 0.0
    %2678 = vmatpush1.msra.mxu0 0.0
    %2679 = vmatprep.subr.mxu0 0.0
    %2680 = vmatpush1.msra.mxu0 0.0
    %2681 = vmatprep.subr.mxu0 0.0
    %2682 = vmatpush1.msra.mxu0 0.0
    %2683 = vmatprep.subr.mxu0 0.0
    %2684 = vmatpush1.msra.mxu0 0.0
    %2685 = vmatprep.subr.mxu0 0.0
    %2686 = vmatpush1.msra.mxu0 0.0
    %2687 = vmatprep.subr.mxu0 0.0
    %2688 = vmatpush1.msra.mxu0 0.0
    %2689 = vmatprep.subr.mxu0 0.0
    %2690 = vmatpush1.msra.mxu0 0.0
    %2691 = vmatprep.mubr.f32.mxu0 0.0
    %2692 = vmatmul.mubr.f32.gmra.mrb[0].mxu0 %v1865
    %v2693 = vpop.f32.mrb[0].mxu0
    %v2694 = vadd.f32 %v2625, %v2693
    %v2695 = vpop.f32.mrb[0].mxu0
    %2696 = vmatprep.mubr.f32.mxu0 0.0
    %2697 = vmatmul.mubr.f32.gmra.mrb[0].mxu0 %v1868
    %v2698 = vpop.f32.mrb[0].mxu0
    %v2699 = vadd.f32 %v2625, %v2698
    %v2700 = vpop.f32.mrb[0].mxu0
    %2701 = vmatprep.mubr.f32.mxu0 0.0
    %2702 = vmatmul.mubr.f32.gmra.mrb[0].mxu0 %v1871
    %v2703 = vpop.f32.mrb[0].mxu0
    %v2704 = vadd.f32 %v2625, %v2703
    %v2705 = vpop.f32.mrb[0].mxu0
    %2706 = vmatprep.mubr.f32.mxu0 0.0
    %2707 = vmatmul.mubr.f32.gmra.mrb[0].mxu0 %v1874
    %v2708 = vpop.f32.mrb[0].mxu0
    %v2709 = vadd.f32 %v2625, %v2708
    %v2710 = vpop.f32.mrb[0].mxu0
    %2711 = vdwg.mxu0
    %v2713 = vsel %vm433, %v2498, 0
    %v2716 = vsel %vm433, %v2503, 0
    %v2719 = vsel %vm433, %v2508, 0
    %v2722 = vsel %vm433, %v2513, 0
    %v2725 = vsel %vm433, %v2596, 0
    %v2728 = vsel %vm433, %v2601, 0
    %v2731 = vsel %vm433, %v2606, 0
    %v2734 = vsel %vm433, %v2611, 0
    %2736 = vmatprep.subr.mxu0 0.0
    %2737 = vmatpush1.xpose.msra.mxu0 %v2725
    %2738 = vmatprep.subr.mxu0 0.0
    %2739 = vmatpush1.xpose.msra.mxu0 %v2728
    %2740 = vmatprep.subr.mxu0 0.0
    %2741 = vmatpush1.xpose.msra.mxu0 %v2731
    %2742 = vmatprep.subr.mxu0 0.0
    %2743 = vmatpush1.xpose.msra.mxu0 %v2734
    %2744 = vmatprep.subr.mxu0 0.0
    %2745 = vmatpush1.xpose.msra.mxu0 0.0
    %2746 = vmatprep.subr.mxu0 0.0
    %2747 = vmatpush1.xpose.msra.mxu0 0.0
    %2748 = vmatprep.subr.mxu0 0.0
    %2749 = vmatpush1.xpose.msra.mxu0 0.0
    %2750 = vmatprep.subr.mxu0 0.0
    %2751 = vmatpush1.xpose.msra.mxu0 0.0
    %2752 = vmatprep.subr.mxu0 0.0
    %2753 = vmatpush1.xpose.msra.mxu0 0.0
    %2754 = vmatprep.subr.mxu0 0.0
    %2755 = vmatpush1.xpose.msra.mxu0 0.0
    %2756 = vmatprep.subr.mxu0 0.0
    %2757 = vmatpush1.xpose.msra.mxu0 0.0
    %2758 = vmatprep.subr.mxu0 0.0
    %2759 = vmatpush1.xpose.msra.mxu0 0.0
    %2760 = vmatprep.subr.mxu0 0.0
    %2761 = vmatpush1.xpose.msra.mxu0 0.0
    %2762 = vmatprep.subr.mxu0 0.0
    %2763 = vmatpush1.xpose.msra.mxu0 0.0
    %2764 = vmatprep.subr.mxu0 0.0
    %2765 = vmatpush1.xpose.msra.mxu0 0.0
    %2766 = vmatprep.subr.mxu0 0.0
    %2767 = vmatpush1.xpose.msra.mxu0 0.0
    %2768 = vmatprep.subr.mxu0 0.0
    %2769 = vmatpush1.xpose.msra.mxu0 0.0
    %2770 = vmatprep.subr.mxu0 0.0
    %2771 = vmatpush1.xpose.msra.mxu0 0.0
    %2772 = vmatprep.subr.mxu0 0.0
    %2773 = vmatpush1.xpose.msra.mxu0 0.0
    %2774 = vmatprep.subr.mxu0 0.0
    %2775 = vmatpush1.xpose.msra.mxu0 0.0
    %2776 = vmatprep.subr.mxu0 0.0
    %2777 = vmatpush1.xpose.msra.mxu0 0.0
    %2778 = vmatprep.subr.mxu0 0.0
    %2779 = vmatpush1.xpose.msra.mxu0 0.0
    %2780 = vmatprep.subr.mxu0 0.0
    %2781 = vmatpush1.xpose.msra.mxu0 0.0
    %2782 = vmatprep.subr.mxu0 0.0
    %2783 = vmatpush1.xpose.msra.mxu0 0.0
    %2784 = vmatprep.subr.mxu0 0.0
    %2785 = vmatpush1.xpose.msra.mxu0 0.0
    %2786 = vmatprep.subr.mxu0 0.0
    %2787 = vmatpush1.xpose.msra.mxu0 0.0
    %2788 = vmatprep.subr.mxu0 0.0
    %2789 = vmatpush1.xpose.msra.mxu0 0.0
    %2790 = vmatprep.subr.mxu0 0.0
    %2791 = vmatpush1.xpose.msra.mxu0 0.0
    %2792 = vmatprep.subr.mxu0 0.0
    %2793 = vmatpush1.xpose.msra.mxu0 0.0
    %2794 = vmatprep.subr.mxu0 0.0
    %2795 = vmatpush1.xpose.msra.mxu0 0.0
    %2796 = vmatprep.subr.mxu0 0.0
    %2797 = vmatpush1.xpose.msra.mxu0 0.0
    %2798 = vmatprep.subr.mxu0 0.0
    %2799 = vmatpush1.xpose.msra.mxu0 0.0
    %2800 = vmatprep.mubr.f32.mxu0 0.0
    %2801 = vmatmul.mubr.f32.gmra.mrb[0].mxu0 %v2713
    %v2802 = vpop.f32.mrb[0].mxu0
    %v2803 = vadd.f32 0.0, %v2802
    %v2804 = vpop.f32.mrb[0].mxu0
    %2805 = vmatprep.mubr.f32.mxu0 0.0
    %2806 = vmatmul.mubr.f32.gmra.mrb[0].mxu0 %v2716
    %v2807 = vpop.f32.mrb[0].mxu0
    %v2808 = vadd.f32 0.0, %v2807
    %v2809 = vpop.f32.mrb[0].mxu0
    %2810 = vmatprep.mubr.f32.mxu0 0.0
    %2811 = vmatmul.mubr.f32.gmra.mrb[0].mxu0 %v2719
    %v2812 = vpop.f32.mrb[0].mxu0
    %v2813 = vadd.f32 0.0, %v2812
    %v2814 = vpop.f32.mrb[0].mxu0
    %2815 = vmatprep.mubr.f32.mxu0 0.0
    %2816 = vmatmul.mubr.f32.gmra.mrb[0].mxu0 %v2722
    %v2817 = vpop.f32.mrb[0].mxu0
    %v2818 = vadd.f32 0.0, %v2817
    %v2819 = vpop.f32.mrb[0].mxu0
    %2820 = vdwg.mxu0
    %v2821 = vmul.f32 %v2803, 0.25
    %v2822 = vmul.f32 %v2808, 0.25
    %v2823 = vmul.f32 %v2813, 0.25
    %v2824 = vmul.f32 %v2818, 0.25
    %v2825 = vadd.f32 %v2821, %v48
    %v2826 = vadd.f32 %v2822, %v49
    %v2827 = vadd.f32 %v2823, %v50
    %v2828 = vadd.f32 %v2824, %v51
    %v2829 = vsel %vm58, %v2825, -inf
    %2830 = vmax.xlane.f32.xlu0 %v2829
    %v2831 = vpop.xlane.xlu0 %2830
    %v2832 = vsel %vm58, %v2826, -inf
    %2833 = vmax.xlane.f32.xlu0 %v2832
    %v2834 = vpop.xlane.xlu0 %2833
    %v2835 = vsel %vm58, %v2827, -inf
    %2836 = vmax.xlane.f32.xlu0 %v2835
    %v2837 = vpop.xlane.xlu0 %2836
    %v2838 = vsel %vm58, %v2828, -inf
    %2839 = vmax.xlane.f32.xlu0 %v2838
    %v2840 = vpop.xlane.xlu0 %2839
    %v2841 = vsub.f32 %v2825, %v2831
    %v2842 = vsub.f32 %v2826, %v2834
    %v2843 = vsub.f32 %v2827, %v2837
    %v2844 = vsub.f32 %v2828, %v2840
    %v2845 = vmul.f32 %v2841, 1.442695
    %v2846 = vpow.pop %v2845
    %v2847 = vmul.f32 %v2842, 1.442695
    %v2848 = vpow.pop %v2847
    %v2849 = vmul.f32 %v2843, 1.442695
    %v2850 = vpow.pop %v2849
    %v2851 = vmul.f32 %v2844, 1.442695
    %v2852 = vpow.pop %v2851
    %v2853 = vsel %vm58, %v2846, 0.0
    %2854 = vadd.xlane.f32.xlu0 %v2853
    %v2855 = vpop.xlane.xlu0 %2854
    %v2856 = vsel %vm58, %v2848, 0.0
    %2857 = vadd.xlane.f32.xlu0 %v2856
    %v2858 = vpop.xlane.xlu0 %2857
    %v2859 = vsel %vm58, %v2850, 0.0
    %2860 = vadd.xlane.f32.xlu0 %v2859
    %v2861 = vpop.xlane.xlu0 %2860
    %v2862 = vsel %vm58, %v2852, 0.0
    %2863 = vadd.xlane.f32.xlu0 %v2862
    %v2864 = vpop.xlane.xlu0 %2863
    %v2865 = vrcp.pop %v2855
    %v2866 = vrcp.pop %v2858
    %v2867 = vrcp.pop %v2861
    %v2868 = vrcp.pop %v2864
    %v2869 = vmul.f32 %v2846, %v2865
    %v2870 = vmul.f32 %v2848, %v2866
    %v2871 = vmul.f32 %v2850, %v2867
    %v2872 = vmul.f32 %v2852, %v2868
    %v2874 = vsel %vm58, %v2869, 0
    %v2877 = vsel %vm58, %v2870, 0
    %v2880 = vsel %vm58, %v2871, 0
    %v2883 = vsel %vm58, %v2872, 0
    %2885 = vmatprep.subr.mxu0 0.0
    %2886 = vmatpush1.msra.mxu0 %v2694
    %2887 = vmatprep.subr.mxu0 0.0
    %2888 = vmatpush1.msra.mxu0 %v2699
    %2889 = vmatprep.subr.mxu0 0.0
    %2890 = vmatpush1.msra.mxu0 %v2704
    %2891 = vmatprep.subr.mxu0 0.0
    %2892 = vmatpush1.msra.mxu0 %v2709
    %2893 = vmatprep.subr.mxu0 0.0
    %2894 = vmatpush1.msra.mxu0 0.0
    %2895 = vmatprep.subr.mxu0 0.0
    %2896 = vmatpush1.msra.mxu0 0.0
    %2897 = vmatprep.subr.mxu0 0.0
    %2898 = vmatpush1.msra.mxu0 0.0
    %2899 = vmatprep.subr.mxu0 0.0
    %2900 = vmatpush1.msra.mxu0 0.0
    %2901 = vmatprep.subr.mxu0 0.0
    %2902 = vmatpush1.msra.mxu0 0.0
    %2903 = vmatprep.subr.mxu0 0.0
    %2904 = vmatpush1.msra.mxu0 0.0
    %2905 = vmatprep.subr.mxu0 0.0
    %2906 = vmatpush1.msra.mxu0 0.0
    %2907 = vmatprep.subr.mxu0 0.0
    %2908 = vmatpush1.msra.mxu0 0.0
    %2909 = vmatprep.subr.mxu0 0.0
    %2910 = vmatpush1.msra.mxu0 0.0
    %2911 = vmatprep.subr.mxu0 0.0
    %2912 = vmatpush1.msra.mxu0 0.0
    %2913 = vmatprep.subr.mxu0 0.0
    %2914 = vmatpush1.msra.mxu0 0.0
    %2915 = vmatprep.subr.mxu0 0.0
    %2916 = vmatpush1.msra.mxu0 0.0
    %2917 = vmatprep.subr.mxu0 0.0
    %2918 = vmatpush1.msra.mxu0 0.0
    %2919 = vmatprep.subr.mxu0 0.0
    %2920 = vmatpush1.msra.mxu0 0.0
    %2921 = vmatprep.subr.mxu0 0.0
    %2922 = vmatpush1.msra.mxu0 0.0
    %2923 = vmatprep.subr.mxu0 0.0
    %2924 = vmatpush1.msra.mxu0 0.0
    %2925 = vmatprep.subr.mxu0 0.0
    %2926 = vmatpush1.msra.mxu0 0.0
    %2927 = vmatprep.subr.mxu0 0.0
    %2928 = vmatpush1.msra.mxu0 0.0
    %2929 = vmatprep.subr.mxu0 0.0
    %2930 = vmatpush1.msra.mxu0 0.0
    %2931 = vmatprep.subr.mxu0 0.0
    %2932 = vmatpush1.msra.mxu0 0.0
    %2933 = vmatprep.subr.mxu0 0.0
    %2934 = vmatpush1.msra.mxu0 0.0
    %2935 = vmatprep.subr.mxu0 0.0
    %2936 = vmatpush1.msra.mxu0 0.0
    %2937 = vmatprep.subr.mxu0 0.0
    %2938 = vmatpush1.msra.mxu0 0.0
    %2939 = vmatprep.subr.mxu0 0.0
    %2940 = vmatpush1.msra.mxu0 0.0
    %2941 = vmatprep.subr.mxu0 0.0
    %2942 = vmatpush1.msra.mxu0 0.0
    %2943 = vmatprep.subr.mxu0 0.0
    %2944 = vmatpush1.msra.mxu0 0.0
    %2945 = vmatprep.subr.mxu0 0.0
    %2946 = vmatpush1.msra.mxu0 0.0
    %2947 = vmatprep.subr.mxu0 0.0
    %2948 = vmatpush1.msra.mxu0 0.0
    %2949 = vmatprep.mubr.f32.mxu0 0.0
    %2950 = vmatmul.mubr.f32.gmra.mrb[0].mxu0 %v2874
    %v2951 = vpop.f32.mrb[0].mxu0
    %v2952 = vadd.f32 0.0, %v2951
    %v2953 = vpop.f32.mrb[0].mxu0
    %2954 = vmatprep.mubr.f32.mxu0 0.0
    %2955 = vmatmul.mubr.f32.gmra.mrb[0].mxu0 %v2877
    %v2956 = vpop.f32.mrb[0].mxu0
    %v2957 = vadd.f32 0.0, %v2956
    %v2958 = vpop.f32.mrb[0].mxu0
    %2959 = vmatprep.mubr.f32.mxu0 0.0
    %2960 = vmatmul.mubr.f32.gmra.mrb[0].mxu0 %v2880
    %v2961 = vpop.f32.mrb[0].mxu0
    %v2962 = vadd.f32 0.0, %v2961
    %v2963 = vpop.f32.mrb[0].mxu0
    %2964 = vmatprep.mubr.f32.mxu0 0.0
    %2965 = vmatmul.mubr.f32.gmra.mrb[0].mxu0 %v2883
    %v2966 = vpop.f32.mrb[0].mxu0
    %v2967 = vadd.f32 0.0, %v2966
    %v2968 = vpop.f32.mrb[0].mxu0
    %2969 = vdwg.mxu0
    %s2970 = scalar_lea.vmem %s5, 48
    %v2971 = vld [vmem:[%s2970] sm:$0xff]
    %v2972 = vld [vmem:[%s2970 + $0x8] sm:$0xff]
    %v2974 = vsel %vm433, %v2952, 0
    %v2977 = vsel %vm433, %v2957, 0
    %v2980 = vsel %vm433, %v2962, 0
    %v2983 = vsel %vm433, %v2967, 0
    %2985 = vmatprep.subr.mxu0 0.0
    %2986 = vmatpush1.msra.mxu0 %v2971
    %2987 = vmatprep.subr.mxu0 0.0
    %2988 = vmatpush1.msra.mxu0 %v2972
    %2989 = vmatprep.subr.mxu0 0.0
    %2990 = vmatpush1.msra.mxu0 0.0
    %2991 = vmatprep.subr.mxu0 0.0
    %2992 = vmatpush1.msra.mxu0 0.0
    %2993 = vmatprep.subr.mxu0 0.0
    %2994 = vmatpush1.msra.mxu0 0.0
    %2995 = vmatprep.subr.mxu0 0.0
    %2996 = vmatpush1.msra.mxu0 0.0
    %2997 = vmatprep.subr.mxu0 0.0
    %2998 = vmatpush1.msra.mxu0 0.0
    %2999 = vmatprep.subr.mxu0 0.0
    %3000 = vmatpush1.msra.mxu0 0.0
    %3001 = vmatprep.subr.mxu0 0.0
    %3002 = vmatpush1.msra.mxu0 0.0
    %3003 = vmatprep.subr.mxu0 0.0
    %3004 = vmatpush1.msra.mxu0 0.0
    %3005 = vmatprep.subr.mxu0 0.0
    %3006 = vmatpush1.msra.mxu0 0.0
    %3007 = vmatprep.subr.mxu0 0.0
    %3008 = vmatpush1.msra.mxu0 0.0
    %3009 = vmatprep.subr.mxu0 0.0
    %3010 = vmatpush1.msra.mxu0 0.0
    %3011 = vmatprep.subr.mxu0 0.0
    %3012 = vmatpush1.msra.mxu0 0.0
    %3013 = vmatprep.subr.mxu0 0.0
    %3014 = vmatpush1.msra.mxu0 0.0
    %3015 = vmatprep.subr.mxu0 0.0
    %3016 = vmatpush1.msra.mxu0 0.0
    %3017 = vmatprep.subr.mxu0 0.0
    %3018 = vmatpush1.msra.mxu0 0.0
    %3019 = vmatprep.subr.mxu0 0.0
    %3020 = vmatpush1.msra.mxu0 0.0
    %3021 = vmatprep.subr.mxu0 0.0
    %3022 = vmatpush1.msra.mxu0 0.0
    %3023 = vmatprep.subr.mxu0 0.0
    %3024 = vmatpush1.msra.mxu0 0.0
    %3025 = vmatprep.subr.mxu0 0.0
    %3026 = vmatpush1.msra.mxu0 0.0
    %3027 = vmatprep.subr.mxu0 0.0
    %3028 = vmatpush1.msra.mxu0 0.0
    %3029 = vmatprep.subr.mxu0 0.0
    %3030 = vmatpush1.msra.mxu0 0.0
    %3031 = vmatprep.subr.mxu0 0.0
    %3032 = vmatpush1.msra.mxu0 0.0
    %3033 = vmatprep.subr.mxu0 0.0
    %3034 = vmatpush1.msra.mxu0 0.0
    %3035 = vmatprep.subr.mxu0 0.0
    %3036 = vmatpush1.msra.mxu0 0.0
    %3037 = vmatprep.subr.mxu0 0.0
    %3038 = vmatpush1.msra.mxu0 0.0
    %3039 = vmatprep.subr.mxu0 0.0
    %3040 = vmatpush1.msra.mxu0 0.0
    %3041 = vmatprep.subr.mxu0 0.0
    %3042 = vmatpush1.msra.mxu0 0.0
    %3043 = vmatprep.subr.mxu0 0.0
    %3044 = vmatpush1.msra.mxu0 0.0
    %3045 = vmatprep.subr.mxu0 0.0
    %3046 = vmatpush1.msra.mxu0 0.0
    %3047 = vmatprep.subr.mxu0 0.0
    %3048 = vmatpush1.msra.mxu0 0.0
    %3049 = vmatprep.mubr.f32.mxu0 0.0
    %3050 = vmatmul.mubr.f32.gmra.mrb[0].mxu0 %v2974
    %v3051 = vpop.f32.mrb[0].mxu0
    %v3052 = vadd.f32 0.0, %v3051
    %v3053 = vpop.f32.mrb[0].mxu0
    %3054 = vmatprep.mubr.f32.mxu0 0.0
    %3055 = vmatmul.mubr.f32.gmra.mrb[0].mxu0 %v2977
    %v3056 = vpop.f32.mrb[0].mxu0
    %v3057 = vadd.f32 0.0, %v3056
    %v3058 = vpop.f32.mrb[0].mxu0
    %3059 = vmatprep.mubr.f32.mxu0 0.0
    %3060 = vmatmul.mubr.f32.gmra.mrb[0].mxu0 %v2980
    %v3061 = vpop.f32.mrb[0].mxu0
    %v3062 = vadd.f32 0.0, %v3061
    %v3063 = vpop.f32.mrb[0].mxu0
    %3064 = vmatprep.mubr.f32.mxu0 0.0
    %3065 = vmatmul.mubr.f32.gmra.mrb[0].mxu0 %v2983
    %v3066 = vpop.f32.mrb[0].mxu0
    %v3067 = vadd.f32 0.0, %v3066
    %v3068 = vpop.f32.mrb[0].mxu0
    %3069 = vdwg.mxu0
    %v3071 = vsel %vm433, %v2397, 0
    %v3074 = vsel %vm433, %v2402, 0
    %v3077 = vsel %vm433, %v2407, 0
    %v3080 = vsel %vm433, %v2412, 0
    %3082 = vmatprep.subr.mxu0 0.0
    %3083 = vmatpush1.msra.mxu0 %v2416
    %3084 = vmatprep.subr.mxu0 0.0
    %3085 = vmatpush1.msra.mxu0 %v2417
    %3086 = vmatprep.subr.mxu0 0.0
    %3087 = vmatpush1.msra.mxu0 0.0
    %3088 = vmatprep.subr.mxu0 0.0
    %3089 = vmatpush1.msra.mxu0 0.0
    %3090 = vmatprep.subr.mxu0 0.0
    %3091 = vmatpush1.msra.mxu0 0.0
    %3092 = vmatprep.subr.mxu0 0.0
    %3093 = vmatpush1.msra.mxu0 0.0
    %3094 = vmatprep.subr.mxu0 0.0
    %3095 = vmatpush1.msra.mxu0 0.0
    %3096 = vmatprep.subr.mxu0 0.0
    %3097 = vmatpush1.msra.mxu0 0.0
    %3098 = vmatprep.subr.mxu0 0.0
    %3099 = vmatpush1.msra.mxu0 0.0
    %3100 = vmatprep.subr.mxu0 0.0
    %3101 = vmatpush1.msra.mxu0 0.0
    %3102 = vmatprep.subr.mxu0 0.0
    %3103 = vmatpush1.msra.mxu0 0.0
    %3104 = vmatprep.subr.mxu0 0.0
    %3105 = vmatpush1.msra.mxu0 0.0
    %3106 = vmatprep.subr.mxu0 0.0
    %3107 = vmatpush1.msra.mxu0 0.0
    %3108 = vmatprep.subr.mxu0 0.0
    %3109 = vmatpush1.msra.mxu0 0.0
    %3110 = vmatprep.subr.mxu0 0.0
    %3111 = vmatpush1.msra.mxu0 0.0
    %3112 = vmatprep.subr.mxu0 0.0
    %3113 = vmatpush1.msra.mxu0 0.0
    %3114 = vmatprep.subr.mxu0 0.0
    %3115 = vmatpush1.msra.mxu0 0.0
    %3116 = vmatprep.subr.mxu0 0.0
    %3117 = vmatpush1.msra.mxu0 0.0
    %3118 = vmatprep.subr.mxu0 0.0
    %3119 = vmatpush1.msra.mxu0 0.0
    %3120 = vmatprep.subr.mxu0 0.0
    %3121 = vmatpush1.msra.mxu0 0.0
    %3122 = vmatprep.subr.mxu0 0.0
    %3123 = vmatpush1.msra.mxu0 0.0
    %3124 = vmatprep.subr.mxu0 0.0
    %3125 = vmatpush1.msra.mxu0 0.0
    %3126 = vmatprep.subr.mxu0 0.0
    %3127 = vmatpush1.msra.mxu0 0.0
    %3128 = vmatprep.subr.mxu0 0.0
    %3129 = vmatpush1.msra.mxu0 0.0
    %3130 = vmatprep.subr.mxu0 0.0
    %3131 = vmatpush1.msra.mxu0 0.0
    %3132 = vmatprep.subr.mxu0 0.0
    %3133 = vmatpush1.msra.mxu0 0.0
    %3134 = vmatprep.subr.mxu0 0.0
    %3135 = vmatpush1.msra.mxu0 0.0
    %3136 = vmatprep.subr.mxu0 0.0
    %3137 = vmatpush1.msra.mxu0 0.0
    %3138 = vmatprep.subr.mxu0 0.0
    %3139 = vmatpush1.msra.mxu0 0.0
    %3140 = vmatprep.subr.mxu0 0.0
    %3141 = vmatpush1.msra.mxu0 0.0
    %3142 = vmatprep.subr.mxu0 0.0
    %3143 = vmatpush1.msra.mxu0 0.0
    %3144 = vmatprep.subr.mxu0 0.0
    %3145 = vmatpush1.msra.mxu0 0.0
    %3146 = vmatprep.mubr.f32.mxu0 0.0
    %3147 = vmatmul.mubr.f32.gmra.mrb[0].mxu0 %v3071
    %v3148 = vpop.f32.mrb[0].mxu0
    %v3149 = vadd.f32 %v3052, %v3148
    %v3150 = vpop.f32.mrb[0].mxu0
    %3151 = vmatprep.mubr.f32.mxu0 0.0
    %3152 = vmatmul.mubr.f32.gmra.mrb[0].mxu0 %v3074
    %v3153 = vpop.f32.mrb[0].mxu0
    %v3154 = vadd.f32 %v3057, %v3153
    %v3155 = vpop.f32.mrb[0].mxu0
    %3156 = vmatprep.mubr.f32.mxu0 0.0
    %3157 = vmatmul.mubr.f32.gmra.mrb[0].mxu0 %v3077
    %v3158 = vpop.f32.mrb[0].mxu0
    %v3159 = vadd.f32 %v3062, %v3158
    %v3160 = vpop.f32.mrb[0].mxu0
    %3161 = vmatprep.mubr.f32.mxu0 0.0
    %3162 = vmatmul.mubr.f32.gmra.mrb[0].mxu0 %v3080
    %v3163 = vpop.f32.mrb[0].mxu0
    %v3164 = vadd.f32 %v3067, %v3163
    %v3165 = vpop.f32.mrb[0].mxu0
    %3166 = vdwg.mxu0
    %v3167 = vlaneseq
    %v3168 = vshrl.u32 %v3167, 7
    %v3169 = vsub.s32 0, %v3168
    %v3170 = vrot.slane %v1850, %v3169
    %v3171 = vadd.f32 %v3149, %v3170
    %v3172 = vadd.f32 %v3154, %v3170
    %v3173 = vadd.f32 %v3159, %v3170
    %v3174 = vadd.f32 %v3164, %v3170
    %v3175 = vadd.f32 %v3171, %v1845
    %v3176 = vadd.f32 %v3172, %v1846
    %v3177 = vadd.f32 %v3173, %v1847
    %v3178 = vadd.f32 %v3174, %v1848
    %v3179 = vsel %vm58, %v3175, 0.0
    %3180 = vadd.xlane.f32.xlu0 %v3179
    %v3181 = vpop.xlane.xlu0 %3180
    %v3182 = vsel %vm58, %v3176, 0.0
    %3183 = vadd.xlane.f32.xlu0 %v3182
    %v3184 = vpop.xlane.xlu0 %3183
    %v3185 = vsel %vm58, %v3177, 0.0
    %3186 = vadd.xlane.f32.xlu0 %v3185
    %v3187 = vpop.xlane.xlu0 %3186
    %v3188 = vsel %vm58, %v3178, 0.0
    %3189 = vadd.xlane.f32.xlu0 %v3188
    %v3190 = vpop.xlane.xlu0 %3189
    %v3191 = vmul.f32 %v3181, %v71
    %v3192 = vmul.f32 %v3184, %v71
    %v3193 = vmul.f32 %v3187, %v71
    %v3194 = vmul.f32 %v3190, %v71
    %v3195 = vsub.f32 %v3175, %v3191
    %v3196 = vsub.f32 %v3176, %v3192
    %v3197 = vsub.f32 %v3177, %v3193
    %v3198 = vsub.f32 %v3178, %v3194
    %v3199 = vmul.f32 %v3195, %v3195
    %v3200 = vmul.f32 %v3196, %v3196
    %v3201 = vmul.f32 %v3197, %v3197
    %v3202 = vmul.f32 %v3198, %v3198
    %v3203 = vsel %vm58, %v3199, 0.0
    %3204 = vadd.xlane.f32.xlu0 %v3203
    %v3205 = vpop.xlane.xlu0 %3204
    %v3206 = vsel %vm58, %v3200, 0.0
    %3207 = vadd.xlane.f32.xlu0 %v3206
    %v3208 = vpop.xlane.xlu0 %3207
    %v3209 = vsel %vm58, %v3201, 0.0
    %3210 = vadd.xlane.f32.xlu0 %v3209
    %v3211 = vpop.xlane.xlu0 %3210
    %v3212 = vsel %vm58, %v3202, 0.0
    %3213 = vadd.xlane.f32.xlu0 %v3212
    %v3214 = vpop.xlane.xlu0 %3213
    %v3215 = vmul.f32 %v3205, %v71
    %v3216 = vmul.f32 %v3208, %v71
    %v3217 = vmul.f32 %v3211, %v71
    %v3218 = vmul.f32 %v3214, %v71
    %v3219 = vadd.f32 %v3215, 1e-12
    %v3220 = vadd.f32 %v3216, 1e-12
    %v3221 = vadd.f32 %v3217, 1e-12
    %v3222 = vadd.f32 %v3218, 1e-12
    %v3223 = vrsqrt.pop %v3219
    %v3224 = vrsqrt.pop %v3220
    %v3225 = vrsqrt.pop %v3221
    %v3226 = vrsqrt.pop %v3222
    %v3227 = vmul.f32 %v3195, %v3223
    %v3228 = vmul.f32 %v3196, %v3224
    %v3229 = vmul.f32 %v3197, %v3225
    %v3230 = vmul.f32 %v3198, %v3226
    %v3231 = vlaneseq
    %v3232 = vshrl.u32 %v3231, 7
    %v3233 = vsub.s32 1, %v3232
    %v3234 = vrot.slane %v1850, %v3233
    %v3235 = vmul.f32 %v3227, %v3234
    %v3236 = vmul.f32 %v3228, %v3234
    %v3237 = vmul.f32 %v3229, %v3234
    %v3238 = vmul.f32 %v3230, %v3234
    %v3239 = vlaneseq
    %v3240 = vshrl.u32 %v3239, 7
    %v3241 = vsub.s32 2, %v3240
    %v3242 = vrot.slane %v1850, %v3241
    %v3243 = vadd.f32 %v3235, %v3242
    %v3244 = vadd.f32 %v3236, %v3242
    %v3245 = vadd.f32 %v3237, %v3242
    %v3246 = vadd.f32 %v3238, %v3242
    %s3247 = scalar_lea.vmem %s7, 32
    %v3248 = vld [vmem:[%s3247] sm:$0xff]
    %v3249 = vld [vmem:[%s3247 + $0x8] sm:$0xff]
    %v3250 = vld [vmem:[%s3247 + $0x10] sm:$0xff]
    %v3251 = vld [vmem:[%s3247 + $0x18] sm:$0xff]
    %s3252 = scalar_lea.vmem %s8, 1
    %v3253 = vld [vmem:[%s3252] sm:$0x1]
    %v3255 = vlaneseq
    %v3256 = vshrl.u32 %v3255, 7
    %v3257 = vsub.s32 0, %v3256
    %v3258 = vrot.slane %v3253, %v3257
    %v3261 = vsel %vm58, %v3243, 0
    %v3264 = vsel %vm58, %v3244, 0
    %v3267 = vsel %vm58, %v3245, 0
    %v3270 = vsel %vm58, %v3246, 0
    %3272 = vmatprep.subr.mxu0 0.0
    %3273 = vmatpush1.msra.mxu0 %v3248
    %3274 = vmatprep.subr.mxu0 0.0
    %3275 = vmatpush1.msra.mxu0 %v3249
    %3276 = vmatprep.subr.mxu0 0.0
    %3277 = vmatpush1.msra.mxu0 %v3250
    %3278 = vmatprep.subr.mxu0 0.0
    %3279 = vmatpush1.msra.mxu0 %v3251
    %3280 = vmatprep.subr.mxu0 0.0
    %3281 = vmatpush1.msra.mxu0 0.0
    %3282 = vmatprep.subr.mxu0 0.0
    %3283 = vmatpush1.msra.mxu0 0.0
    %3284 = vmatprep.subr.mxu0 0.0
    %3285 = vmatpush1.msra.mxu0 0.0
    %3286 = vmatprep.subr.mxu0 0.0
    %3287 = vmatpush1.msra.mxu0 0.0
    %3288 = vmatprep.subr.mxu0 0.0
    %3289 = vmatpush1.msra.mxu0 0.0
    %3290 = vmatprep.subr.mxu0 0.0
    %3291 = vmatpush1.msra.mxu0 0.0
    %3292 = vmatprep.subr.mxu0 0.0
    %3293 = vmatpush1.msra.mxu0 0.0
    %3294 = vmatprep.subr.mxu0 0.0
    %3295 = vmatpush1.msra.mxu0 0.0
    %3296 = vmatprep.subr.mxu0 0.0
    %3297 = vmatpush1.msra.mxu0 0.0
    %3298 = vmatprep.subr.mxu0 0.0
    %3299 = vmatpush1.msra.mxu0 0.0
    %3300 = vmatprep.subr.mxu0 0.0
    %3301 = vmatpush1.msra.mxu0 0.0
    %3302 = vmatprep.subr.mxu0 0.0
    %3303 = vmatpush1.msra.mxu0 0.0
    %3304 = vmatprep.subr.mxu0 0.0
    %3305 = vmatpush1.msra.mxu0 0.0
    %3306 = vmatprep.subr.mxu0 0.0
    %3307 = vmatpush1.msra.mxu0 0.0
    %3308 = vmatprep.subr.mxu0 0.0
    %3309 = vmatpush1.msra.mxu0 0.0
    %3310 = vmatprep.subr.mxu0 0.0
    %3311 = vmatpush1.msra.mxu0 0.0
    %3312 = vmatprep.subr.mxu0 0.0
    %3313 = vmatpush1.msra.mxu0 0.0
    %3314 = vmatprep.subr.mxu0 0.0
    %3315 = vmatpush1.msra.mxu0 0.0
    %3316 = vmatprep.subr.mxu0 0.0
    %3317 = vmatpush1.msra.mxu0 0.0
    %3318 = vmatprep.subr.mxu0 0.0
    %3319 = vmatpush1.msra.mxu0 0.0
    %3320 = vmatprep.subr.mxu0 0.0
    %3321 = vmatpush1.msra.mxu0 0.0
    %3322 = vmatprep.subr.mxu0 0.0
    %3323 = vmatpush1.msra.mxu0 0.0
    %3324 = vmatprep.subr.mxu0 0.0
    %3325 = vmatpush1.msra.mxu0 0.0
    %3326 = vmatprep.subr.mxu0 0.0
    %3327 = vmatpush1.msra.mxu0 0.0
    %3328 = vmatprep.subr.mxu0 0.0
    %3329 = vmatpush1.msra.mxu0 0.0
    %3330 = vmatprep.subr.mxu0 0.0
    %3331 = vmatpush1.msra.mxu0 0.0
    %3332 = vmatprep.subr.mxu0 0.0
    %3333 = vmatpush1.msra.mxu0 0.0
    %3334 = vmatprep.subr.mxu0 0.0
    %3335 = vmatpush1.msra.mxu0 0.0
    %3336 = vmatprep.mubr.f32.mxu0 0.0
    %3337 = vmatmul.mubr.f32.gmra.mrb[0].mxu0 %v3261
    %v3338 = vpop.f32.mrb[0].mxu0
    %v3339 = vadd.f32 %v3258, %v3338
    %v3340 = vpop.f32.mrb[0].mxu0
    %3341 = vmatprep.mubr.f32.mxu0 0.0
    %3342 = vmatmul.mubr.f32.gmra.mrb[0].mxu0 %v3264
    %v3343 = vpop.f32.mrb[0].mxu0
    %v3344 = vadd.f32 %v3258, %v3343
    %v3345 = vpop.f32.mrb[0].mxu0
    %3346 = vmatprep.mubr.f32.mxu0 0.0
    %3347 = vmatmul.mubr.f32.gmra.mrb[0].mxu0 %v3267
    %v3348 = vpop.f32.mrb[0].mxu0
    %v3349 = vadd.f32 %v3258, %v3348
    %v3350 = vpop.f32.mrb[0].mxu0
    %3351 = vmatprep.mubr.f32.mxu0 0.0
    %3352 = vmatmul.mubr.f32.gmra.mrb[0].mxu0 %v3270
    %v3353 = vpop.f32.mrb[0].mxu0
    %v3354 = vadd.f32 %v3258, %v3353
    %v3355 = vpop.f32.mrb[0].mxu0
    %3356 = vdwg.mxu0
    %v3357 = vmul.f32 %v3339, %v3339
    %v3358 = vmul.f32 %v3344, %v3344
    %v3359 = vmul.f32 %v3349, %v3349
    %v3360 = vmul.f32 %v3354, %v3354
    %v3361 = vmul.f32 %v3339, %v3357
    %v3362 = vmul.f32 %v3344, %v3358
    %v3363 = vmul.f32 %v3349, %v3359
    %v3364 = vmul.f32 %v3354, %v3360
    %v3365 = vmul.f32 %v3361, 0.044715
    %v3366 = vmul.f32 %v3362, 0.044715
    %v3367 = vmul.f32 %v3363, 0.044715
    %v3368 = vmul.f32 %v3364, 0.044715
    %v3369 = vadd.f32 %v3339, %v3365
    %v3370 = vadd.f32 %v3344, %v3366
    %v3371 = vadd.f32 %v3349, %v3367
    %v3372 = vadd.f32 %v3354, %v3368
    %v3373 = vmul.f32 %v3369, 0.7978846
    %v3374 = vmul.f32 %v3370, 0.7978846
    %v3375 = vmul.f32 %v3371, 0.7978846
    %v3376 = vmul.f32 %v3372, 0.7978846
    %v3377 = vtanh.pop %v3373
    %v3378 = vtanh.pop %v3374
    %v3379 = vtanh.pop %v3375
    %v3380 = vtanh.pop %v3376
    %v3381 = vadd.f32 %v3377, 1.0
    %v3382 = vadd.f32 %v3378, 1.0
    %v3383 = vadd.f32 %v3379, 1.0
    %v3384 = vadd.f32 %v3380, 1.0
    %v3385 = vmul.f32 %v3381, 0.5
    %v3386 = vmul.f32 %v3382, 0.5
    %v3387 = vmul.f32 %v3383, 0.5
    %v3388 = vmul.f32 %v3384, 0.5
    %v3389 = vmul.f32 %v3339, %v3385
    %v3390 = vmul.f32 %v3344, %v3386
    %v3391 = vmul.f32 %v3349, %v3387
    %v3392 = vmul.f32 %v3354, %v3388
    %s3393 = scalar_lea.vmem %s9, 64
    %v3394 = vld [vmem:[%s3393] sm:$0xff]
    %v3395 = vld [vmem:[%s3393 + $0x8] sm:$0xff]
    %v3396 = vld [vmem:[%s3393 + $0x10] sm:$0xff]
    %v3397 = vld [vmem:[%s3393 + $0x18] sm:$0xff]
    %v3398 = vld [vmem:[%s3393 + $0x20] sm:$0xff]
    %v3399 = vld [vmem:[%s3393 + $0x28] sm:$0xff]
    %v3400 = vld [vmem:[%s3393 + $0x30] sm:$0xff]
    %v3401 = vld [vmem:[%s3393 + $0x38] sm:$0xff]
    %v3402 = vlaneseq
    %v3403 = vshrl.u32 %v3402, 7
    %v3404 = vsub.s32 3, %v3403
    %v3405 = vrot.slane %v1850, %v3404
    %v3407 = vsel %vm1679, %v3389, 0
    %v3410 = vsel %vm1679, %v3390, 0
    %v3413 = vsel %vm1679, %v3391, 0
    %v3416 = vsel %vm1679, %v3392, 0
    %3418 = vmatprep.subr.mxu0 0.0
    %3419 = vmatpush1.msra.mxu0 %v3394
    %3420 = vmatprep.subr.mxu0 0.0
    %3421 = vmatpush1.msra.mxu0 %v3395
    %3422 = vmatprep.subr.mxu0 0.0
    %3423 = vmatpush1.msra.mxu0 %v3396
    %3424 = vmatprep.subr.mxu0 0.0
    %3425 = vmatpush1.msra.mxu0 %v3397
    %3426 = vmatprep.subr.mxu0 0.0
    %3427 = vmatpush1.msra.mxu0 %v3398
    %3428 = vmatprep.subr.mxu0 0.0
    %3429 = vmatpush1.msra.mxu0 %v3399
    %3430 = vmatprep.subr.mxu0 0.0
    %3431 = vmatpush1.msra.mxu0 %v3400
    %3432 = vmatprep.subr.mxu0 0.0
    %3433 = vmatpush1.msra.mxu0 %v3401
    %3434 = vmatprep.subr.mxu0 0.0
    %3435 = vmatpush1.msra.mxu0 0.0
    %3436 = vmatprep.subr.mxu0 0.0
    %3437 = vmatpush1.msra.mxu0 0.0
    %3438 = vmatprep.subr.mxu0 0.0
    %3439 = vmatpush1.msra.mxu0 0.0
    %3440 = vmatprep.subr.mxu0 0.0
    %3441 = vmatpush1.msra.mxu0 0.0
    %3442 = vmatprep.subr.mxu0 0.0
    %3443 = vmatpush1.msra.mxu0 0.0
    %3444 = vmatprep.subr.mxu0 0.0
    %3445 = vmatpush1.msra.mxu0 0.0
    %3446 = vmatprep.subr.mxu0 0.0
    %3447 = vmatpush1.msra.mxu0 0.0
    %3448 = vmatprep.subr.mxu0 0.0
    %3449 = vmatpush1.msra.mxu0 0.0
    %3450 = vmatprep.subr.mxu0 0.0
    %3451 = vmatpush1.msra.mxu0 0.0
    %3452 = vmatprep.subr.mxu0 0.0
    %3453 = vmatpush1.msra.mxu0 0.0
    %3454 = vmatprep.subr.mxu0 0.0
    %3455 = vmatpush1.msra.mxu0 0.0
    %3456 = vmatprep.subr.mxu0 0.0
    %3457 = vmatpush1.msra.mxu0 0.0
    %3458 = vmatprep.subr.mxu0 0.0
    %3459 = vmatpush1.msra.mxu0 0.0
    %3460 = vmatprep.subr.mxu0 0.0
    %3461 = vmatpush1.msra.mxu0 0.0
    %3462 = vmatprep.subr.mxu0 0.0
    %3463 = vmatpush1.msra.mxu0 0.0
    %3464 = vmatprep.subr.mxu0 0.0
    %3465 = vmatpush1.msra.mxu0 0.0
    %3466 = vmatprep.subr.mxu0 0.0
    %3467 = vmatpush1.msra.mxu0 0.0
    %3468 = vmatprep.subr.mxu0 0.0
    %3469 = vmatpush1.msra.mxu0 0.0
    %3470 = vmatprep.subr.mxu0 0.0
    %3471 = vmatpush1.msra.mxu0 0.0
    %3472 = vmatprep.subr.mxu0 0.0
    %3473 = vmatpush1.msra.mxu0 0.0
    %3474 = vmatprep.subr.mxu0 0.0
    %3475 = vmatpush1.msra.mxu0 0.0
    %3476 = vmatprep.subr.mxu0 0.0
    %3477 = vmatpush1.msra.mxu0 0.0
    %3478 = vmatprep.subr.mxu0 0.0
    %3479 = vmatpush1.msra.mxu0 0.0
    %3480 = vmatprep.subr.mxu0 0.0
    %3481 = vmatpush1.msra.mxu0 0.0
    %3482 = vmatprep.mubr.f32.mxu0 0.0
    %3483 = vmatmul.mubr.f32.gmra.mrb[0].mxu0 %v3407
    %v3484 = vpop.f32.mrb[0].mxu0
    %v3485 = vadd.f32 %v3405, %v3484
    %v3486 = vpop.f32.mrb[0].mxu0
    %3487 = vmatprep.mubr.f32.mxu0 0.0
    %3488 = vmatmul.mubr.f32.gmra.mrb[0].mxu0 %v3410
    %v3489 = vpop.f32.mrb[0].mxu0
    %v3490 = vadd.f32 %v3405, %v3489
    %v3491 = vpop.f32.mrb[0].mxu0
    %3492 = vmatprep.mubr.f32.mxu0 0.0
    %3493 = vmatmul.mubr.f32.gmra.mrb[0].mxu0 %v3413
    %v3494 = vpop.f32.mrb[0].mxu0
    %v3495 = vadd.f32 %v3405, %v3494
    %v3496 = vpop.f32.mrb[0].mxu0
    %3497 = vmatprep.mubr.f32.mxu0 0.0
    %3498 = vmatmul.mubr.f32.gmra.mrb[0].mxu0 %v3416
    %v3499 = vpop.f32.mrb[0].mxu0
    %v3500 = vadd.f32 %v3405, %v3499
    %v3501 = vpop.f32.mrb[0].mxu0
    %3502 = vdwg.mxu0
    %v3503 = vadd.f32 %v3485, %v3243
    %v3504 = vadd.f32 %v3490, %v3244
    %v3505 = vadd.f32 %v3495, %v3245
    %v3506 = vadd.f32 %v3500, %v3246
    %v3507 = vsel %vm58, %v3503, 0.0
    %3508 = vadd.xlane.f32.xlu0 %v3507
    %v3509 = vpop.xlane.xlu0 %3508
    %v3510 = vsel %vm58, %v3504, 0.0
    %3511 = vadd.xlane.f32.xlu0 %v3510
    %v3512 = vpop.xlane.xlu0 %3511
    %v3513 = vsel %vm58, %v3505, 0.0
    %3514 = vadd.xlane.f32.xlu0 %v3513
    %v3515 = vpop.xlane.xlu0 %3514
    %v3516 = vsel %vm58, %v3506, 0.0
    %3517 = vadd.xlane.f32.xlu0 %v3516
    %v3518 = vpop.xlane.xlu0 %3517
    %v3519 = vmul.f32 %v3509, %v71
    %v3520 = vmul.f32 %v3512, %v71
    %v3521 = vmul.f32 %v3515, %v71
    %v3522 = vmul.f32 %v3518, %v71
    %v3523 = vsub.f32 %v3503, %v3519
    %v3524 = vsub.f32 %v3504, %v3520
    %v3525 = vsub.f32 %v3505, %v3521
    %v3526 = vsub.f32 %v3506, %v3522
    %v3527 = vmul.f32 %v3523, %v3523
    %v3528 = vmul.f32 %v3524, %v3524
    %v3529 = vmul.f32 %v3525, %v3525
    %v3530 = vmul.f32 %v3526, %v3526
    %v3531 = vsel %vm58, %v3527, 0.0
    %3532 = vadd.xlane.f32.xlu0 %v3531
    %v3533 = vpop.xlane.xlu0 %3532
    %v3534 = vsel %vm58, %v3528, 0.0
    %3535 = vadd.xlane.f32.xlu0 %v3534
    %v3536 = vpop.xlane.xlu0 %3535
    %v3537 = vsel %vm58, %v3529, 0.0
    %3538 = vadd.xlane.f32.xlu0 %v3537
    %v3539 = vpop.xlane.xlu0 %3538
    %v3540 = vsel %vm58, %v3530, 0.0
    %3541 = vadd.xlane.f32.xlu0 %v3540
    %v3542 = vpop.xlane.xlu0 %3541
    %v3543 = vmul.f32 %v3533, %v71
    %v3544 = vmul.f32 %v3536, %v71
    %v3545 = vmul.f32 %v3539, %v71
    %v3546 = vmul.f32 %v3542, %v71
    %v3547 = vadd.f32 %v3543, 1e-12
    %v3548 = vadd.f32 %v3544, 1e-12
    %v3549 = vadd.f32 %v3545, 1e-12
    %v3550 = vadd.f32 %v3546, 1e-12
    %v3551 = vrsqrt.pop %v3547
    %v3552 = vrsqrt.pop %v3548
    %v3553 = vrsqrt.pop %v3549
    %v3554 = vrsqrt.pop %v3550
    %v3555 = vmul.f32 %v3523, %v3551
    %v3556 = vmul.f32 %v3524, %v3552
    %v3557 = vmul.f32 %v3525, %v3553
    %v3558 = vmul.f32 %v3526, %v3554
    %v3559 = vlaneseq
    %v3560 = vshrl.u32 %v3559, 7
    %v3561 = vsub.s32 4, %v3560
    %v3562 = vrot.slane %v1850, %v3561
    %v3563 = vmul.f32 %v3555, %v3562
    %v3564 = vmul.f32 %v3556, %v3562
    %v3565 = vmul.f32 %v3557, %v3562
    %v3566 = vmul.f32 %v3558, %v3562
    %v3567 = vlaneseq
    %v3568 = vshrl.u32 %v3567, 7
    %v3569 = vsub.s32 5, %v3568
    %v3570 = vrot.slane %v1850, %v3569
    %v3571 = vadd.f32 %v3563, %v3570
    %v3572 = vadd.f32 %v3564, %v3570
    %v3573 = vadd.f32 %v3565, %v3570
    %v3574 = vadd.f32 %v3566, %v3570
    %3575 = vst.msk [vmem:[#allocation2] sm:$0xff] %vm58, %v3571
    %3576 = vst.msk [vmem:[#allocation2 + $0x8] sm:$0xff] %vm58, %v3572
    %3577 = vst.msk [vmem:[#allocation2 + $0x10] sm:$0xff] %vm58, %v3573
    %3578 = vst.msk [vmem:[#allocation2 + $0x18] sm:$0xff] %vm58, %v3574
    %v3579 = vld [vmem:[#allocation2] ss:$8 sm:$0x3]
    %s3580 = scalar_lea.vmem [#allocation2], 16
    %v3581 = vld [vmem:[%s3580] ss:$8 sm:$0x3]
    %v3582 = vld [vmem:[%s10] sm:$0xff]
    %v3583 = vld [vmem:[%s10 + $0x8] sm:$0xff]
    %v3584 = vld [vmem:[%s10 + $0x10] sm:$0xff]
    %v3585 = vld [vmem:[%s10 + $0x18] sm:$0xff]
    %s3586 = scalar_lea.vmem %s10, 32
    %v3587 = vld [vmem:[%s3586] sm:$0xff]
    %v3588 = vld [vmem:[%s3586 + $0x8] sm:$0xff]
    %v3589 = vld [vmem:[%s3586 + $0x10] sm:$0xff]
    %v3590 = vld [vmem:[%s3586 + $0x18] sm:$0xff]
    %v3592 = vsel %vm58, %v3581, 0
    %3594 = vmatprep.subr.mxu0 0.0
    %3595 = vmatpush1.msra.mxu0 %v3587
    %3596 = vmatprep.subr.mxu0 0.0
    %3597 = vmatpush1.msra.mxu0 %v3588
    %3598 = vmatprep.subr.mxu0 0.0
    %3599 = vmatpush1.msra.mxu0 %v3589
    %3600 = vmatprep.subr.mxu0 0.0
    %3601 = vmatpush1.msra.mxu0 %v3590
    %3602 = vmatprep.subr.mxu0 0.0
    %3603 = vmatpush1.msra.mxu0 0.0
    %3604 = vmatprep.subr.mxu0 0.0
    %3605 = vmatpush1.msra.mxu0 0.0
    %3606 = vmatprep.subr.mxu0 0.0
    %3607 = vmatpush1.msra.mxu0 0.0
    %3608 = vmatprep.subr.mxu0 0.0
    %3609 = vmatpush1.msra.mxu0 0.0
    %3610 = vmatprep.subr.mxu0 0.0
    %3611 = vmatpush1.msra.mxu0 0.0
    %3612 = vmatprep.subr.mxu0 0.0
    %3613 = vmatpush1.msra.mxu0 0.0
    %3614 = vmatprep.subr.mxu0 0.0
    %3615 = vmatpush1.msra.mxu0 0.0
    %3616 = vmatprep.subr.mxu0 0.0
    %3617 = vmatpush1.msra.mxu0 0.0
    %3618 = vmatprep.subr.mxu0 0.0
    %3619 = vmatpush1.msra.mxu0 0.0
    %3620 = vmatprep.subr.mxu0 0.0
    %3621 = vmatpush1.msra.mxu0 0.0
    %3622 = vmatprep.subr.mxu0 0.0
    %3623 = vmatpush1.msra.mxu0 0.0
    %3624 = vmatprep.subr.mxu0 0.0
    %3625 = vmatpush1.msra.mxu0 0.0
    %3626 = vmatprep.subr.mxu0 0.0
    %3627 = vmatpush1.msra.mxu0 0.0
    %3628 = vmatprep.subr.mxu0 0.0
    %3629 = vmatpush1.msra.mxu0 0.0
    %3630 = vmatprep.subr.mxu0 0.0
    %3631 = vmatpush1.msra.mxu0 0.0
    %3632 = vmatprep.subr.mxu0 0.0
    %3633 = vmatpush1.msra.mxu0 0.0
    %3634 = vmatprep.subr.mxu0 0.0
    %3635 = vmatpush1.msra.mxu0 0.0
    %3636 = vmatprep.subr.mxu0 0.0
    %3637 = vmatpush1.msra.mxu0 0.0
    %3638 = vmatprep.subr.mxu0 0.0
    %3639 = vmatpush1.msra.mxu0 0.0
    %3640 = vmatprep.subr.mxu0 0.0
    %3641 = vmatpush1.msra.mxu0 0.0
    %3642 = vmatprep.subr.mxu0 0.0
    %3643 = vmatpush1.msra.mxu0 0.0
    %3644 = vmatprep.subr.mxu0 0.0
    %3645 = vmatpush1.msra.mxu0 0.0
    %3646 = vmatprep.subr.mxu0 0.0
    %3647 = vmatpush1.msra.mxu0 0.0
    %3648 = vmatprep.subr.mxu0 0.0
    %3649 = vmatpush1.msra.mxu0 0.0
    %3650 = vmatprep.subr.mxu0 0.0
    %3651 = vmatpush1.msra.mxu0 0.0
    %3652 = vmatprep.subr.mxu0 0.0
    %3653 = vmatpush1.msra.mxu0 0.0
    %3654 = vmatprep.subr.mxu0 0.0
    %3655 = vmatpush1.msra.mxu0 0.0
    %3656 = vmatprep.subr.mxu0 0.0
    %3657 = vmatpush1.msra.mxu0 0.0
    %3658 = vmatprep.mubr.f32.mxu0 0.0
    %3659 = vmatmul.mubr.f32.gmra.mrb[0].mxu0 %v3592
    %v3660 = vpop.f32.mrb[0].mxu0
    %v3661 = vadd.f32 0.0, %v3660
    %v3662 = vpop.f32.mrb[0].mxu0
    %3663 = vdwg.mxu0
    %v3665 = vsel %vm58, %v3579, 0
    %3667 = vmatprep.subr.mxu0 0.0
    %3668 = vmatpush1.msra.mxu0 %v3582
    %3669 = vmatprep.subr.mxu0 0.0
    %3670 = vmatpush1.msra.mxu0 %v3583
    %3671 = vmatprep.subr.mxu0 0.0
    %3672 = vmatpush1.msra.mxu0 %v3584
    %3673 = vmatprep.subr.mxu0 0.0
    %3674 = vmatpush1.msra.mxu0 %v3585
    %3675 = vmatprep.subr.mxu0 0.0
    %3676 = vmatpush1.msra.mxu0 0.0
    %3677 = vmatprep.subr.mxu0 0.0
    %3678 = vmatpush1.msra.mxu0 0.0
    %3679 = vmatprep.subr.mxu0 0.0
    %3680 = vmatpush1.msra.mxu0 0.0
    %3681 = vmatprep.subr.mxu0 0.0
    %3682 = vmatpush1.msra.mxu0 0.0
    %3683 = vmatprep.subr.mxu0 0.0
    %3684 = vmatpush1.msra.mxu0 0.0
    %3685 = vmatprep.subr.mxu0 0.0
    %3686 = vmatpush1.msra.mxu0 0.0
    %3687 = vmatprep.subr.mxu0 0.0
    %3688 = vmatpush1.msra.mxu0 0.0
    %3689 = vmatprep.subr.mxu0 0.0
    %3690 = vmatpush1.msra.mxu0 0.0
    %3691 = vmatprep.subr.mxu0 0.0
    %3692 = vmatpush1.msra.mxu0 0.0
    %3693 = vmatprep.subr.mxu0 0.0
    %3694 = vmatpush1.msra.mxu0 0.0
    %3695 = vmatprep.subr.mxu0 0.0
    %3696 = vmatpush1.msra.mxu0 0.0
    %3697 = vmatprep.subr.mxu0 0.0
    %3698 = vmatpush1.msra.mxu0 0.0
    %3699 = vmatprep.subr.mxu0 0.0
    %3700 = vmatpush1.msra.mxu0 0.0
    %3701 = vmatprep.subr.mxu0 0.0
    %3702 = vmatpush1.msra.mxu0 0.0
    %3703 = vmatprep.subr.mxu0 0.0
    %3704 = vmatpush1.msra.mxu0 0.0
    %3705 = vmatprep.subr.mxu0 0.0
    %3706 = vmatpush1.msra.mxu0 0.0
    %3707 = vmatprep.subr.mxu0 0.0
    %3708 = vmatpush1.msra.mxu0 0.0
    %3709 = vmatprep.subr.mxu0 0.0
    %3710 = vmatpush1.msra.mxu0 0.0
    %3711 = vmatprep.subr.mxu0 0.0
    %3712 = vmatpush1.msra.mxu0 0.0
    %3713 = vmatprep.subr.mxu0 0.0
    %3714 = vmatpush1.msra.mxu0 0.0
    %3715 = vmatprep.subr.mxu0 0.0
    %3716 = vmatpush1.msra.mxu0 0.0
    %3717 = vmatprep.subr.mxu0 0.0
    %3718 = vmatpush1.msra.mxu0 0.0
    %3719 = vmatprep.subr.mxu0 0.0
    %3720 = vmatpush1.msra.mxu0 0.0
    %3721 = vmatprep.subr.mxu0 0.0
    %3722 = vmatpush1.msra.mxu0 0.0
    %3723 = vmatprep.subr.mxu0 0.0
    %3724 = vmatpush1.msra.mxu0 0.0
    %3725 = vmatprep.subr.mxu0 0.0
    %3726 = vmatpush1.msra.mxu0 0.0
    %3727 = vmatprep.subr.mxu0 0.0
    %3728 = vmatpush1.msra.mxu0 0.0
    %3729 = vmatprep.subr.mxu0 0.0
    %3730 = vmatpush1.msra.mxu0 0.0
    %3731 = vmatprep.mubr.f32.mxu0 0.0
    %3732 = vmatmul.mubr.f32.gmra.mrb[0].mxu0 %v3665
    %v3733 = vpop.f32.mrb[0].mxu0
    %v3734 = vadd.f32 %v3661, %v3733
    %v3735 = vpop.f32.mrb[0].mxu0
    %3736 = vdwg.mxu0
    %v3737 = vld [vmem:[%s11] sm:$0x1]
    %v3739 = vlaneseq
    %v3740 = vshrl.u32 %v3739, 7
    %v3741 = vsub.s32 0, %v3740
    %v3742 = vrot.slane %v3737, %v3741
    %v3744 = vadd.f32 %v3734, %v3742
    %vm3745 = vcmask 25600
    %3746 = vst.msk [vmem:[#allocation3] sm:$0x3] %vm3745, %v3744
    %v3747 = vsel %vm3745, %v3744, -inf
    %3748 = vmax.xlane.f32.xlu0 %v3747
    %v3749 = vpop.xlane.xlu0 %3748
    %v3750 = vsub.f32 %v3744, %v3749
    %v3751 = vmul.f32 %v3750, 1.442695
    %v3752 = vpow.pop %v3751
    %v3753 = vsel %vm3745, %v3752, 0.0
    %3754 = vadd.xlane.f32.xlu0 %v3753
    %v3755 = vpop.xlane.xlu0 %3754
    %v3756 = vlog2.pop %v3755
    %v3757 = vmul.f32 %v3756, 0.6931472
    %v3758 = vsub.f32 %v3750, %v3757
    %v3759 = vld [vmem:[%s12] sm:$0x3]
    %v3760 = vmul.f32 %v3759, %v3758
    %v3761 = vsel %vm3745, %v3760, 0.0
    %3762 = vadd.xlane.f32.xlu0 %v3761
    %v3763 = vpop.xlane.xlu0 %3762
    %v3764 = vsub.f32 0.0, %v3763
    %vm3765 = vcmask 1041408
    %v3766 = vsel %vm3765, %v3764, 0.0
    %v3767 = vrot.slane %v3766, 4
    %v3768 = vadd.f32 %v3766, %v3767
    %v3769 = vrot.slane %v3768, 2
    %v3770 = vadd.f32 %v3768, %v3769
    %v3771 = vrot.slane %v3770, 1
    %v3772 = vadd.f32 %v3770, %v3771
    %v3773 = vrcp.pop 2.0
    %v3774 = vmul.f32 %v3772, %v3773
    %vm3775 = vcmask 0
    %3776 = vst.msk [vmem:[#allocation5] sm:$0x1] %vm3775, %v3774
    // Predicated region
    $region54: #{bi_encoder_forward.1} parent=1 // pred_check
      _
    $region55: #{bi_encoder_forward.1} parent=1 // pred_check_branch
      %3778 = sbr.rel (0) target = $region57
    $region56: #{bi_encoder_forward.1} parent=1 // pred_region
      %s3780 = ssub.s32 32, 32
      %3781 = vsyncadd [#allocation4], %s3780
      %s3783 = sshll.u32 [#allocation3], 4
      %s3784 = int_to_ptr.vmem [resolvable:$true] %s3783
      %3786 = dma.vmem_to_hbm [thread:$0]  %s3784, 32, %s13, [#allocation4]
    $region57: #{bi_encoder_forward.1} parent=1 // pred_fallthru
      _
    // Predicated region
    $region58: #{bi_encoder_forward.1} parent=1 // pred_check
      _
    $region59: #{bi_encoder_forward.1} parent=1 // pred_check_branch
      %3788 = sbr.rel (0) target = $region61
    $region60: #{bi_encoder_forward.1} parent=1 // pred_region
      %s3790 = ssub.s32 16, 16
      %3791 = vsyncadd [#allocation6], %s3790
      %s3793 = sshll.u32 [#allocation5], 4
      %s3794 = int_to_ptr.vmem [resolvable:$true] %s3793
      %3796 = dma.vmem_to_hbm [thread:$0]  %s3794, 16, %s14, [#allocation6]
    $region61: #{bi_encoder_forward.1} parent=1 // pred_fallthru
      _
    // Predicated region
    $region62: #{bi_encoder_forward.1} parent=1 // pred_check
      _
    $region63: #{bi_encoder_forward.1} parent=1 // pred_check_branch
      %3798 = sbr.rel (0) target = $region65
    $region64: #{bi_encoder_forward.1} parent=1 // pred_region
      %3799 = dma.done [#allocation4], 32
    $region65: #{bi_encoder_forward.1} parent=1 // pred_fallthru
      _
    // Predicated region
    $region66: #{bi_encoder_forward.1} parent=1 // pred_check
      _
    $region67: #{bi_encoder_forward.1} parent=1 // pred_check_branch
      %3801 = sbr.rel (0) target = $region69
    $region68: #{bi_encoder_forward.1} parent=1 // pred_region
      %3802 = dma.done [#allocation6], 16
    $region69: #{bi_encoder_forward.1} parent=1 // pred_fallthru
      _
    %3803 = vsyncpa [#allocation4], 1
    %3804 = vsyncpa [#allocation6], 1

</llo_original>
